<compile_context>
chip_gen: v5e
topology: v5e:2x2
jax: 0.10.0
libtpu: 0.0.40
codegen_flags: <defaults>
</compile_context>

<pallas_src>
import functools

import jax
import jax.numpy as jnp
from jax.experimental import pallas as pl
from jax.experimental.pallas import tpu as pltpu

BN_EPS = 1e-5
LANE = 128
MATMUL_DTYPE = jnp.float32     # set to jnp.bfloat16 in production (MXU-native operands)
ACT_DTYPE = jnp.float32        # inter-layer activation dtype in HBM (bf16 halves traffic)
VMEM_LIMIT = 64 * 1024 * 1024  # v6e/v5e have 128 MiB physical; v7x has 64 MiB


def _round_up(x, m):
    return (x + m - 1) // m * m


def _pick_tile_h(h, w, max_rows=2048):
    """Largest divisor of h such that the (th*w, 128) output block stays a reasonable size."""
    best = 1
    for th in range(1, h + 1):
        if h % th == 0 and th * w <= max_rows:
            best = th
    return best


# ------------------------------ Pallas kernels -------------------------------

def _conv_relu_stats_kernel(x_ref, w_ref, b_ref, scale_ref, shift_ref,
                            y_ref, stats_ref, xpad_ref, *, th, h, w, wp, cp, cop):
    """3x3 conv (pad=1) + bias + ReLU for one (sample, H-tile); accumulates BN batch stats.

    x_ref:     (1, H, W, Cp)   unpadded input sample (resident across the H-tile axis)
    w_ref:     (3, 3, Cp, Cop) weights (resident)
    b_ref:     (1, Cop)        bias
    scale_ref: (1, Cp)         per-input-channel scale of the PREVIOUS BatchNorm (ones, block 1)
    shift_ref: (1, Cp)         per-input-channel shift of the PREVIOUS BatchNorm (zeros, block 1)
    y_ref:     (1, TH, W, Cop) conv+ReLU output tile (lane-dense, pre-BN)
    stats_ref: (1, 2, Cop)     per-sample [sum, sum_sq] accumulator (resident across tiles)
    xpad_ref:  (H+2, WP, Cp)   VMEM scratch: zero-padded, input-normalized sample slab.
                               Original pixel (r, c) lives at (r+1, c); WP = roundup(W+1, 8),
                               columns >= W and rows {0, H+1} stay exactly zero (halo).
    """
    t = pl.program_id(1)

    # Build the padded + BN-normalized input slab once per sample.  This fuses the previous
    # layer's BatchNorm apply with the conv zero-padding; the halo ring remains exactly zero.
    @pl.when(t == 0)
    def _():
        xpad_ref[...] = jnp.zeros_like(xpad_ref)
        z = x_ref[0].astype(jnp.float32) * scale_ref[...] + shift_ref[...]
        xpad_ref[1:h + 1, 0:w, :] = z.astype(xpad_ref.dtype)
        stats_ref[...] = jnp.zeros_like(stats_ref)

    h0 = t * th
    rows = th * wp
    acc = jnp.zeros((rows, cop), jnp.float32)
    for dh in range(3):
        # Dynamic slice on the untiled leading dim; the flatten is a layout no-op (WP % 8 == 0).
        xs = xpad_ref[pl.ds(h0 + dh, th), :, :].reshape(rows, cp)
        for dw in range(3):
            p = jnp.dot(xs, w_ref[dh, dw], preferred_element_type=jnp.float32)
            # Tap column shift via the XLU (roll), not a sublane-misaligned slice/repack.
            # Wrapped rows land on zero pad columns, so they contribute exactly zero.
            sh = (1 - dw) % rows
            if sh:
                p = pltpu.roll(p, shift=sh, axis=0)
            acc = acc + p

    # Aligned slice (offset 0) of the first W columns, then bias + ReLU in f32.
    y = jnp.maximum(acc.reshape(th, wp, cop)[:, 0:w, :] + b_ref[...], 0.0)
    y_ref[...] = y[None].astype(y_ref.dtype)

    # BN batch-stat partial sums (two aligned slice-adds; no concatenate temp).
    stats_ref[:, 0:1, :] += jnp.sum(y, axis=(0, 1), keepdims=True)
    stats_ref[:, 1:2, :] += jnp.sum(y * y, axis=(0, 1), keepdims=True)


def _bn_apply_kernel(y_ref, scale_ref, shift_ref, o_ref):
    """Elementwise y * scale + shift (BatchNorm with pre-fused per-channel scale/shift)."""
    o_ref[...] = y_ref[...] * scale_ref[...] + shift_ref[...]


# -------------------------------- wrappers -----------------------------------

def _conv_relu_stats(x_nhwc, w_oihw, bias, gamma, beta, in_scale, in_shift):
    """Conv3x3(pad=1)+bias+ReLU with the previous BN fused on the input side.

    Returns (y, scale, shift): y is the pre-BN activation (N, H, W, Cop) with channels >= Cout
    exactly zero; (scale, shift) fold THIS layer's BatchNorm (training-mode batch stats) so it
    can be fused into the next conv's input or applied by _bn_apply.
    """
    n, h, wdt, cp = x_nhwc.shape
    cout, cin = w_oihw.shape[0], w_oihw.shape[1]
    cop = _round_up(cout, LANE)
    th = _pick_tile_h(h, wdt)
    ht = h // th
    wp = _round_up(wdt + 1, 8)

    # Lane-dense (zero channel-padded) parameters.
    wmat = jnp.transpose(w_oihw, (2, 3, 1, 0))                                # (3,3,Cin,Cout)
    wmat = jnp.pad(wmat, ((0, 0), (0, 0), (0, cp - cin), (0, cop - cout)))
    wmat = wmat.astype(MATMUL_DTYPE)
    b_p = jnp.pad(bias, (0, cop - cout)).reshape(1, cop).astype(jnp.float32)

    kernel = functools.partial(_conv_relu_stats_kernel,
                               th=th, h=h, w=wdt, wp=wp, cp=cp, cop=cop)
    y, stats = pl.pallas_call(
        kernel,
        grid=(n, ht),
        in_specs=[
            pl.BlockSpec((1, h, wdt, cp), lambda i, t: (i, 0, 0, 0)),   # sample resident over t
            pl.BlockSpec((3, 3, cp, cop), lambda i, t: (0, 0, 0, 0)),   # weights resident
            pl.BlockSpec((1, cop), lambda i, t: (0, 0)),                # bias
            pl.BlockSpec((1, cp), lambda i, t: (0, 0)),                 # fused input BN scale
            pl.BlockSpec((1, cp), lambda i, t: (0, 0)),                 # fused input BN shift
        ],
        out_specs=(
            pl.BlockSpec((1, th, wdt, cop), lambda i, t: (i, t, 0, 0)),  # conv+ReLU tiles
            pl.BlockSpec((1, 2, cop), lambda i, t: (i, 0, 0)),           # per-sample stats
        ),
        out_shape=(
            jax.ShapeDtypeStruct((n, h, wdt, cop), ACT_DTYPE),
            jax.ShapeDtypeStruct((n, 2, cop), jnp.float32),
        ),
        scratch_shapes=[pltpu.VMEM((h + 2, wp, cp), MATMUL_DTYPE)],
        compiler_params=pltpu.CompilerParams(
            dimension_semantics=("parallel", "arbitrary"),
            vmem_limit_bytes=VMEM_LIMIT),
    )(x_nhwc, wmat, b_p, in_scale, in_shift)

    # Fold batch statistics over (N, H, W) into per-channel scale/shift (tiny O(C) JAX work).
    count = n * h * wdt
    total = jnp.sum(stats, axis=0)                                  # (2, Cop)
    mean = total[0] / count
    var = jnp.maximum(total[1] / count - mean * mean, 0.0)          # biased variance (f32)
    g_p = jnp.pad(gamma, (0, cop - cout)).astype(jnp.float32)
    be_p = jnp.pad(beta, (0, cop - cout)).astype(jnp.float32)
    scale_v = g_p * jax.lax.rsqrt(var + BN_EPS)
    shift_v = be_p - mean * scale_v
    return y, scale_v.reshape(1, cop), shift_v.reshape(1, cop)


def _bn_apply(y, scale, shift):
    """Final BatchNorm apply for the last block (big lane-dense streaming blocks)."""
    n, h, wdt, cop = y.shape
    th = _pick_tile_h(h, wdt)
    ht = h // th
    return pl.pallas_call(
        _bn_apply_kernel,
        grid=(n, ht),
        in_specs=[
            pl.BlockSpec((1, th, wdt, cop), lambda i, t: (i, t, 0, 0)),
            pl.BlockSpec((1, cop), lambda i, t: (0, 0)),
            pl.BlockSpec((1, cop), lambda i, t: (0, 0)),
        ],
        out_specs=pl.BlockSpec((1, th, wdt, cop), lambda i, t: (i, t, 0, 0)),
        out_shape=jax.ShapeDtypeStruct((n, h, wdt, cop), jnp.float32),
        compiler_params=pltpu.CompilerParams(
            dimension_semantics=("parallel", "parallel"),
            vmem_limit_bytes=VMEM_LIMIT),
    )(y, scale, shift)


@jax.jit
def double_conv_layer(x_nchw, params):
    (w1, b1, g1, be1, w2, b2, g2, be2) = params
    cin = w1.shape[1]
    cout = w2.shape[0]
    cp_in = _round_up(cin, LANE)

    x = jnp.transpose(x_nchw, (0, 2, 3, 1))                          # NCHW -> NHWC
    x = jnp.pad(x, ((0, 0), (0, 0), (0, 0), (0, cp_in - cin)))       # lane-dense channels

    ident_scale = jnp.ones((1, cp_in), jnp.float32)
    ident_shift = jnp.zeros((1, cp_in), jnp.float32)

    # Block 1: conv+ReLU, emit BN1 stats (BN1 apply is fused into block 2's input).
    y1, scale1, shift1 = _conv_relu_stats(x, w1, b1, g1, be1, ident_scale, ident_shift)
    # Block 2: BN1 is applied while building conv-2's padded slab (halo stays zero).
    y2, scale2, shift2 = _conv_relu_stats(y1, w2, b2, g2, be2, scale1, shift1)
    # Final BN2 apply (unavoidable second pass once global batch stats are known).
    z = _bn_apply(y2, scale2, shift2)

    z = z[..., :cout]                                                # strip channel padding
    return jnp.transpose(z, (0, 3, 1, 2))                            # NHWC -> NCHW


# ----------------------------- pure-JAX reference ----------------------------

def _reference(x_nchw, params):
    (w1, b1, g1, be1, w2, b2, g2, be2) = params

    def block(hh, wgt, b, g, be):
        y = jax.lax.conv_general_dilated(
            hh, wgt, (1, 1), ((1, 1), (1, 1)),
            dimension_numbers=('NCHW', 'OIHW', 'NCHW'),
            precision=jax.lax.Precision.HIGHEST)
        y = y + b[None, :, None, None]
        y = jnp.maximum(y, 0.0)
        mean = y.mean(axis=(0, 2, 3), keepdims=True)
        var = ((y - mean) ** 2).mean(axis=(0, 2, 3), keepdims=True)
        y = (y - mean) / jnp.sqrt(var + BN_EPS)
        return y * g[None, :, None, None] + be[None, :, None, None]

    y = block(x_nchw, w1, b1, g1, be1)
    return block(y, w2, b2, g2, be2)


# ----------------------------------- main -------------------------------------

if __name__ == "__main__":
    key = jax.random.PRNGKey(0)
    N, Cin, H, W = 2, 4, 16, 16
    Cout = 8

    ks = jax.random.split(key, 9)
    x = jax.random.normal(ks[0], (N, Cin, H, W), jnp.float32)

    # Deterministic synthetic parameters (shapes match the PyTorch module).
    w1 = 0.1 * jax.random.normal(ks[1], (Cout, Cin, 3, 3), jnp.float32)
    b1 = 0.1 * jax.random.normal(ks[2], (Cout,), jnp.float32)
    g1 = jnp.ones((Cout,), jnp.float32) + 0.1 * jax.random.normal(ks[3], (Cout,))
    be1 = 0.1 * jax.random.normal(ks[4], (Cout,))
    w2 = 0.1 * jax.random.normal(ks[5], (Cout, Cout, 3, 3), jnp.float32)
    b2 = 0.1 * jax.random.normal(ks[6], (Cout,), jnp.float32)
    g2 = jnp.ones((Cout,), jnp.float32) + 0.1 * jax.random.normal(ks[7], (Cout,))
    be2 = 0.1 * jax.random.normal(ks[8], (Cout,))
    params = (w1, b1, g1, be1, w2, b2, g2, be2)

    out = jax.block_until_ready(double_conv_layer(x, params))
    assert out.shape == (N, Cout, H, W), out.shape

    ref = jax.block_until_ready(_reference(x, params))
    max_err = float(jnp.max(jnp.abs(out - ref)))
    # f32 operands by default; widen to ~3e-2 if MATMUL_DTYPE/ACT_DTYPE are switched to bf16.
    assert jnp.allclose(out, ref, rtol=1e-2, atol=1e-2), max_err

    print("KERNEL_OK")
</pallas_src>

<mosaic_0001>
module attributes {stable_mosaic.version = 11 : i64} {
  func.func @_conv_relu_stats_kernel(%arg0: i32, %arg1: i32, %arg2: memref<1x16x16x128xf32, #tpu.memory_space<vmem>>, %arg3: memref<3x3x128x128xf32, #tpu.memory_space<vmem>>, %arg4: memref<1x128xf32, #tpu.memory_space<vmem>>, %arg5: memref<1x128xf32, #tpu.memory_space<vmem>>, %arg6: memref<1x128xf32, #tpu.memory_space<vmem>>, %arg7: memref<1x16x16x128xf32, #tpu.memory_space<vmem>>, %arg8: memref<1x2x128xf32, #tpu.memory_space<vmem>>, %arg9: memref<18x24x128xf32, #tpu.memory_space<vmem>>) attributes {dimension_semantics = [#tpu.dimension_semantics<parallel>, #tpu.dimension_semantics<arbitrary>], iteration_bounds = array<i64: 2, 1>, scalar_prefetch = 0 : i64, scratch_operands = 1 : i64, tpu.core_type = #tpu.core_type<tc>, window_params = [{transform_indices = @transform_0, window_bounds = array<i64: 1, 16, 16, 128>}, {pipeline_mode = #tpu.pipeline_mode<synchronous>, transform_indices = @transform_1, window_bounds = array<i64: 3, 3, 128, 128>}, {pipeline_mode = #tpu.pipeline_mode<synchronous>, transform_indices = @transform_2, window_bounds = array<i64: 1, 128>}, {pipeline_mode = #tpu.pipeline_mode<synchronous>, transform_indices = @transform_3, window_bounds = array<i64: 1, 128>}, {pipeline_mode = #tpu.pipeline_mode<synchronous>, transform_indices = @transform_4, window_bounds = array<i64: 1, 128>}, {transform_indices = @transform_5, window_bounds = array<i64: 1, 16, 16, 128>}, {transform_indices = @transform_6, window_bounds = array<i64: 1, 2, 128>}]} {
    %c0_i32 = arith.constant 0 : i32
    %0 = arith.cmpi eq, %arg1, %c0_i32 : i32
    %1 = arith.extui %0 : i1 to i32
    %c0_i32_0 = arith.constant 0 : i32
    %2 = arith.cmpi ne, %1, %c0_i32_0 : i32
    scf.if %2 {
      %cst_76 = arith.constant 0.000000e+00 : f32
      %80 = vector.broadcast %cst_76 : f32 to vector<18x24x128xf32>
      %c0_77 = arith.constant 0 : index
      %c0_78 = arith.constant 0 : index
      %c0_79 = arith.constant 0 : index
      %81 = vector.load %arg9[%c0_77, %c0_78, %c0_79] : memref<18x24x128xf32, #tpu.memory_space<vmem>>, vector<18x24x128xf32>
      tpu.vector_store %arg9[%c0_77, %c0_78, %c0_79], %80 {strides = array<i32>} : memref<18x24x128xf32, #tpu.memory_space<vmem>>, vector<18x24x128xf32>,
      %c0_80 = arith.constant 0 : index
      %c0_81 = arith.constant 0 : index
      %c0_82 = arith.constant 0 : index
      %c0_83 = arith.constant 0 : index
      %82 = vector.load %arg2[%c0_80, %c0_81, %c0_82, %c0_83] : memref<1x16x16x128xf32, #tpu.memory_space<vmem>>, vector<1x16x16x128xf32>
      %83 = vector.shape_cast %82 : vector<1x16x16x128xf32> to vector<16x16x128xf32>
      %c0_84 = arith.constant 0 : index
      %c0_85 = arith.constant 0 : index
      %84 = vector.load %arg5[%c0_84, %c0_85] : memref<1x128xf32, #tpu.memory_space<vmem>>, vector<1x128xf32>
      %85 = vector.shape_cast %84 : vector<1x128xf32> to vector<1x1x128xf32>
      %86 = vector.broadcast %85 : vector<1x1x128xf32> to vector<16x16x128xf32>
      %87 = arith.mulf %83, %86 : vector<16x16x128xf32>
      %c0_86 = arith.constant 0 : index
      %c0_87 = arith.constant 0 : index
      %88 = vector.load %arg6[%c0_86, %c0_87] : memref<1x128xf32, #tpu.memory_space<vmem>>, vector<1x128xf32>
      %89 = vector.shape_cast %88 : vector<1x128xf32> to vector<1x1x128xf32>
      %90 = vector.broadcast %89 : vector<1x1x128xf32> to vector<16x16x128xf32>
      %91 = arith.addf %87, %90 : vector<16x16x128xf32>
      %c1_88 = arith.constant 1 : index
      %c0_89 = arith.constant 0 : index
      %c0_90 = arith.constant 0 : index
      %92 = vector.load %arg9[%c1_88, %c0_89, %c0_90] : memref<18x24x128xf32, #tpu.memory_space<vmem>>, vector<16x16x128xf32>
      tpu.vector_store %arg9[%c1_88, %c0_89, %c0_90], %91 {strides = array<i32>} : memref<18x24x128xf32, #tpu.memory_space<vmem>>, vector<16x16x128xf32>,
      %cst_91 = arith.constant 0.000000e+00 : f32
      %93 = vector.broadcast %cst_91 : f32 to vector<1x2x128xf32>
      %c0_92 = arith.constant 0 : index
      %c0_93 = arith.constant 0 : index
      %c0_94 = arith.constant 0 : index
      %94 = vector.load %arg8[%c0_92, %c0_93, %c0_94] : memref<1x2x128xf32, #tpu.memory_space<vmem>>, vector<1x2x128xf32>
      tpu.vector_store %arg8[%c0_92, %c0_93, %c0_94], %93 {strides = array<i32>} : memref<1x2x128xf32, #tpu.memory_space<vmem>>, vector<1x2x128xf32>,
    } else {
    }
    %c16_i32 = arith.constant 16 : i32
    %3 = arith.muli %arg1, %c16_i32 : i32
    %cst = arith.constant 0.000000e+00 : f32
    %4 = vector.broadcast %cst : f32 to vector<384x128xf32>
    %c0_i32_1 = arith.constant 0 : i32
    %5 = arith.addi %3, %c0_i32_1 : i32
    %6 = arith.index_cast %5 : i32 to index
    %c0 = arith.constant 0 : index
    %c0_2 = arith.constant 0 : index
    %7 = vector.load %arg9[%6, %c0, %c0_2] : memref<18x24x128xf32, #tpu.memory_space<vmem>>, vector<16x24x128xf32>
    %8 = vector.shape_cast %7 : vector<16x24x128xf32> to vector<384x128xf32>
    %c0_3 = arith.constant 0 : index
    %c0_4 = arith.constant 0 : index
    %c0_5 = arith.constant 0 : index
    %c0_6 = arith.constant 0 : index
    %9 = vector.load %arg3[%c0_3, %c0_4, %c0_5, %c0_6] : memref<3x3x128x128xf32, #tpu.memory_space<vmem>>, vector<1x1x128x128xf32>
    %10 = vector.shape_cast %9 : vector<1x1x128x128xf32> to vector<128x128xf32>
    %cst_7 = arith.constant dense<0.000000e+00> : vector<384x128xf32>
    %11 = tpu.matmul %8, %10, %cst_7 {dimension_numbers = #tpu.dot_dimension_numbers<[1], [0], [0], [1], [0, 0, 1, 1], [], []>} : vector<384x128xf32>, vector<128x128xf32>, vector<384x128xf32> -> vector<384x128xf32>
    %c1_i32 = arith.constant 1 : i32
    %12 = tpu.dynamic_rotate %11 by %c1_i32 dim 0 : vector<384x128xf32>, i32 -> vector<384x128xf32>
    %13 = arith.addf %4, %12 : vector<384x128xf32>
    %c0_8 = arith.constant 0 : index
    %c1 = arith.constant 1 : index
    %c0_9 = arith.constant 0 : index
    %c0_10 = arith.constant 0 : index
    %14 = vector.load %arg3[%c0_8, %c1, %c0_9, %c0_10] : memref<3x3x128x128xf32, #tpu.memory_space<vmem>>, vector<1x1x128x128xf32>
    %15 = vector.shape_cast %14 : vector<1x1x128x128xf32> to vector<128x128xf32>
    %cst_11 = arith.constant dense<0.000000e+00> : vector<384x128xf32>
    %16 = tpu.matmul %8, %15, %cst_11 {dimension_numbers = #tpu.dot_dimension_numbers<[1], [0], [0], [1], [0, 0, 1, 1], [], []>} : vector<384x128xf32>, vector<128x128xf32>, vector<384x128xf32> -> vector<384x128xf32>
    %17 = arith.addf %13, %16 : vector<384x128xf32>
    %c0_12 = arith.constant 0 : index
    %c2 = arith.constant 2 : index
    %c0_13 = arith.constant 0 : index
    %c0_14 = arith.constant 0 : index
    %18 = vector.load %arg3[%c0_12, %c2, %c0_13, %c0_14] : memref<3x3x128x128xf32, #tpu.memory_space<vmem>>, vector<1x1x128x128xf32>
    %19 = vector.shape_cast %18 : vector<1x1x128x128xf32> to vector<128x128xf32>
    %cst_15 = arith.constant dense<0.000000e+00> : vector<384x128xf32>
    %20 = tpu.matmul %8, %19, %cst_15 {dimension_numbers = #tpu.dot_dimension_numbers<[1], [0], [0], [1], [0, 0, 1, 1], [], []>} : vector<384x128xf32>, vector<128x128xf32>, vector<384x128xf32> -> vector<384x128xf32>
    %c383_i32 = arith.constant 383 : i32
    %21 = tpu.dynamic_rotate %20 by %c383_i32 dim 0 : vector<384x128xf32>, i32 -> vector<384x128xf32>
    %22 = arith.addf %17, %21 : vector<384x128xf32>
    %c1_i32_16 = arith.constant 1 : i32
    %23 = arith.addi %3, %c1_i32_16 : i32
    %24 = arith.index_cast %23 : i32 to index
    %c0_17 = arith.constant 0 : index
    %c0_18 = arith.constant 0 : index
    %25 = vector.load %arg9[%24, %c0_17, %c0_18] : memref<18x24x128xf32, #tpu.memory_space<vmem>>, vector<16x24x128xf32>
    %26 = vector.shape_cast %25 : vector<16x24x128xf32> to vector<384x128xf32>
    %c1_19 = arith.constant 1 : index
    %c0_20 = arith.constant 0 : index
    %c0_21 = arith.constant 0 : index
    %c0_22 = arith.constant 0 : index
    %27 = vector.load %arg3[%c1_19, %c0_20, %c0_21, %c0_22] : memref<3x3x128x128xf32, #tpu.memory_space<vmem>>, vector<1x1x128x128xf32>
    %28 = vector.shape_cast %27 : vector<1x1x128x128xf32> to vector<128x128xf32>
    %cst_23 = arith.constant dense<0.000000e+00> : vector<384x128xf32>
    %29 = tpu.matmul %26, %28, %cst_23 {dimension_numbers = #tpu.dot_dimension_numbers<[1], [0], [0], [1], [0, 0, 1, 1], [], []>} : vector<384x128xf32>, vector<128x128xf32>, vector<384x128xf32> -> vector<384x128xf32>
    %c1_i32_24 = arith.constant 1 : i32
    %30 = tpu.dynamic_rotate %29 by %c1_i32_24 dim 0 : vector<384x128xf32>, i32 -> vector<384x128xf32>
    %31 = arith.addf %22, %30 : vector<384x128xf32>
    %c1_25 = arith.constant 1 : index
    %c1_26 = arith.constant 1 : index
    %c0_27 = arith.constant 0 : index
    %c0_28 = arith.constant 0 : index
    %32 = vector.load %arg3[%c1_25, %c1_26, %c0_27, %c0_28] : memref<3x3x128x128xf32, #tpu.memory_space<vmem>>, vector<1x1x128x128xf32>
    %33 = vector.shape_cast %32 : vector<1x1x128x128xf32> to vector<128x128xf32>
    %cst_29 = arith.constant dense<0.000000e+00> : vector<384x128xf32>
    %34 = tpu.matmul %26, %33, %cst_29 {dimension_numbers = #tpu.dot_dimension_numbers<[1], [0], [0], [1], [0, 0, 1, 1], [], []>} : vector<384x128xf32>, vector<128x128xf32>, vector<384x128xf32> -> vector<384x128xf32>
    %35 = arith.addf %31, %34 : vector<384x128xf32>
    %c1_30 = arith.constant 1 : index
    %c2_31 = arith.constant 2 : index
    %c0_32 = arith.constant 0 : index
    %c0_33 = arith.constant 0 : index
    %36 = vector.load %arg3[%c1_30, %c2_31, %c0_32, %c0_33] : memref<3x3x128x128xf32, #tpu.memory_space<vmem>>, vector<1x1x128x128xf32>
    %37 = vector.shape_cast %36 : vector<1x1x128x128xf32> to vector<128x128xf32>
    %cst_34 = arith.constant dense<0.000000e+00> : vector<384x128xf32>
    %38 = tpu.matmul %26, %37, %cst_34 {dimension_numbers = #tpu.dot_dimension_numbers<[1], [0], [0], [1], [0, 0, 1, 1], [], []>} : vector<384x128xf32>, vector<128x128xf32>, vector<384x128xf32> -> vector<384x128xf32>
    %c383_i32_35 = arith.constant 383 : i32
    %39 = tpu.dynamic_rotate %38 by %c383_i32_35 dim 0 : vector<384x128xf32>, i32 -> vector<384x128xf32>
    %40 = arith.addf %35, %39 : vector<384x128xf32>
    %c2_i32 = arith.constant 2 : i32
    %41 = arith.addi %3, %c2_i32 : i32
    %42 = arith.index_cast %41 : i32 to index
    %c0_36 = arith.constant 0 : index
    %c0_37 = arith.constant 0 : index
    %43 = vector.load %arg9[%42, %c0_36, %c0_37] : memref<18x24x128xf32, #tpu.memory_space<vmem>>, vector<16x24x128xf32>
    %44 = vector.shape_cast %43 : vector<16x24x128xf32> to vector<384x128xf32>
    %c2_38 = arith.constant 2 : index
    %c0_39 = arith.constant 0 : index
    %c0_40 = arith.constant 0 : index
    %c0_41 = arith.constant 0 : index
    %45 = vector.load %arg3[%c2_38, %c0_39, %c0_40, %c0_41] : memref<3x3x128x128xf32, #tpu.memory_space<vmem>>, vector<1x1x128x128xf32>
    %46 = vector.shape_cast %45 : vector<1x1x128x128xf32> to vector<128x128xf32>
    %cst_42 = arith.constant dense<0.000000e+00> : vector<384x128xf32>
    %47 = tpu.matmul %44, %46, %cst_42 {dimension_numbers = #tpu.dot_dimension_numbers<[1], [0], [0], [1], [0, 0, 1, 1], [], []>} : vector<384x128xf32>, vector<128x128xf32>, vector<384x128xf32> -> vector<384x128xf32>
    %c1_i32_43 = arith.constant 1 : i32
    %48 = tpu.dynamic_rotate %47 by %c1_i32_43 dim 0 : vector<384x128xf32>, i32 -> vector<384x128xf32>
    %49 = arith.addf %40, %48 : vector<384x128xf32>
    %c2_44 = arith.constant 2 : index
    %c1_45 = arith.constant 1 : index
    %c0_46 = arith.constant 0 : index
    %c0_47 = arith.constant 0 : index
    %50 = vector.load %arg3[%c2_44, %c1_45, %c0_46, %c0_47] : memref<3x3x128x128xf32, #tpu.memory_space<vmem>>, vector<1x1x128x128xf32>
    %51 = vector.shape_cast %50 : vector<1x1x128x128xf32> to vector<128x128xf32>
    %cst_48 = arith.constant dense<0.000000e+00> : vector<384x128xf32>
    %52 = tpu.matmul %44, %51, %cst_48 {dimension_numbers = #tpu.dot_dimension_numbers<[1], [0], [0], [1], [0, 0, 1, 1], [], []>} : vector<384x128xf32>, vector<128x128xf32>, vector<384x128xf32> -> vector<384x128xf32>
    %53 = arith.addf %49, %52 : vector<384x128xf32>
    %c2_49 = arith.constant 2 : index
    %c2_50 = arith.constant 2 : index
    %c0_51 = arith.constant 0 : index
    %c0_52 = arith.constant 0 : index
    %54 = vector.load %arg3[%c2_49, %c2_50, %c0_51, %c0_52] : memref<3x3x128x128xf32, #tpu.memory_space<vmem>>, vector<1x1x128x128xf32>
    %55 = vector.shape_cast %54 : vector<1x1x128x128xf32> to vector<128x128xf32>
    %cst_53 = arith.constant dense<0.000000e+00> : vector<384x128xf32>
    %56 = tpu.matmul %44, %55, %cst_53 {dimension_numbers = #tpu.dot_dimension_numbers<[1], [0], [0], [1], [0, 0, 1, 1], [], []>} : vector<384x128xf32>, vector<128x128xf32>, vector<384x128xf32> -> vector<384x128xf32>
    %c383_i32_54 = arith.constant 383 : i32
    %57 = tpu.dynamic_rotate %56 by %c383_i32_54 dim 0 : vector<384x128xf32>, i32 -> vector<384x128xf32>
    %58 = arith.addf %53, %57 : vector<384x128xf32>
    %59 = vector.shape_cast %58 : vector<384x128xf32> to vector<16x24x128xf32>
    %60 = vector.extract_strided_slice %59 {offsets = [0, 0, 0], sizes = [16, 16, 128], strides = [1, 1, 1]} : vector<16x24x128xf32> to vector<16x16x128xf32>
    %c0_55 = arith.constant 0 : index
    %c0_56 = arith.constant 0 : index
    %61 = vector.load %arg4[%c0_55, %c0_56] : memref<1x128xf32, #tpu.memory_space<vmem>>, vector<1x128xf32>
    %62 = vector.shape_cast %61 : vector<1x128xf32> to vector<1x1x128xf32>
    %63 = vector.broadcast %62 : vector<1x1x128xf32> to vector<16x16x128xf32>
    %64 = arith.addf %60, %63 : vector<16x16x128xf32>
    %cst_57 = arith.constant 0.000000e+00 : f32
    %65 = vector.broadcast %cst_57 : f32 to vector<16x16x128xf32>
    %66 = arith.maximumf %64, %65 : vector<16x16x128xf32>
    %67 = vector.shape_cast %66 : vector<16x16x128xf32> to vector<1x16x16x128xf32>
    %c0_58 = arith.constant 0 : index
    %c0_59 = arith.constant 0 : index
    %c0_60 = arith.constant 0 : index
    %c0_61 = arith.constant 0 : index
    %68 = vector.load %arg7[%c0_58, %c0_59, %c0_60, %c0_61] : memref<1x16x16x128xf32, #tpu.memory_space<vmem>>, vector<1x16x16x128xf32>
    tpu.vector_store %arg7[%c0_58, %c0_59, %c0_60, %c0_61], %67 {strides = array<i32>} : memref<1x16x16x128xf32, #tpu.memory_space<vmem>>, vector<1x16x16x128xf32>,
    %c0_62 = arith.constant 0 : index
    %c0_63 = arith.constant 0 : index
    %c0_64 = arith.constant 0 : index
    %69 = vector.load %arg8[%c0_62, %c0_63, %c0_64] : memref<1x2x128xf32, #tpu.memory_space<vmem>>, vector<1x1x128xf32>
    %cst_65 = arith.constant dense<0.000000e+00> : vector<128xf32>
    %70 = vector.multi_reduction <add>, %66, %cst_65 [0, 1] : vector<16x16x128xf32> to vector<128xf32>
    %71 = vector.shape_cast %70 : vector<128xf32> to vector<1x1x128xf32>
    %72 = arith.addf %69, %71 : vector<1x1x128xf32>
    %c0_66 = arith.constant 0 : index
    %c0_67 = arith.constant 0 : index
    %c0_68 = arith.constant 0 : index
    %73 = vector.load %arg8[%c0_66, %c0_67, %c0_68] : memref<1x2x128xf32, #tpu.memory_space<vmem>>, vector<1x1x128xf32>
    tpu.vector_store %arg8[%c0_66, %c0_67, %c0_68], %72 {strides = array<i32>} : memref<1x2x128xf32, #tpu.memory_space<vmem>>, vector<1x1x128xf32>,
    %c0_69 = arith.constant 0 : index
    %c1_70 = arith.constant 1 : index
    %c0_71 = arith.constant 0 : index
    %74 = vector.load %arg8[%c0_69, %c1_70, %c0_71] : memref<1x2x128xf32, #tpu.memory_space<vmem>>, vector<1x1x128xf32>
    %75 = arith.mulf %66, %66 : vector<16x16x128xf32>
    %cst_72 = arith.constant dense<0.000000e+00> : vector<128xf32>
    %76 = vector.multi_reduction <add>, %75, %cst_72 [0, 1] : vector<16x16x128xf32> to vector<128xf32>
    %77 = vector.shape_cast %76 : vector<128xf32> to vector<1x1x128xf32>
    %78 = arith.addf %74, %77 : vector<1x1x128xf32>
    %c0_73 = arith.constant 0 : index
    %c1_74 = arith.constant 1 : index
    %c0_75 = arith.constant 0 : index
    %79 = vector.load %arg8[%c0_73, %c1_74, %c0_75] : memref<1x2x128xf32, #tpu.memory_space<vmem>>, vector<1x1x128xf32>
    tpu.vector_store %arg8[%c0_73, %c1_74, %c0_75], %78 {strides = array<i32>} : memref<1x2x128xf32, #tpu.memory_space<vmem>>, vector<1x1x128xf32>,
    return
  }
  func.func @transform_0(%arg0: i32, %arg1: i32) -> (i32, i32, i32, i32) {
    %c0_i32 = arith.constant 0 : i32
    %c0_i32_0 = arith.constant 0 : i32
    %c0_i32_1 = arith.constant 0 : i32
    %c0_i32_2 = arith.constant 0 : i32
    return %arg0, %c0_i32, %c0_i32_0, %c0_i32_1 : i32, i32, i32, i32
  }
  func.func @transform_1(%arg0: i32, %arg1: i32) -> (i32, i32, i32, i32) {
    %c0_i32 = arith.constant 0 : i32
    %c0_i32_0 = arith.constant 0 : i32
    %c0_i32_1 = arith.constant 0 : i32
    %c0_i32_2 = arith.constant 0 : i32
    %c0_i32_3 = arith.constant 0 : i32
    return %c0_i32, %c0_i32_0, %c0_i32_1, %c0_i32_2 : i32, i32, i32, i32
  }
  func.func @transform_2(%arg0: i32, %arg1: i32) -> (i32, i32) {
    %c0_i32 = arith.constant 0 : i32
    %c0_i32_0 = arith.constant 0 : i32
    %c0_i32_1 = arith.constant 0 : i32
    return %c0_i32, %c0_i32_0 : i32, i32
  }
  func.func @transform_3(%arg0: i32, %arg1: i32) -> (i32, i32) {
    %c0_i32 = arith.constant 0 : i32
    %c0_i32_0 = arith.constant 0 : i32
    %c0_i32_1 = arith.constant 0 : i32
    return %c0_i32, %c0_i32_0 : i32, i32
  }
  func.func @transform_4(%arg0: i32, %arg1: i32) -> (i32, i32) {
    %c0_i32 = arith.constant 0 : i32
    %c0_i32_0 = arith.constant 0 : i32
    %c0_i32_1 = arith.constant 0 : i32
    return %c0_i32, %c0_i32_0 : i32, i32
  }
  func.func @transform_5(%arg0: i32, %arg1: i32) -> (i32, i32, i32, i32) {
    %c0_i32 = arith.constant 0 : i32
    %c0_i32_0 = arith.constant 0 : i32
    %c0_i32_1 = arith.constant 0 : i32
    return %arg0, %arg1, %c0_i32, %c0_i32_0 : i32, i32, i32, i32
  }
  func.func @transform_6(%arg0: i32, %arg1: i32) -> (i32, i32, i32) {
    %c0_i32 = arith.constant 0 : i32
    %c0_i32_0 = arith.constant 0 : i32
    %c0_i32_1 = arith.constant 0 : i32
    return %arg0, %c0_i32, %c0_i32_0 : i32, i32, i32
  }
}

module attributes {stable_mosaic.version = 11 : i64} {
  func.func @_bn_apply_kernel(%arg0: i32, %arg1: i32, %arg2: memref<1x16x16x128xf32, #tpu.memory_space<vmem>>, %arg3: memref<1x128xf32, #tpu.memory_space<vmem>>, %arg4: memref<1x128xf32, #tpu.memory_space<vmem>>, %arg5: memref<1x16x16x128xf32, #tpu.memory_space<vmem>>) attributes {dimension_semantics = [#tpu.dimension_semantics<parallel>, #tpu.dimension_semantics<parallel>], iteration_bounds = array<i64: 2, 1>, scalar_prefetch = 0 : i64, scratch_operands = 0 : i64, tpu.core_type = #tpu.core_type<tc>, window_params = [{transform_indices = @transform_0, window_bounds = array<i64: 1, 16, 16, 128>}, {pipeline_mode = #tpu.pipeline_mode<synchronous>, transform_indices = @transform_1, window_bounds = array<i64: 1, 128>}, {pipeline_mode = #tpu.pipeline_mode<synchronous>, transform_indices = @transform_2, window_bounds = array<i64: 1, 128>}, {transform_indices = @transform_3, window_bounds = array<i64: 1, 16, 16, 128>}]} {
    %c0 = arith.constant 0 : index
    %c0_0 = arith.constant 0 : index
    %c0_1 = arith.constant 0 : index
    %c0_2 = arith.constant 0 : index
    %0 = vector.load %arg2[%c0, %c0_0, %c0_1, %c0_2] : memref<1x16x16x128xf32, #tpu.memory_space<vmem>>, vector<1x16x16x128xf32>
    %c0_3 = arith.constant 0 : index
    %c0_4 = arith.constant 0 : index
    %1 = vector.load %arg3[%c0_3, %c0_4] : memref<1x128xf32, #tpu.memory_space<vmem>>, vector<1x128xf32>
    %2 = vector.shape_cast %1 : vector<1x128xf32> to vector<1x1x1x128xf32>
    %3 = vector.broadcast %2 : vector<1x1x1x128xf32> to vector<1x16x16x128xf32>
    %4 = arith.mulf %0, %3 : vector<1x16x16x128xf32>
    %c0_5 = arith.constant 0 : index
    %c0_6 = arith.constant 0 : index
    %5 = vector.load %arg4[%c0_5, %c0_6] : memref<1x128xf32, #tpu.memory_space<vmem>>, vector<1x128xf32>
    %6 = vector.shape_cast %5 : vector<1x128xf32> to vector<1x1x1x128xf32>
    %7 = vector.broadcast %6 : vector<1x1x1x128xf32> to vector<1x16x16x128xf32>
    %8 = arith.addf %4, %7 : vector<1x16x16x128xf32>
    %c0_7 = arith.constant 0 : index
    %c0_8 = arith.constant 0 : index
    %c0_9 = arith.constant 0 : index
    %c0_10 = arith.constant 0 : index
    %9 = vector.load %arg5[%c0_7, %c0_8, %c0_9, %c0_10] : memref<1x16x16x128xf32, #tpu.memory_space<vmem>>, vector<1x16x16x128xf32>
    tpu.vector_store %arg5[%c0_7, %c0_8, %c0_9, %c0_10], %8 {strides = array<i32>} : memref<1x16x16x128xf32, #tpu.memory_space<vmem>>, vector<1x16x16x128xf32>,
    return
  }
  func.func @transform_0(%arg0: i32, %arg1: i32) -> (i32, i32, i32, i32) {
    %c0_i32 = arith.constant 0 : i32
    %c0_i32_0 = arith.constant 0 : i32
    %c0_i32_1 = arith.constant 0 : i32
    return %arg0, %arg1, %c0_i32, %c0_i32_0 : i32, i32, i32, i32
  }
  func.func @transform_1(%arg0: i32, %arg1: i32) -> (i32, i32) {
    %c0_i32 = arith.constant 0 : i32
    %c0_i32_0 = arith.constant 0 : i32
    %c0_i32_1 = arith.constant 0 : i32
    return %c0_i32, %c0_i32_0 : i32, i32
  }
  func.func @transform_2(%arg0: i32, %arg1: i32) -> (i32, i32) {
    %c0_i32 = arith.constant 0 : i32
    %c0_i32_0 = arith.constant 0 : i32
    %c0_i32_1 = arith.constant 0 : i32
    return %c0_i32, %c0_i32_0 : i32, i32
  }
  func.func @transform_3(%arg0: i32, %arg1: i32) -> (i32, i32, i32, i32) {
    %c0_i32 = arith.constant 0 : i32
    %c0_i32_0 = arith.constant 0 : i32
    %c0_i32_1 = arith.constant 0 : i32
    return %arg0, %arg1, %c0_i32, %c0_i32_0 : i32, i32, i32, i32
  }
}

</mosaic_0001>

<llo_original>
// kernel: double_conv_layer.5
$region0: #{double_conv_layer.5}
  #allocation0 [shape = 'u32[]', space=smem, size = 0x4, offset = 0x4, fixed_abs, tag = 'smem constant byte address 0x4 - core index']
  #allocation1 [shape = 'u32[72,128]{1,0:T(1,128)}', space=vmem, size = 0x9000, scoped, tag = 'internal scratch']
  %s0 = inlined_call_operand.vmem [shape: f32[2,16,16,128], index: 0, kind: input, shape index: {}]
  %s1 = inlined_call_operand.vmem [shape: f32[1,128], index: 1, kind: input, shape index: {}]
  %s2 = inlined_call_operand.vmem [shape: f32[1,128], index: 2, kind: input, shape index: {}]
  %s3 = inlined_call_operand.vmem [shape: f32[2,16,16,128], index: 3, kind: output, shape index: {}]
  %s4 = sld [smem:[#allocation0]]
  $region45: #{double_conv_layer.5} parent=0
    _
  %s6 = ssub.s32 1, %s4
  %s7 = scalar_select 0, %s6, %s4
  loop: start=0, step=1, limit=4
  $region2: #{double_conv_layer.5} parent=0 // loop_pre_header
    _
  $region3: #{double_conv_layer.5} parent=0 // loop_header
    %s9 = sphi 0, %s13
    %p10 = scmp.ge.s32.totalorder %s9, 4
    %s16 = sphi 0, %s28
    %s17 = sphi 0, %s24
    %s18 = sphi 0, %s16
    %s19 = sphi 0, %s17
    %s20 = sphi 0, %s18
    %s21 = sphi 0, %s19
    %s33 = sphi 0, %s35
    %s36 = sphi 0, %s33
    %s37 = sphi 0, %s36
    %s53 = sphi 0, %s37
    %s57 = sphi 0, %s57
    %s59 = sphi 0, %s57
    %s60 = sphi 0, %s59
    %s74 = sphi 0, %s60
    %s78 = sphi 0, %s78
    %s80 = sphi 0, %s78
    %s81 = sphi 0, %s80
    %s95 = sphi 0, %s81
    %s103 = sphi 0, %s105
    %s106 = sphi 0, %s103
    %s107 = sphi 0, %s106
    %s123 = sphi 0, %s107
  $region4: #{double_conv_layer.5} parent=0 // loop_header_branch
    %12 = sbr.rel (%p10) target = $region8
  $region5: #{double_conv_layer.5} parent=0 // loop_body
    %s14 = ssub.s32 %s9, 1
    %s15 = ssub.s32 %s9, 2
    %s22 = sadd.s32 1, %s17
    %p23 = scmp.ge.s32.totalorder %s22, 1
    %s24 = scalar_select %p23, 0, %s22
    %s25 = sadd.s32 1, %s16
    %s26 = scalar_select %p23, %s25, %s16
    %p27 = scmp.ge.s32.totalorder %s26, 2
    %s28 = scalar_select %p27, 0, %s26
    %s29 = ssub.s32 %s16, %s28
    %s30 = ssub.s32 %s17, %s24
    %s31 = sor.u32 %s29, %s30
    %p32 = scmp.eq.s32.totalorder %s31, 0
    %s34 = sadd.s32 %s33, 1
    %s35 = scalar_select %p32, %s33, %s34
    %p38 = pneg %p32
    %p39 = scmp.eq.s32.totalorder %s9, 1
    %p40 = por %p38, %p39
    %p41 = scmp.ne.s32.totalorder %s33, %s36
    %p42 = scmp.eq.s32.totalorder %s9, 0
    %p43 = por %p41, %p42
    %p44 = scmp.ne.s32.totalorder %s33, %s36
    %p45 = scmp.eq.s32.totalorder %s14, 1
    %p46 = por %p44, %p45
    %p47 = scmp.ne.s32.totalorder %s36, %s37
    %p48 = scmp.eq.s32.totalorder %s14, 0
    %p49 = por %p47, %p48
    %p50 = scmp.ne.s32.totalorder %s36, %s37
    %p51 = scmp.eq.s32.totalorder %s15, 1
    %p52 = por %p50, %p51
    %p54 = scmp.ne.s32.totalorder %s37, %s53
    %p55 = scmp.eq.s32.totalorder %s15, 0
    %p56 = por %p54, %p55
    %s58 = sadd.s32 %s57, 1
    %p61 = scmp.eq.s32.totalorder %s9, 1
    %p62 = scmp.ne.s32.totalorder %s57, %s59
    %p63 = scmp.eq.s32.totalorder %s9, 0
    %p64 = por %p62, %p63
    %p65 = scmp.ne.s32.totalorder %s57, %s59
    %p66 = scmp.eq.s32.totalorder %s14, 1
    %p67 = por %p65, %p66
    %p68 = scmp.ne.s32.totalorder %s59, %s60
    %p69 = scmp.eq.s32.totalorder %s14, 0
    %p70 = por %p68, %p69
    %p71 = scmp.ne.s32.totalorder %s59, %s60
    %p72 = scmp.eq.s32.totalorder %s15, 1
    %p73 = por %p71, %p72
    %p75 = scmp.ne.s32.totalorder %s60, %s74
    %p76 = scmp.eq.s32.totalorder %s15, 0
    %p77 = por %p75, %p76
    %s79 = sadd.s32 %s78, 1
    %p82 = scmp.eq.s32.totalorder %s9, 1
    %p83 = scmp.ne.s32.totalorder %s78, %s80
    %p84 = scmp.eq.s32.totalorder %s9, 0
    %p85 = por %p83, %p84
    %p86 = scmp.ne.s32.totalorder %s78, %s80
    %p87 = scmp.eq.s32.totalorder %s14, 1
    %p88 = por %p86, %p87
    %p89 = scmp.ne.s32.totalorder %s80, %s81
    %p90 = scmp.eq.s32.totalorder %s14, 0
    %p91 = por %p89, %p90
    %p92 = scmp.ne.s32.totalorder %s80, %s81
    %p93 = scmp.eq.s32.totalorder %s15, 1
    %p94 = por %p92, %p93
    %p96 = scmp.ne.s32.totalorder %s81, %s95
    %p97 = scmp.eq.s32.totalorder %s15, 0
    %p98 = por %p96, %p97
    %s99 = ssub.s32 %s16, %s28
    %s100 = ssub.s32 %s17, %s24
    %s101 = sor.u32 %s99, %s100
    %p102 = scmp.eq.s32.totalorder %s101, 0
    %s104 = sadd.s32 %s103, 1
    %s105 = scalar_select %p102, %s103, %s104
    %p108 = pneg %p102
    %p109 = scmp.eq.s32.totalorder %s9, 1
    %p110 = por %p108, %p109
    %p111 = scmp.ne.s32.totalorder %s103, %s106
    %p112 = scmp.eq.s32.totalorder %s9, 0
    %p113 = por %p111, %p112
    %p114 = scmp.ne.s32.totalorder %s103, %s106
    %p115 = scmp.eq.s32.totalorder %s14, 1
    %p116 = por %p114, %p115
    %p117 = scmp.ne.s32.totalorder %s106, %s107
    %p118 = scmp.eq.s32.totalorder %s14, 0
    %p119 = por %p117, %p118
    %p120 = scmp.ne.s32.totalorder %s106, %s107
    %p121 = scmp.eq.s32.totalorder %s15, 1
    %p122 = por %p120, %p121
    %p124 = scmp.ne.s32.totalorder %s107, %s123
    %p125 = scmp.eq.s32.totalorder %s15, 0
    %p126 = por %p124, %p125
    %p127 = scmp.le.s32.totalorder 1, %s9
    %p128 = scmp.lt.s32.totalorder %s9, 3
    %p129 = pnand %p127, %p128
    %p130 = pneg %p129
    // Predicated region
    $region9: #{double_conv_layer.5} parent=5 // pred_check
      _
    $region10: #{double_conv_layer.5} parent=5 // pred_check_branch
      %132 = sbr.rel (%p129) target = $region12
    $region11: #{double_conv_layer.5} parent=5 // pred_region
      %s133 = ssub.s32 %s9, 1
      // Predicated region
      $region13: #{double_conv_layer.5} parent=11 // pred_check
        %p134 = pneg %p70
      $region14: #{double_conv_layer.5} parent=11 // pred_check_branch
        %136 = sbr.rel (%p134) target = $region16
      $region15: #{double_conv_layer.5} parent=11 // pred_region
        _
      $region16: #{double_conv_layer.5} parent=11 // pred_fallthru
        _
      // Predicated region
      $region17: #{double_conv_layer.5} parent=11 // pred_check
        %p137 = pneg %p91
      $region18: #{double_conv_layer.5} parent=11 // pred_check_branch
        %139 = sbr.rel (%p137) target = $region20
      $region19: #{double_conv_layer.5} parent=11 // pred_region
        _
      $region20: #{double_conv_layer.5} parent=11 // pred_fallthru
        _
    $region12: #{double_conv_layer.5} parent=5 // pred_fallthru
      _
    %p140 = scmp.lt.s32.totalorder %s9, 2
    // Predicated region
    $region21: #{double_conv_layer.5} parent=5 // pred_check
      %p141 = pneg %p140
    $region22: #{double_conv_layer.5} parent=5 // pred_check_branch
      %143 = sbr.rel (%p141) target = $region24
    $region23: #{double_conv_layer.5} parent=5 // pred_region
      // Predicated region
      $region25: #{double_conv_layer.5} parent=23 // pred_check
        %p144 = pneg %p43
      $region26: #{double_conv_layer.5} parent=23 // pred_check_branch
        %146 = sbr.rel (%p144) target = $region28
      $region27: #{double_conv_layer.5} parent=23 // pred_region
        %s147 = smul.u32 16, %s17
        %p148 = scmp.lt.s32.totalorder %s16, 1
        %s149 = scalar_select %p148, %s16, 1
        %p150 = scmp.lt.s32.totalorder %s147, 15
        %s151 = scalar_select %p150, %s147, 15
        %s152 = smul.addr %s151, 2
        %s153 = smul.addr %s149, 32
        %s154 = sadd.s32 %s152, %s153
        %s155 = smul.addr %s154, 8
        %s156 = scalar_lea.vmem %s0, %s155
        %s157 = smul.u32 16, %s17
      $region28: #{double_conv_layer.5} parent=23 // pred_fallthru
        _
    $region24: #{double_conv_layer.5} parent=5 // pred_fallthru
      _
    %p158 = scmp.le.s32.totalorder 1, %s9
    %p159 = scmp.lt.s32.totalorder %s9, 3
    %p160 = pnand %p158, %p159
    %p161 = pneg %p160
    // Predicated region
    $region29: #{double_conv_layer.5} parent=5 // pred_check
      _
    $region30: #{double_conv_layer.5} parent=5 // pred_check_branch
      %163 = sbr.rel (%p160) target = $region32
    $region31: #{double_conv_layer.5} parent=5 // pred_region
      %s164 = ssub.s32 %s9, 1
      %s165 = smul.u32 16, %s19
      %p166 = scmp.lt.s32.totalorder %s18, 1
      %s167 = scalar_select %p166, %s18, 1
      %p168 = scmp.lt.s32.totalorder %s165, 15
      %s169 = scalar_select %p168, %s165, 15
      %s170 = smul.addr %s169, 2
      %s171 = smul.addr %s167, 32
      %s172 = sadd.s32 %s170, %s171
      %s173 = smul.addr %s172, 8
      %s174 = scalar_lea.vmem %s0, %s173
      %p175 = pneg %p49
      %p176 = pneg %p46
      %p177 = pneg %p70
      %p178 = pneg %p67
      %p179 = pneg %p91
      %p180 = pneg %p88
      %p181 = pneg %p119
      %p182 = pneg %p116
      %s183 = smul.u32 16, %s19
      %p184 = scmp.lt.s32.totalorder %s18, 1
      %s185 = scalar_select %p184, %s18, 1
      %p186 = scmp.lt.s32.totalorder %s183, 15
      %s187 = scalar_select %p186, %s183, 15
      %s188 = smul.addr %s187, 2
      %s189 = smul.addr %s185, 32
      %s190 = sadd.s32 %s188, %s189
      %s191 = smul.addr %s190, 8
      %s192 = scalar_lea.vmem %s3, %s191
      %s193 = smul.u32 16, %s19
      %p194 = scmp.lt.s32.totalorder %s18, 1
      %s195 = scalar_select %p194, %s18, 1
      %p196 = scmp.lt.s32.totalorder %s193, 15
      %s197 = scalar_select %p196, %s193, 15
      %s198 = smul.addr %s197, 2
      %s199 = smul.addr %s195, 32
      %s200 = sadd.s32 %s198, %s199
      %s201 = smul.addr %s200, 8
      %s202 = scalar_lea.vmem %s0, %s201
      %s203 = smul.u32 16, %s19
      %s204 = smul.u32 16, %s19
      %p205 = scmp.lt.s32.totalorder %s18, 1
      %s206 = scalar_select %p205, %s18, 1
      %p207 = scmp.lt.s32.totalorder %s204, 15
      %s208 = scalar_select %p207, %s204, 15
      %s209 = smul.addr %s208, 2
      %s210 = smul.addr %s206, 32
      %s211 = sadd.s32 %s209, %s210
      %s212 = smul.addr %s211, 8
      %s213 = scalar_lea.vmem %s3, %s212
      %s214 = smul.u32 16, %s19
      %v215 = vld [vmem:[%s202] sm:$0xff]
      %v216 = vld [vmem:[%s202 + $0x8] sm:$0xff]
      %v217 = vld [vmem:[%s202 + $0x10] sm:$0xff]
      %v218 = vld [vmem:[%s202 + $0x18] sm:$0xff]
      %v219 = vld [vmem:[%s202 + $0x20] sm:$0xff]
      %v220 = vld [vmem:[%s202 + $0x28] sm:$0xff]
      %v221 = vld [vmem:[%s202 + $0x30] sm:$0xff]
      %v222 = vld [vmem:[%s202 + $0x38] sm:$0xff]
      %v223 = vld [vmem:[%s202 + $0x40] sm:$0xff]
      %v224 = vld [vmem:[%s202 + $0x48] sm:$0xff]
      %v225 = vld [vmem:[%s202 + $0x50] sm:$0xff]
      %v226 = vld [vmem:[%s202 + $0x58] sm:$0xff]
      %v227 = vld [vmem:[%s202 + $0x60] sm:$0xff]
      %v228 = vld [vmem:[%s202 + $0x68] sm:$0xff]
      %v229 = vld [vmem:[%s202 + $0x70] sm:$0xff]
      %v230 = vld [vmem:[%s202 + $0x78] sm:$0xff]
      %v231 = vld [vmem:[%s202 + $0x80] sm:$0xff]
      %v232 = vld [vmem:[%s202 + $0x88] sm:$0xff]
      %v233 = vld [vmem:[%s202 + $0x90] sm:$0xff]
      %v234 = vld [vmem:[%s202 + $0x98] sm:$0xff]
      %v235 = vld [vmem:[%s202 + $0xa0] sm:$0xff]
      %v236 = vld [vmem:[%s202 + $0xa8] sm:$0xff]
      %v237 = vld [vmem:[%s202 + $0xb0] sm:$0xff]
      %v238 = vld [vmem:[%s202 + $0xb8] sm:$0xff]
      %v239 = vld [vmem:[%s202 + $0xc0] sm:$0xff]
      %v240 = vld [vmem:[%s202 + $0xc8] sm:$0xff]
      %v241 = vld [vmem:[%s202 + $0xd0] sm:$0xff]
      %v242 = vld [vmem:[%s202 + $0xd8] sm:$0xff]
      %v243 = vld [vmem:[%s202 + $0xe0] sm:$0xff]
      %v244 = vld [vmem:[%s202 + $0xe8] sm:$0xff]
      %v245 = vld [vmem:[%s202 + $0xf0] sm:$0xff]
      %v246 = vld [vmem:[%s202 + $0xf8] sm:$0xff]
      %v247 = vld [vmem:[%s1] sm:$0x1]
      %v249 = vperm.slane %v247, 0
      %v251 = vmul.f32 %v215, %v249
      %v252 = vmul.f32 %v216, %v249
      %v253 = vmul.f32 %v217, %v249
      %v254 = vmul.f32 %v218, %v249
      %v255 = vmul.f32 %v219, %v249
      %v256 = vmul.f32 %v220, %v249
      %v257 = vmul.f32 %v221, %v249
      %v258 = vmul.f32 %v222, %v249
      %v259 = vmul.f32 %v223, %v249
      %v260 = vmul.f32 %v224, %v249
      %v261 = vmul.f32 %v225, %v249
      %v262 = vmul.f32 %v226, %v249
      %v263 = vmul.f32 %v227, %v249
      %v264 = vmul.f32 %v228, %v249
      %v265 = vmul.f32 %v229, %v249
      %v266 = vmul.f32 %v230, %v249
      %v267 = vmul.f32 %v231, %v249
      %v268 = vmul.f32 %v232, %v249
      %v269 = vmul.f32 %v233, %v249
      %v270 = vmul.f32 %v234, %v249
      %v271 = vmul.f32 %v235, %v249
      %v272 = vmul.f32 %v236, %v249
      %v273 = vmul.f32 %v237, %v249
      %v274 = vmul.f32 %v238, %v249
      %v275 = vmul.f32 %v239, %v249
      %v276 = vmul.f32 %v240, %v249
      %v277 = vmul.f32 %v241, %v249
      %v278 = vmul.f32 %v242, %v249
      %v279 = vmul.f32 %v243, %v249
      %v280 = vmul.f32 %v244, %v249
      %v281 = vmul.f32 %v245, %v249
      %v282 = vmul.f32 %v246, %v249
      %v283 = vld [vmem:[%s2] sm:$0x1]
      %v285 = vperm.slane %v283, 0
      %v287 = vadd.f32 %v251, %v285
      %v288 = vadd.f32 %v252, %v285
      %v289 = vadd.f32 %v253, %v285
      %v290 = vadd.f32 %v254, %v285
      %v291 = vadd.f32 %v255, %v285
      %v292 = vadd.f32 %v256, %v285
      %v293 = vadd.f32 %v257, %v285
      %v294 = vadd.f32 %v258, %v285
      %v295 = vadd.f32 %v259, %v285
      %v296 = vadd.f32 %v260, %v285
      %v297 = vadd.f32 %v261, %v285
      %v298 = vadd.f32 %v262, %v285
      %v299 = vadd.f32 %v263, %v285
      %v300 = vadd.f32 %v264, %v285
      %v301 = vadd.f32 %v265, %v285
      %v302 = vadd.f32 %v266, %v285
      %v303 = vadd.f32 %v267, %v285
      %v304 = vadd.f32 %v268, %v285
      %v305 = vadd.f32 %v269, %v285
      %v306 = vadd.f32 %v270, %v285
      %v307 = vadd.f32 %v271, %v285
      %v308 = vadd.f32 %v272, %v285
      %v309 = vadd.f32 %v273, %v285
      %v310 = vadd.f32 %v274, %v285
      %v311 = vadd.f32 %v275, %v285
      %v312 = vadd.f32 %v276, %v285
      %v313 = vadd.f32 %v277, %v285
      %v314 = vadd.f32 %v278, %v285
      %v315 = vadd.f32 %v279, %v285
      %v316 = vadd.f32 %v280, %v285
      %v317 = vadd.f32 %v281, %v285
      %v318 = vadd.f32 %v282, %v285
      %319 = vst [vmem:[%s213] sm:$0xff] %v287
      %320 = vst [vmem:[%s213 + $0x8] sm:$0xff] %v288
      %321 = vst [vmem:[%s213 + $0x10] sm:$0xff] %v289
      %322 = vst [vmem:[%s213 + $0x18] sm:$0xff] %v290
      %323 = vst [vmem:[%s213 + $0x20] sm:$0xff] %v291
      %324 = vst [vmem:[%s213 + $0x28] sm:$0xff] %v292
      %325 = vst [vmem:[%s213 + $0x30] sm:$0xff] %v293
      %326 = vst [vmem:[%s213 + $0x38] sm:$0xff] %v294
      %327 = vst [vmem:[%s213 + $0x40] sm:$0xff] %v295
      %328 = vst [vmem:[%s213 + $0x48] sm:$0xff] %v296
      %329 = vst [vmem:[%s213 + $0x50] sm:$0xff] %v297
      %330 = vst [vmem:[%s213 + $0x58] sm:$0xff] %v298
      %331 = vst [vmem:[%s213 + $0x60] sm:$0xff] %v299
      %332 = vst [vmem:[%s213 + $0x68] sm:$0xff] %v300
      %333 = vst [vmem:[%s213 + $0x70] sm:$0xff] %v301
      %334 = vst [vmem:[%s213 + $0x78] sm:$0xff] %v302
      %335 = vst [vmem:[%s213 + $0x80] sm:$0xff] %v303
      %336 = vst [vmem:[%s213 + $0x88] sm:$0xff] %v304
      %337 = vst [vmem:[%s213 + $0x90] sm:$0xff] %v305
      %338 = vst [vmem:[%s213 + $0x98] sm:$0xff] %v306
      %339 = vst [vmem:[%s213 + $0xa0] sm:$0xff] %v307
      %340 = vst [vmem:[%s213 + $0xa8] sm:$0xff] %v308
      %341 = vst [vmem:[%s213 + $0xb0] sm:$0xff] %v309
      %342 = vst [vmem:[%s213 + $0xb8] sm:$0xff] %v310
      %343 = vst [vmem:[%s213 + $0xc0] sm:$0xff] %v311
      %344 = vst [vmem:[%s213 + $0xc8] sm:$0xff] %v312
      %345 = vst [vmem:[%s213 + $0xd0] sm:$0xff] %v313
      %346 = vst [vmem:[%s213 + $0xd8] sm:$0xff] %v314
      %347 = vst [vmem:[%s213 + $0xe0] sm:$0xff] %v315
      %348 = vst [vmem:[%s213 + $0xe8] sm:$0xff] %v316
      %349 = vst [vmem:[%s213 + $0xf0] sm:$0xff] %v317
      %350 = vst [vmem:[%s213 + $0xf8] sm:$0xff] %v318
      %s351 = smul.u32 16, %s19
      %p352 = scmp.lt.s32.totalorder %s18, 1
      %s353 = scalar_select %p352, %s18, 1
      %p354 = scmp.lt.s32.totalorder %s351, 15
      %s355 = scalar_select %p354, %s351, 15
      %s356 = smul.addr %s355, 2
      %s357 = smul.addr %s353, 32
      %s358 = sadd.s32 %s356, %s357
      %s359 = smul.addr %s358, 8
      %s360 = scalar_lea.vmem %s3, %s359
      // Predicated region
      $region33: #{double_conv_layer.5} parent=31 // pred_check
        %p361 = pneg %p116
      $region34: #{double_conv_layer.5} parent=31 // pred_check_branch
        %363 = sbr.rel (%p361) target = $region36
      $region35: #{double_conv_layer.5} parent=31 // pred_region
        %s364 = smul.u32 16, %s19
      $region36: #{double_conv_layer.5} parent=31 // pred_fallthru
        _
    $region32: #{double_conv_layer.5} parent=5 // pred_fallthru
      _
    %p365 = scmp.le.s32.totalorder 2, %s9
    // Predicated region
    $region37: #{double_conv_layer.5} parent=5 // pred_check
      %p366 = pneg %p365
    $region38: #{double_conv_layer.5} parent=5 // pred_check_branch
      %368 = sbr.rel (%p366) target = $region40
    $region39: #{double_conv_layer.5} parent=5 // pred_region
      %s369 = ssub.s32 %s9, 2
      // Predicated region
      $region41: #{double_conv_layer.5} parent=39 // pred_check
        %p370 = pneg %p122
      $region42: #{double_conv_layer.5} parent=39 // pred_check_branch
        %372 = sbr.rel (%p370) target = $region44
      $region43: #{double_conv_layer.5} parent=39 // pred_region
        %s373 = smul.u32 16, %s21
        %p374 = scmp.lt.s32.totalorder %s20, 1
        %s375 = scalar_select %p374, %s20, 1
        %p376 = scmp.lt.s32.totalorder %s373, 15
        %s377 = scalar_select %p376, %s373, 15
        %s378 = smul.addr %s377, 2
        %s379 = smul.addr %s375, 32
        %s380 = sadd.s32 %s378, %s379
        %s381 = smul.addr %s380, 8
        %s382 = scalar_lea.vmem %s3, %s381
      $region44: #{double_conv_layer.5} parent=39 // pred_fallthru
        _
    $region40: #{double_conv_layer.5} parent=5 // pred_fallthru
      _
  $region6: #{double_conv_layer.5} parent=0 // loop_footer
    %s13 = sadd.s32 1, %s9
  $region7: #{double_conv_layer.5} parent=0 // loop_footer_branch
    %8 = sbr.rel target = $region3
  $region8: #{double_conv_layer.5} parent=0 // loop_exit
    _

// kernel: double_conv_layer.3
$region0: #{double_conv_layer.3}
  #allocation0 [shape = 'u32[]', space=smem, size = 0x4, offset = 0x4, fixed_abs, tag = 'smem constant byte address 0x4 - core index']
  #allocation1 [shape = 'u32[72,128]{1,0:T(1,128)}', space=vmem, size = 0x9000, scoped, tag = 'internal scratch']
  #allocation2 [shape = 'f32[18,24,128]{2,1,0:T(8,128)}', space=vmem, size = 0x36000, scoped, tag = 'scratch operand']
  %s0 = inlined_call_operand.vmem [shape: f32[2,16,16,128], index: 0, kind: input, shape index: {}]
  %s1 = inlined_call_operand.vmem [shape: f32[3,3,128,128], index: 1, kind: input, shape index: {}]
  %s2 = inlined_call_operand.vmem [shape: f32[1,128], index: 2, kind: input, shape index: {}]
  %s3 = inlined_call_operand.vmem [shape: f32[1,128], index: 3, kind: input, shape index: {}]
  %s4 = inlined_call_operand.vmem [shape: f32[1,128], index: 4, kind: input, shape index: {}]
  %s5 = inlined_call_operand.vmem [shape: f32[2,16,16,128], index: 5, kind: output, shape index: {0}]
  %s6 = inlined_call_operand.vmem [shape: f32[2,2,128], index: 6, kind: output, shape index: {1}]
  %7 = xla_tuple %s5, %s6
  %s8 = sld [smem:[#allocation0]]
  $region65: #{double_conv_layer.3} parent=0
    _
  %s10 = ssub.s32 1, %s8
  %s11 = scalar_select 0, %s10, %s8
  loop: start=0, step=1, limit=4
  $region2: #{double_conv_layer.3} parent=0 // loop_pre_header
    _
  $region3: #{double_conv_layer.3} parent=0 // loop_header
    %s13 = sphi 0, %s17
    %p14 = scmp.ge.s32.totalorder %s13, 4
    %s20 = sphi 0, %s32
    %s21 = sphi 0, %s28
    %s22 = sphi 0, %s20
    %s23 = sphi 0, %s21
    %s24 = sphi 0, %s22
    %s25 = sphi 0, %s23
    %s35 = sphi 0, %s37
    %s38 = sphi 0, %s35
    %s39 = sphi 0, %s38
    %s55 = sphi 0, %s39
    %s59 = sphi 0, %s59
    %s61 = sphi 0, %s59
    %s62 = sphi 0, %s61
    %s76 = sphi 0, %s62
    %s80 = sphi 0, %s80
    %s82 = sphi 0, %s80
    %s83 = sphi 0, %s82
    %s97 = sphi 0, %s83
    %s101 = sphi 0, %s101
    %s103 = sphi 0, %s101
    %s104 = sphi 0, %s103
    %s118 = sphi 0, %s104
    %s122 = sphi 0, %s122
    %s124 = sphi 0, %s122
    %s125 = sphi 0, %s124
    %s139 = sphi 0, %s125
    %s147 = sphi 0, %s149
    %s150 = sphi 0, %s147
    %s151 = sphi 0, %s150
    %s167 = sphi 0, %s151
    %s173 = sphi 0, %s175
    %s176 = sphi 0, %s173
    %s177 = sphi 0, %s176
    %s193 = sphi 0, %s177
  $region4: #{double_conv_layer.3} parent=0 // loop_header_branch
    %16 = sbr.rel (%p14) target = $region8
  $region5: #{double_conv_layer.3} parent=0 // loop_body
    %s18 = ssub.s32 %s13, 1
    %s19 = ssub.s32 %s13, 2
    %s26 = sadd.s32 1, %s21
    %p27 = scmp.ge.s32.totalorder %s26, 1
    %s28 = scalar_select %p27, 0, %s26
    %s29 = sadd.s32 1, %s20
    %s30 = scalar_select %p27, %s29, %s20
    %p31 = scmp.ge.s32.totalorder %s30, 2
    %s32 = scalar_select %p31, 0, %s30
    %s33 = ssub.s32 %s20, %s32
    %p34 = scmp.eq.s32.totalorder %s33, 0
    %s36 = sadd.s32 %s35, 1
    %s37 = scalar_select %p34, %s35, %s36
    %p40 = pneg %p34
    %p41 = scmp.eq.s32.totalorder %s13, 1
    %p42 = por %p40, %p41
    %p43 = scmp.ne.s32.totalorder %s35, %s38
    %p44 = scmp.eq.s32.totalorder %s13, 0
    %p45 = por %p43, %p44
    %p46 = scmp.ne.s32.totalorder %s35, %s38
    %p47 = scmp.eq.s32.totalorder %s18, 1
    %p48 = por %p46, %p47
    %p49 = scmp.ne.s32.totalorder %s38, %s39
    %p50 = scmp.eq.s32.totalorder %s18, 0
    %p51 = por %p49, %p50
    %p52 = scmp.ne.s32.totalorder %s38, %s39
    %p53 = scmp.eq.s32.totalorder %s19, 1
    %p54 = por %p52, %p53
    %p56 = scmp.ne.s32.totalorder %s39, %s55
    %p57 = scmp.eq.s32.totalorder %s19, 0
    %p58 = por %p56, %p57
    %s60 = sadd.s32 %s59, 1
    %p63 = scmp.eq.s32.totalorder %s13, 1
    %p64 = scmp.ne.s32.totalorder %s59, %s61
    %p65 = scmp.eq.s32.totalorder %s13, 0
    %p66 = por %p64, %p65
    %p67 = scmp.ne.s32.totalorder %s59, %s61
    %p68 = scmp.eq.s32.totalorder %s18, 1
    %p69 = por %p67, %p68
    %p70 = scmp.ne.s32.totalorder %s61, %s62
    %p71 = scmp.eq.s32.totalorder %s18, 0
    %p72 = por %p70, %p71
    %p73 = scmp.ne.s32.totalorder %s61, %s62
    %p74 = scmp.eq.s32.totalorder %s19, 1
    %p75 = por %p73, %p74
    %p77 = scmp.ne.s32.totalorder %s62, %s76
    %p78 = scmp.eq.s32.totalorder %s19, 0
    %p79 = por %p77, %p78
    %s81 = sadd.s32 %s80, 1
    %p84 = scmp.eq.s32.totalorder %s13, 1
    %p85 = scmp.ne.s32.totalorder %s80, %s82
    %p86 = scmp.eq.s32.totalorder %s13, 0
    %p87 = por %p85, %p86
    %p88 = scmp.ne.s32.totalorder %s80, %s82
    %p89 = scmp.eq.s32.totalorder %s18, 1
    %p90 = por %p88, %p89
    %p91 = scmp.ne.s32.totalorder %s82, %s83
    %p92 = scmp.eq.s32.totalorder %s18, 0
    %p93 = por %p91, %p92
    %p94 = scmp.ne.s32.totalorder %s82, %s83
    %p95 = scmp.eq.s32.totalorder %s19, 1
    %p96 = por %p94, %p95
    %p98 = scmp.ne.s32.totalorder %s83, %s97
    %p99 = scmp.eq.s32.totalorder %s19, 0
    %p100 = por %p98, %p99
    %s102 = sadd.s32 %s101, 1
    %p105 = scmp.eq.s32.totalorder %s13, 1
    %p106 = scmp.ne.s32.totalorder %s101, %s103
    %p107 = scmp.eq.s32.totalorder %s13, 0
    %p108 = por %p106, %p107
    %p109 = scmp.ne.s32.totalorder %s101, %s103
    %p110 = scmp.eq.s32.totalorder %s18, 1
    %p111 = por %p109, %p110
    %p112 = scmp.ne.s32.totalorder %s103, %s104
    %p113 = scmp.eq.s32.totalorder %s18, 0
    %p114 = por %p112, %p113
    %p115 = scmp.ne.s32.totalorder %s103, %s104
    %p116 = scmp.eq.s32.totalorder %s19, 1
    %p117 = por %p115, %p116
    %p119 = scmp.ne.s32.totalorder %s104, %s118
    %p120 = scmp.eq.s32.totalorder %s19, 0
    %p121 = por %p119, %p120
    %s123 = sadd.s32 %s122, 1
    %p126 = scmp.eq.s32.totalorder %s13, 1
    %p127 = scmp.ne.s32.totalorder %s122, %s124
    %p128 = scmp.eq.s32.totalorder %s13, 0
    %p129 = por %p127, %p128
    %p130 = scmp.ne.s32.totalorder %s122, %s124
    %p131 = scmp.eq.s32.totalorder %s18, 1
    %p132 = por %p130, %p131
    %p133 = scmp.ne.s32.totalorder %s124, %s125
    %p134 = scmp.eq.s32.totalorder %s18, 0
    %p135 = por %p133, %p134
    %p136 = scmp.ne.s32.totalorder %s124, %s125
    %p137 = scmp.eq.s32.totalorder %s19, 1
    %p138 = por %p136, %p137
    %p140 = scmp.ne.s32.totalorder %s125, %s139
    %p141 = scmp.eq.s32.totalorder %s19, 0
    %p142 = por %p140, %p141
    %s143 = ssub.s32 %s20, %s32
    %s144 = ssub.s32 %s21, %s28
    %s145 = sor.u32 %s143, %s144
    %p146 = scmp.eq.s32.totalorder %s145, 0
    %s148 = sadd.s32 %s147, 1
    %s149 = scalar_select %p146, %s147, %s148
    %p152 = pneg %p146
    %p153 = scmp.eq.s32.totalorder %s13, 1
    %p154 = por %p152, %p153
    %p155 = scmp.ne.s32.totalorder %s147, %s150
    %p156 = scmp.eq.s32.totalorder %s13, 0
    %p157 = por %p155, %p156
    %p158 = scmp.ne.s32.totalorder %s147, %s150
    %p159 = scmp.eq.s32.totalorder %s18, 1
    %p160 = por %p158, %p159
    %p161 = scmp.ne.s32.totalorder %s150, %s151
    %p162 = scmp.eq.s32.totalorder %s18, 0
    %p163 = por %p161, %p162
    %p164 = scmp.ne.s32.totalorder %s150, %s151
    %p165 = scmp.eq.s32.totalorder %s19, 1
    %p166 = por %p164, %p165
    %p168 = scmp.ne.s32.totalorder %s151, %s167
    %p169 = scmp.eq.s32.totalorder %s19, 0
    %p170 = por %p168, %p169
    %s171 = ssub.s32 %s20, %s32
    %p172 = scmp.eq.s32.totalorder %s171, 0
    %s174 = sadd.s32 %s173, 1
    %s175 = scalar_select %p172, %s173, %s174
    %p178 = pneg %p172
    %p179 = scmp.eq.s32.totalorder %s13, 1
    %p180 = por %p178, %p179
    %p181 = scmp.ne.s32.totalorder %s173, %s176
    %p182 = scmp.eq.s32.totalorder %s13, 0
    %p183 = por %p181, %p182
    %p184 = scmp.ne.s32.totalorder %s173, %s176
    %p185 = scmp.eq.s32.totalorder %s18, 1
    %p186 = por %p184, %p185
    %p187 = scmp.ne.s32.totalorder %s176, %s177
    %p188 = scmp.eq.s32.totalorder %s18, 0
    %p189 = por %p187, %p188
    %p190 = scmp.ne.s32.totalorder %s176, %s177
    %p191 = scmp.eq.s32.totalorder %s19, 1
    %p192 = por %p190, %p191
    %p194 = scmp.ne.s32.totalorder %s177, %s193
    %p195 = scmp.eq.s32.totalorder %s19, 0
    %p196 = por %p194, %p195
    %p197 = scmp.le.s32.totalorder 1, %s13
    %p198 = scmp.lt.s32.totalorder %s13, 3
    %p199 = pnand %p197, %p198
    %p200 = pneg %p199
    // Predicated region
    $region9: #{double_conv_layer.3} parent=5 // pred_check
      _
    $region10: #{double_conv_layer.3} parent=5 // pred_check_branch
      %202 = sbr.rel (%p199) target = $region12
    $region11: #{double_conv_layer.3} parent=5 // pred_region
      %s203 = ssub.s32 %s13, 1
      // Predicated region
      $region13: #{double_conv_layer.3} parent=11 // pred_check
        %p204 = pneg %p72
      $region14: #{double_conv_layer.3} parent=11 // pred_check_branch
        %206 = sbr.rel (%p204) target = $region16
      $region15: #{double_conv_layer.3} parent=11 // pred_region
        _
      $region16: #{double_conv_layer.3} parent=11 // pred_fallthru
        _
      // Predicated region
      $region17: #{double_conv_layer.3} parent=11 // pred_check
        %p207 = pneg %p93
      $region18: #{double_conv_layer.3} parent=11 // pred_check_branch
        %209 = sbr.rel (%p207) target = $region20
      $region19: #{double_conv_layer.3} parent=11 // pred_region
        _
      $region20: #{double_conv_layer.3} parent=11 // pred_fallthru
        _
      // Predicated region
      $region21: #{double_conv_layer.3} parent=11 // pred_check
        %p210 = pneg %p114
      $region22: #{double_conv_layer.3} parent=11 // pred_check_branch
        %212 = sbr.rel (%p210) target = $region24
      $region23: #{double_conv_layer.3} parent=11 // pred_region
        _
      $region24: #{double_conv_layer.3} parent=11 // pred_fallthru
        _
      // Predicated region
      $region25: #{double_conv_layer.3} parent=11 // pred_check
        %p213 = pneg %p135
      $region26: #{double_conv_layer.3} parent=11 // pred_check_branch
        %215 = sbr.rel (%p213) target = $region28
      $region27: #{double_conv_layer.3} parent=11 // pred_region
        _
      $region28: #{double_conv_layer.3} parent=11 // pred_fallthru
        _
    $region12: #{double_conv_layer.3} parent=5 // pred_fallthru
      _
    %p216 = scmp.lt.s32.totalorder %s13, 2
    // Predicated region
    $region29: #{double_conv_layer.3} parent=5 // pred_check
      %p217 = pneg %p216
    $region30: #{double_conv_layer.3} parent=5 // pred_check_branch
      %219 = sbr.rel (%p217) target = $region32
    $region31: #{double_conv_layer.3} parent=5 // pred_region
      // Predicated region
      $region33: #{double_conv_layer.3} parent=31 // pred_check
        %p220 = pneg %p45
      $region34: #{double_conv_layer.3} parent=31 // pred_check_branch
        %222 = sbr.rel (%p220) target = $region36
      $region35: #{double_conv_layer.3} parent=31 // pred_region
        %p223 = scmp.lt.s32.totalorder %s20, 1
        %s224 = scalar_select %p223, %s20, 1
        %s225 = smul.addr %s224, 32
        %s226 = smul.addr %s225, 8
        %s227 = scalar_lea.vmem %s0, %s226
      $region36: #{double_conv_layer.3} parent=31 // pred_fallthru
        _
    $region32: #{double_conv_layer.3} parent=5 // pred_fallthru
      _
    %p228 = scmp.le.s32.totalorder 1, %s13
    %p229 = scmp.lt.s32.totalorder %s13, 3
    %p230 = pnand %p228, %p229
    %p231 = pneg %p230
    // Predicated region
    $region37: #{double_conv_layer.3} parent=5 // pred_check
      _
    $region38: #{double_conv_layer.3} parent=5 // pred_check_branch
      %233 = sbr.rel (%p230) target = $region40
    $region39: #{double_conv_layer.3} parent=5 // pred_region
      %s234 = ssub.s32 %s13, 1
      %p235 = scmp.lt.s32.totalorder %s22, 1
      %s236 = scalar_select %p235, %s22, 1
      %s237 = smul.addr %s236, 32
      %s238 = smul.addr %s237, 8
      %s239 = scalar_lea.vmem %s0, %s238
      %p240 = pneg %p51
      %p241 = pneg %p48
      %p242 = pneg %p72
      %p243 = pneg %p69
      %p244 = pneg %p93
      %p245 = pneg %p90
      %p246 = pneg %p114
      %p247 = pneg %p111
      %p248 = pneg %p135
      %p249 = pneg %p132
      %p250 = pneg %p163
      %p251 = pneg %p160
      %s252 = smul.u32 16, %s23
      %p253 = scmp.lt.s32.totalorder %s22, 1
      %s254 = scalar_select %p253, %s22, 1
      %p255 = scmp.lt.s32.totalorder %s252, 15
      %s256 = scalar_select %p255, %s252, 15
      %s257 = smul.addr %s256, 2
      %s258 = smul.addr %s254, 32
      %s259 = sadd.s32 %s257, %s258
      %s260 = smul.addr %s259, 8
      %s261 = scalar_lea.vmem %s5, %s260
      %p262 = pneg %p189
      %p263 = pneg %p186
      %p264 = scmp.lt.s32.totalorder %s22, 1
      %s265 = scalar_select %p264, %s22, 1
      %s266 = smul.addr %s265, 2
      %s267 = scalar_lea.vmem %s6, %s266
      %p268 = scmp.lt.s32.totalorder %s22, 1
      %s269 = scalar_select %p268, %s22, 1
      %s270 = smul.addr %s269, 32
      %s271 = smul.addr %s270, 8
      %s272 = scalar_lea.vmem %s0, %s271
      %s273 = smul.u32 16, %s23
      %p274 = scmp.lt.s32.totalorder %s22, 1
      %s275 = scalar_select %p274, %s22, 1
      %p276 = scmp.lt.s32.totalorder %s273, 15
      %s277 = scalar_select %p276, %s273, 15
      %s278 = smul.addr %s277, 2
      %s279 = smul.addr %s275, 32
      %s280 = sadd.s32 %s278, %s279
      %s281 = smul.addr %s280, 8
      %s282 = scalar_lea.vmem %s5, %s281
      %s283 = smul.u32 16, %s23
      %p284 = scmp.lt.s32.totalorder %s22, 1
      %s285 = scalar_select %p284, %s22, 1
      %s286 = smul.addr %s285, 2
      %s287 = scalar_lea.vmem %s6, %s286
      %p288 = scmp.eq.s32.totalorder %s23, 0
      // Predicated region
      $region41: #{double_conv_layer.3} parent=39 // pred_check
        %p289 = pneg %p288
      $region42: #{double_conv_layer.3} parent=39 // pred_check_branch
        %291 = sbr.rel (%p289) target = $region44
      $region43: #{double_conv_layer.3} parent=39 // pred_region
        %292 = vst [vmem:[#allocation2] sm:$0xff] 0.0
        %293 = vst [vmem:[#allocation2 + $0x8] sm:$0xff] 0.0
        %294 = vst [vmem:[#allocation2 + $0x10] sm:$0xff] 0.0
        %295 = vst [vmem:[#allocation2 + $0x18] sm:$0xff] 0.0
        %296 = vst [vmem:[#allocation2 + $0x20] sm:$0xff] 0.0
        %297 = vst [vmem:[#allocation2 + $0x28] sm:$0xff] 0.0
        %298 = vst [vmem:[#allocation2 + $0x30] sm:$0xff] 0.0
        %299 = vst [vmem:[#allocation2 + $0x38] sm:$0xff] 0.0
        %300 = vst [vmem:[#allocation2 + $0x40] sm:$0xff] 0.0
        %301 = vst [vmem:[#allocation2 + $0x48] sm:$0xff] 0.0
        %302 = vst [vmem:[#allocation2 + $0x50] sm:$0xff] 0.0
        %303 = vst [vmem:[#allocation2 + $0x58] sm:$0xff] 0.0
        %304 = vst [vmem:[#allocation2 + $0x60] sm:$0xff] 0.0
        %305 = vst [vmem:[#allocation2 + $0x68] sm:$0xff] 0.0
        %306 = vst [vmem:[#allocation2 + $0x70] sm:$0xff] 0.0
        %307 = vst [vmem:[#allocation2 + $0x78] sm:$0xff] 0.0
        %308 = vst [vmem:[#allocation2 + $0x80] sm:$0xff] 0.0
        %309 = vst [vmem:[#allocation2 + $0x88] sm:$0xff] 0.0
        %310 = vst [vmem:[#allocation2 + $0x90] sm:$0xff] 0.0
        %311 = vst [vmem:[#allocation2 + $0x98] sm:$0xff] 0.0
        %312 = vst [vmem:[#allocation2 + $0xa0] sm:$0xff] 0.0
        %313 = vst [vmem:[#allocation2 + $0xa8] sm:$0xff] 0.0
        %314 = vst [vmem:[#allocation2 + $0xb0] sm:$0xff] 0.0
        %315 = vst [vmem:[#allocation2 + $0xb8] sm:$0xff] 0.0
        %316 = vst [vmem:[#allocation2 + $0xc0] sm:$0xff] 0.0
        %317 = vst [vmem:[#allocation2 + $0xc8] sm:$0xff] 0.0
        %318 = vst [vmem:[#allocation2 + $0xd0] sm:$0xff] 0.0
        %319 = vst [vmem:[#allocation2 + $0xd8] sm:$0xff] 0.0
        %320 = vst [vmem:[#allocation2 + $0xe0] sm:$0xff] 0.0
        %321 = vst [vmem:[#allocation2 + $0xe8] sm:$0xff] 0.0
        %322 = vst [vmem:[#allocation2 + $0xf0] sm:$0xff] 0.0
        %323 = vst [vmem:[#allocation2 + $0xf8] sm:$0xff] 0.0
        %324 = vst [vmem:[#allocation2 + $0x100] sm:$0xff] 0.0
        %325 = vst [vmem:[#allocation2 + $0x108] sm:$0xff] 0.0
        %326 = vst [vmem:[#allocation2 + $0x110] sm:$0xff] 0.0
        %327 = vst [vmem:[#allocation2 + $0x118] sm:$0xff] 0.0
        %328 = vst [vmem:[#allocation2 + $0x120] sm:$0xff] 0.0
        %329 = vst [vmem:[#allocation2 + $0x128] sm:$0xff] 0.0
        %330 = vst [vmem:[#allocation2 + $0x130] sm:$0xff] 0.0
        %331 = vst [vmem:[#allocation2 + $0x138] sm:$0xff] 0.0
        %332 = vst [vmem:[#allocation2 + $0x140] sm:$0xff] 0.0
        %333 = vst [vmem:[#allocation2 + $0x148] sm:$0xff] 0.0
        %334 = vst [vmem:[#allocation2 + $0x150] sm:$0xff] 0.0
        %335 = vst [vmem:[#allocation2 + $0x158] sm:$0xff] 0.0
        %336 = vst [vmem:[#allocation2 + $0x160] sm:$0xff] 0.0
        %337 = vst [vmem:[#allocation2 + $0x168] sm:$0xff] 0.0
        %338 = vst [vmem:[#allocation2 + $0x170] sm:$0xff] 0.0
        %339 = vst [vmem:[#allocation2 + $0x178] sm:$0xff] 0.0
        %340 = vst [vmem:[#allocation2 + $0x180] sm:$0xff] 0.0
        %341 = vst [vmem:[#allocation2 + $0x188] sm:$0xff] 0.0
        %342 = vst [vmem:[#allocation2 + $0x190] sm:$0xff] 0.0
        %343 = vst [vmem:[#allocation2 + $0x198] sm:$0xff] 0.0
        %344 = vst [vmem:[#allocation2 + $0x1a0] sm:$0xff] 0.0
        %345 = vst [vmem:[#allocation2 + $0x1a8] sm:$0xff] 0.0
        %v346 = vld [vmem:[%s272] sm:$0xff]
        %v347 = vld [vmem:[%s272 + $0x8] sm:$0xff]
        %v348 = vld [vmem:[%s272 + $0x10] sm:$0xff]
        %v349 = vld [vmem:[%s272 + $0x18] sm:$0xff]
        %v350 = vld [vmem:[%s272 + $0x20] sm:$0xff]
        %v351 = vld [vmem:[%s272 + $0x28] sm:$0xff]
        %v352 = vld [vmem:[%s272 + $0x30] sm:$0xff]
        %v353 = vld [vmem:[%s272 + $0x38] sm:$0xff]
        %v354 = vld [vmem:[%s272 + $0x40] sm:$0xff]
        %v355 = vld [vmem:[%s272 + $0x48] sm:$0xff]
        %v356 = vld [vmem:[%s272 + $0x50] sm:$0xff]
        %v357 = vld [vmem:[%s272 + $0x58] sm:$0xff]
        %v358 = vld [vmem:[%s272 + $0x60] sm:$0xff]
        %v359 = vld [vmem:[%s272 + $0x68] sm:$0xff]
        %v360 = vld [vmem:[%s272 + $0x70] sm:$0xff]
        %v361 = vld [vmem:[%s272 + $0x78] sm:$0xff]
        %v362 = vld [vmem:[%s272 + $0x80] sm:$0xff]
        %v363 = vld [vmem:[%s272 + $0x88] sm:$0xff]
        %v364 = vld [vmem:[%s272 + $0x90] sm:$0xff]
        %v365 = vld [vmem:[%s272 + $0x98] sm:$0xff]
        %v366 = vld [vmem:[%s272 + $0xa0] sm:$0xff]
        %v367 = vld [vmem:[%s272 + $0xa8] sm:$0xff]
        %v368 = vld [vmem:[%s272 + $0xb0] sm:$0xff]
        %v369 = vld [vmem:[%s272 + $0xb8] sm:$0xff]
        %v370 = vld [vmem:[%s272 + $0xc0] sm:$0xff]
        %v371 = vld [vmem:[%s272 + $0xc8] sm:$0xff]
        %v372 = vld [vmem:[%s272 + $0xd0] sm:$0xff]
        %v373 = vld [vmem:[%s272 + $0xd8] sm:$0xff]
        %v374 = vld [vmem:[%s272 + $0xe0] sm:$0xff]
        %v375 = vld [vmem:[%s272 + $0xe8] sm:$0xff]
        %v376 = vld [vmem:[%s272 + $0xf0] sm:$0xff]
        %v377 = vld [vmem:[%s272 + $0xf8] sm:$0xff]
        %v378 = vld [vmem:[%s3] sm:$0x1]
        %v380 = vperm.slane %v378, 0
        %v382 = vmul.f32 %v346, %v380
        %v383 = vmul.f32 %v347, %v380
        %v384 = vmul.f32 %v348, %v380
        %v385 = vmul.f32 %v349, %v380
        %v386 = vmul.f32 %v350, %v380
        %v387 = vmul.f32 %v351, %v380
        %v388 = vmul.f32 %v352, %v380
        %v389 = vmul.f32 %v353, %v380
        %v390 = vmul.f32 %v354, %v380
        %v391 = vmul.f32 %v355, %v380
        %v392 = vmul.f32 %v356, %v380
        %v393 = vmul.f32 %v357, %v380
        %v394 = vmul.f32 %v358, %v380
        %v395 = vmul.f32 %v359, %v380
        %v396 = vmul.f32 %v360, %v380
        %v397 = vmul.f32 %v361, %v380
        %v398 = vmul.f32 %v362, %v380
        %v399 = vmul.f32 %v363, %v380
        %v400 = vmul.f32 %v364, %v380
        %v401 = vmul.f32 %v365, %v380
        %v402 = vmul.f32 %v366, %v380
        %v403 = vmul.f32 %v367, %v380
        %v404 = vmul.f32 %v368, %v380
        %v405 = vmul.f32 %v369, %v380
        %v406 = vmul.f32 %v370, %v380
        %v407 = vmul.f32 %v371, %v380
        %v408 = vmul.f32 %v372, %v380
        %v409 = vmul.f32 %v373, %v380
        %v410 = vmul.f32 %v374, %v380
        %v411 = vmul.f32 %v375, %v380
        %v412 = vmul.f32 %v376, %v380
        %v413 = vmul.f32 %v377, %v380
        %v414 = vld [vmem:[%s4] sm:$0x1]
        %v416 = vperm.slane %v414, 0
        %v418 = vadd.f32 %v382, %v416
        %v419 = vadd.f32 %v383, %v416
        %v420 = vadd.f32 %v384, %v416
        %v421 = vadd.f32 %v385, %v416
        %v422 = vadd.f32 %v386, %v416
        %v423 = vadd.f32 %v387, %v416
        %v424 = vadd.f32 %v388, %v416
        %v425 = vadd.f32 %v389, %v416
        %v426 = vadd.f32 %v390, %v416
        %v427 = vadd.f32 %v391, %v416
        %v428 = vadd.f32 %v392, %v416
        %v429 = vadd.f32 %v393, %v416
        %v430 = vadd.f32 %v394, %v416
        %v431 = vadd.f32 %v395, %v416
        %v432 = vadd.f32 %v396, %v416
        %v433 = vadd.f32 %v397, %v416
        %v434 = vadd.f32 %v398, %v416
        %v435 = vadd.f32 %v399, %v416
        %v436 = vadd.f32 %v400, %v416
        %v437 = vadd.f32 %v401, %v416
        %v438 = vadd.f32 %v402, %v416
        %v439 = vadd.f32 %v403, %v416
        %v440 = vadd.f32 %v404, %v416
        %v441 = vadd.f32 %v405, %v416
        %v442 = vadd.f32 %v406, %v416
        %v443 = vadd.f32 %v407, %v416
        %v444 = vadd.f32 %v408, %v416
        %v445 = vadd.f32 %v409, %v416
        %v446 = vadd.f32 %v410, %v416
        %v447 = vadd.f32 %v411, %v416
        %v448 = vadd.f32 %v412, %v416
        %v449 = vadd.f32 %v413, %v416
        %s450 = scalar_lea.vmem [#allocation2], 24
        %451 = vst [vmem:[%s450] sm:$0xff] %v418
        %452 = vst [vmem:[%s450 + $0x8] sm:$0xff] %v419
        %453 = vst [vmem:[%s450 + $0x18] sm:$0xff] %v420
        %454 = vst [vmem:[%s450 + $0x20] sm:$0xff] %v421
        %455 = vst [vmem:[%s450 + $0x30] sm:$0xff] %v422
        %456 = vst [vmem:[%s450 + $0x38] sm:$0xff] %v423
        %457 = vst [vmem:[%s450 + $0x48] sm:$0xff] %v424
        %458 = vst [vmem:[%s450 + $0x50] sm:$0xff] %v425
        %459 = vst [vmem:[%s450 + $0x60] sm:$0xff] %v426
        %460 = vst [vmem:[%s450 + $0x68] sm:$0xff] %v427
        %461 = vst [vmem:[%s450 + $0x78] sm:$0xff] %v428
        %462 = vst [vmem:[%s450 + $0x80] sm:$0xff] %v429
        %463 = vst [vmem:[%s450 + $0x90] sm:$0xff] %v430
        %464 = vst [vmem:[%s450 + $0x98] sm:$0xff] %v431
        %465 = vst [vmem:[%s450 + $0xa8] sm:$0xff] %v432
        %466 = vst [vmem:[%s450 + $0xb0] sm:$0xff] %v433
        %467 = vst [vmem:[%s450 + $0xc0] sm:$0xff] %v434
        %468 = vst [vmem:[%s450 + $0xc8] sm:$0xff] %v435
        %469 = vst [vmem:[%s450 + $0xd8] sm:$0xff] %v436
        %470 = vst [vmem:[%s450 + $0xe0] sm:$0xff] %v437
        %471 = vst [vmem:[%s450 + $0xf0] sm:$0xff] %v438
        %472 = vst [vmem:[%s450 + $0xf8] sm:$0xff] %v439
        %473 = vst [vmem:[%s450 + $0x108] sm:$0xff] %v440
        %474 = vst [vmem:[%s450 + $0x110] sm:$0xff] %v441
        %475 = vst [vmem:[%s450 + $0x120] sm:$0xff] %v442
        %476 = vst [vmem:[%s450 + $0x128] sm:$0xff] %v443
        %477 = vst [vmem:[%s450 + $0x138] sm:$0xff] %v444
        %478 = vst [vmem:[%s450 + $0x140] sm:$0xff] %v445
        %479 = vst [vmem:[%s450 + $0x150] sm:$0xff] %v446
        %480 = vst [vmem:[%s450 + $0x158] sm:$0xff] %v447
        %481 = vst [vmem:[%s450 + $0x168] sm:$0xff] %v448
        %482 = vst [vmem:[%s450 + $0x170] sm:$0xff] %v449
        %483 = vst [vmem:[%s287] sm:$0x3] 0.0
      $region44: #{double_conv_layer.3} parent=39 // pred_fallthru
        _
      %s484 = smul.u32 %s23, 16
      %s485 = smul.u32 %s484, 24
      %s486 = scalar_lea.vmem [#allocation2], %s485
      %v487 = vld [vmem:[%s486] sm:$0xff]
      %v488 = vld [vmem:[%s486 + $0x8] sm:$0xff]
      %v489 = vld [vmem:[%s486 + $0x10] sm:$0xff]
      %v490 = vld [vmem:[%s486 + $0x18] sm:$0xff]
      %v491 = vld [vmem:[%s486 + $0x20] sm:$0xff]
      %v492 = vld [vmem:[%s486 + $0x28] sm:$0xff]
      %v493 = vld [vmem:[%s486 + $0x30] sm:$0xff]
      %v494 = vld [vmem:[%s486 + $0x38] sm:$0xff]
      %v495 = vld [vmem:[%s486 + $0x40] sm:$0xff]
      %v496 = vld [vmem:[%s486 + $0x48] sm:$0xff]
      %v497 = vld [vmem:[%s486 + $0x50] sm:$0xff]
      %v498 = vld [vmem:[%s486 + $0x58] sm:$0xff]
      %v499 = vld [vmem:[%s486 + $0x60] sm:$0xff]
      %v500 = vld [vmem:[%s486 + $0x68] sm:$0xff]
      %v501 = vld [vmem:[%s486 + $0x70] sm:$0xff]
      %v502 = vld [vmem:[%s486 + $0x78] sm:$0xff]
      %v503 = vld [vmem:[%s486 + $0x80] sm:$0xff]
      %v504 = vld [vmem:[%s486 + $0x88] sm:$0xff]
      %v505 = vld [vmem:[%s486 + $0x90] sm:$0xff]
      %v506 = vld [vmem:[%s486 + $0x98] sm:$0xff]
      %v507 = vld [vmem:[%s486 + $0xa0] sm:$0xff]
      %v508 = vld [vmem:[%s486 + $0xa8] sm:$0xff]
      %v509 = vld [vmem:[%s486 + $0xb0] sm:$0xff]
      %v510 = vld [vmem:[%s486 + $0xb8] sm:$0xff]
      %v511 = vld [vmem:[%s486 + $0xc0] sm:$0xff]
      %v512 = vld [vmem:[%s486 + $0xc8] sm:$0xff]
      %v513 = vld [vmem:[%s486 + $0xd0] sm:$0xff]
      %v514 = vld [vmem:[%s486 + $0xd8] sm:$0xff]
      %v515 = vld [vmem:[%s486 + $0xe0] sm:$0xff]
      %v516 = vld [vmem:[%s486 + $0xe8] sm:$0xff]
      %v517 = vld [vmem:[%s486 + $0xf0] sm:$0xff]
      %v518 = vld [vmem:[%s486 + $0xf8] sm:$0xff]
      %v519 = vld [vmem:[%s486 + $0x100] sm:$0xff]
      %v520 = vld [vmem:[%s486 + $0x108] sm:$0xff]
      %v521 = vld [vmem:[%s486 + $0x110] sm:$0xff]
      %v522 = vld [vmem:[%s486 + $0x118] sm:$0xff]
      %v523 = vld [vmem:[%s486 + $0x120] sm:$0xff]
      %v524 = vld [vmem:[%s486 + $0x128] sm:$0xff]
      %v525 = vld [vmem:[%s486 + $0x130] sm:$0xff]
      %v526 = vld [vmem:[%s486 + $0x138] sm:$0xff]
      %v527 = vld [vmem:[%s486 + $0x140] sm:$0xff]
      %v528 = vld [vmem:[%s486 + $0x148] sm:$0xff]
      %v529 = vld [vmem:[%s486 + $0x150] sm:$0xff]
      %v530 = vld [vmem:[%s486 + $0x158] sm:$0xff]
      %v531 = vld [vmem:[%s486 + $0x160] sm:$0xff]
      %v532 = vld [vmem:[%s486 + $0x168] sm:$0xff]
      %v533 = vld [vmem:[%s486 + $0x170] sm:$0xff]
      %v534 = vld [vmem:[%s486 + $0x178] sm:$0xff]
      %v535 = vld [vmem:[%s1] sm:$0xff]
      %v536 = vld [vmem:[%s1 + $0x8] sm:$0xff]
      %v537 = vld [vmem:[%s1 + $0x10] sm:$0xff]
      %v538 = vld [vmem:[%s1 + $0x18] sm:$0xff]
      %v539 = vld [vmem:[%s1 + $0x20] sm:$0xff]
      %v540 = vld [vmem:[%s1 + $0x28] sm:$0xff]
      %v541 = vld [vmem:[%s1 + $0x30] sm:$0xff]
      %v542 = vld [vmem:[%s1 + $0x38] sm:$0xff]
      %v543 = vld [vmem:[%s1 + $0x40] sm:$0xff]
      %v544 = vld [vmem:[%s1 + $0x48] sm:$0xff]
      %v545 = vld [vmem:[%s1 + $0x50] sm:$0xff]
      %v546 = vld [vmem:[%s1 + $0x58] sm:$0xff]
      %v547 = vld [vmem:[%s1 + $0x60] sm:$0xff]
      %v548 = vld [vmem:[%s1 + $0x68] sm:$0xff]
      %v549 = vld [vmem:[%s1 + $0x70] sm:$0xff]
      %v550 = vld [vmem:[%s1 + $0x78] sm:$0xff]
      %551 = vmatpush.msra.mxu0 %v550
      %552 = vmatpush.msra.mxu0 %v549
      %553 = vmatpush.msra.mxu0 %v548
      %554 = vmatpush.msra.mxu0 %v547
      %555 = vmatpush.msra.mxu0 %v546
      %556 = vmatpush.msra.mxu0 %v545
      %557 = vmatpush.msra.mxu0 %v544
      %558 = vmatpush.msra.mxu0 %v543
      %559 = vmatpush.msra.mxu0 %v542
      %560 = vmatpush.msra.mxu0 %v541
      %561 = vmatpush.msra.mxu0 %v540
      %562 = vmatpush.msra.mxu0 %v539
      %563 = vmatpush.msra.mxu0 %v538
      %564 = vmatpush.msra.mxu0 %v537
      %565 = vmatpush.msra.mxu0 %v536
      %566 = vmatpush.msra.mxu0 %v535
      %567 = vmatmul.f32.gmra.mxu0 %v487
      %v568 = vpop.f32.mrf.mxu0
      %v569 = vadd.f32 0.0, %v568
      %570 = vmatmul.f32.gmra.mxu0 %v488
      %v571 = vpop.f32.mrf.mxu0
      %v572 = vadd.f32 0.0, %v571
      %573 = vmatmul.f32.gmra.mxu0 %v489
      %v574 = vpop.f32.mrf.mxu0
      %v575 = vadd.f32 0.0, %v574
      %576 = vmatmul.f32.gmra.mxu0 %v490
      %v577 = vpop.f32.mrf.mxu0
      %v578 = vadd.f32 0.0, %v577
      %579 = vmatmul.f32.gmra.mxu0 %v491
      %v580 = vpop.f32.mrf.mxu0
      %v581 = vadd.f32 0.0, %v580
      %582 = vmatmul.f32.gmra.mxu0 %v492
      %v583 = vpop.f32.mrf.mxu0
      %v584 = vadd.f32 0.0, %v583
      %585 = vmatmul.f32.gmra.mxu0 %v493
      %v586 = vpop.f32.mrf.mxu0
      %v587 = vadd.f32 0.0, %v586
      %588 = vmatmul.f32.gmra.mxu0 %v494
      %v589 = vpop.f32.mrf.mxu0
      %v590 = vadd.f32 0.0, %v589
      %591 = vmatmul.f32.gmra.mxu0 %v495
      %v592 = vpop.f32.mrf.mxu0
      %v593 = vadd.f32 0.0, %v592
      %594 = vmatmul.f32.gmra.mxu0 %v496
      %v595 = vpop.f32.mrf.mxu0
      %v596 = vadd.f32 0.0, %v595
      %597 = vmatmul.f32.gmra.mxu0 %v497
      %v598 = vpop.f32.mrf.mxu0
      %v599 = vadd.f32 0.0, %v598
      %600 = vmatmul.f32.gmra.mxu0 %v498
      %v601 = vpop.f32.mrf.mxu0
      %v602 = vadd.f32 0.0, %v601
      %603 = vmatmul.f32.gmra.mxu0 %v499
      %v604 = vpop.f32.mrf.mxu0
      %v605 = vadd.f32 0.0, %v604
      %606 = vmatmul.f32.gmra.mxu0 %v500
      %v607 = vpop.f32.mrf.mxu0
      %v608 = vadd.f32 0.0, %v607
      %609 = vmatmul.f32.gmra.mxu0 %v501
      %v610 = vpop.f32.mrf.mxu0
      %v611 = vadd.f32 0.0, %v610
      %612 = vmatmul.f32.gmra.mxu0 %v502
      %v613 = vpop.f32.mrf.mxu0
      %v614 = vadd.f32 0.0, %v613
      %615 = vmatmul.f32.gmra.mxu0 %v503
      %v616 = vpop.f32.mrf.mxu0
      %v617 = vadd.f32 0.0, %v616
      %618 = vmatmul.f32.gmra.mxu0 %v504
      %v619 = vpop.f32.mrf.mxu0
      %v620 = vadd.f32 0.0, %v619
      %621 = vmatmul.f32.gmra.mxu0 %v505
      %v622 = vpop.f32.mrf.mxu0
      %v623 = vadd.f32 0.0, %v622
      %624 = vmatmul.f32.gmra.mxu0 %v506
      %v625 = vpop.f32.mrf.mxu0
      %v626 = vadd.f32 0.0, %v625
      %627 = vmatmul.f32.gmra.mxu0 %v507
      %v628 = vpop.f32.mrf.mxu0
      %v629 = vadd.f32 0.0, %v628
      %630 = vmatmul.f32.gmra.mxu0 %v508
      %v631 = vpop.f32.mrf.mxu0
      %v632 = vadd.f32 0.0, %v631
      %633 = vmatmul.f32.gmra.mxu0 %v509
      %v634 = vpop.f32.mrf.mxu0
      %v635 = vadd.f32 0.0, %v634
      %636 = vmatmul.f32.gmra.mxu0 %v510
      %v637 = vpop.f32.mrf.mxu0
      %v638 = vadd.f32 0.0, %v637
      %639 = vmatmul.f32.gmra.mxu0 %v511
      %v640 = vpop.f32.mrf.mxu0
      %v641 = vadd.f32 0.0, %v640
      %642 = vmatmul.f32.gmra.mxu0 %v512
      %v643 = vpop.f32.mrf.mxu0
      %v644 = vadd.f32 0.0, %v643
      %645 = vmatmul.f32.gmra.mxu0 %v513
      %v646 = vpop.f32.mrf.mxu0
      %v647 = vadd.f32 0.0, %v646
      %648 = vmatmul.f32.gmra.mxu0 %v514
      %v649 = vpop.f32.mrf.mxu0
      %v650 = vadd.f32 0.0, %v649
      %651 = vmatmul.f32.gmra.mxu0 %v515
      %v652 = vpop.f32.mrf.mxu0
      %v653 = vadd.f32 0.0, %v652
      %654 = vmatmul.f32.gmra.mxu0 %v516
      %v655 = vpop.f32.mrf.mxu0
      %v656 = vadd.f32 0.0, %v655
      %657 = vmatmul.f32.gmra.mxu0 %v517
      %v658 = vpop.f32.mrf.mxu0
      %v659 = vadd.f32 0.0, %v658
      %660 = vmatmul.f32.gmra.mxu0 %v518
      %v661 = vpop.f32.mrf.mxu0
      %v662 = vadd.f32 0.0, %v661
      %663 = vmatmul.f32.gmra.mxu0 %v519
      %v664 = vpop.f32.mrf.mxu0
      %v665 = vadd.f32 0.0, %v664
      %666 = vmatmul.f32.gmra.mxu0 %v520
      %v667 = vpop.f32.mrf.mxu0
      %v668 = vadd.f32 0.0, %v667
      %669 = vmatmul.f32.gmra.mxu0 %v521
      %v670 = vpop.f32.mrf.mxu0
      %v671 = vadd.f32 0.0, %v670
      %672 = vmatmul.f32.gmra.mxu0 %v522
      %v673 = vpop.f32.mrf.mxu0
      %v674 = vadd.f32 0.0, %v673
      %675 = vmatmul.f32.gmra.mxu0 %v523
      %v676 = vpop.f32.mrf.mxu0
      %v677 = vadd.f32 0.0, %v676
      %678 = vmatmul.f32.gmra.mxu0 %v524
      %v679 = vpop.f32.mrf.mxu0
      %v680 = vadd.f32 0.0, %v679
      %681 = vmatmul.f32.gmra.mxu0 %v525
      %v682 = vpop.f32.mrf.mxu0
      %v683 = vadd.f32 0.0, %v682
      %684 = vmatmul.f32.gmra.mxu0 %v526
      %v685 = vpop.f32.mrf.mxu0
      %v686 = vadd.f32 0.0, %v685
      %687 = vmatmul.f32.gmra.mxu0 %v527
      %v688 = vpop.f32.mrf.mxu0
      %v689 = vadd.f32 0.0, %v688
      %690 = vmatmul.f32.gmra.mxu0 %v528
      %v691 = vpop.f32.mrf.mxu0
      %v692 = vadd.f32 0.0, %v691
      %693 = vmatmul.f32.gmra.mxu0 %v529
      %v694 = vpop.f32.mrf.mxu0
      %v695 = vadd.f32 0.0, %v694
      %696 = vmatmul.f32.gmra.mxu0 %v530
      %v697 = vpop.f32.mrf.mxu0
      %v698 = vadd.f32 0.0, %v697
      %699 = vmatmul.f32.gmra.mxu0 %v531
      %v700 = vpop.f32.mrf.mxu0
      %v701 = vadd.f32 0.0, %v700
      %702 = vmatmul.f32.gmra.mxu0 %v532
      %v703 = vpop.f32.mrf.mxu0
      %v704 = vadd.f32 0.0, %v703
      %705 = vmatmul.f32.gmra.mxu0 %v533
      %v706 = vpop.f32.mrf.mxu0
      %v707 = vadd.f32 0.0, %v706
      %708 = vmatmul.f32.gmra.mxu0 %v534
      %v709 = vpop.f32.mrf.mxu0
      %v710 = vadd.f32 0.0, %v709
      %711 = vdwg.mxu0
      %v712 = vrot.slane %v569, 7
      %v713 = vrot.slane %v572, 7
      %v714 = vrot.slane %v575, 7
      %v715 = vrot.slane %v578, 7
      %v716 = vrot.slane %v581, 7
      %v717 = vrot.slane %v584, 7
      %v718 = vrot.slane %v587, 7
      %v719 = vrot.slane %v590, 7
      %v720 = vrot.slane %v593, 7
      %v721 = vrot.slane %v596, 7
      %v722 = vrot.slane %v599, 7
      %v723 = vrot.slane %v602, 7
      %v724 = vrot.slane %v605, 7
      %v725 = vrot.slane %v608, 7
      %v726 = vrot.slane %v611, 7
      %v727 = vrot.slane %v614, 7
      %v728 = vrot.slane %v617, 7
      %v729 = vrot.slane %v620, 7
      %v730 = vrot.slane %v623, 7
      %v731 = vrot.slane %v626, 7
      %v732 = vrot.slane %v629, 7
      %v733 = vrot.slane %v632, 7
      %v734 = vrot.slane %v635, 7
      %v735 = vrot.slane %v638, 7
      %v736 = vrot.slane %v641, 7
      %v737 = vrot.slane %v644, 7
      %v738 = vrot.slane %v647, 7
      %v739 = vrot.slane %v650, 7
      %v740 = vrot.slane %v653, 7
      %v741 = vrot.slane %v656, 7
      %v742 = vrot.slane %v659, 7
      %v743 = vrot.slane %v662, 7
      %v744 = vrot.slane %v665, 7
      %v745 = vrot.slane %v668, 7
      %v746 = vrot.slane %v671, 7
      %v747 = vrot.slane %v674, 7
      %v748 = vrot.slane %v677, 7
      %v749 = vrot.slane %v680, 7
      %v750 = vrot.slane %v683, 7
      %v751 = vrot.slane %v686, 7
      %v752 = vrot.slane %v689, 7
      %v753 = vrot.slane %v692, 7
      %v754 = vrot.slane %v695, 7
      %v755 = vrot.slane %v698, 7
      %v756 = vrot.slane %v701, 7
      %v757 = vrot.slane %v704, 7
      %v758 = vrot.slane %v707, 7
      %v759 = vrot.slane %v710, 7
      %v760 = vlaneseq
      %v761 = vshrl.u32 %v760, 7
      %vm762 = vcmp.lt.s32.totalorder %v761, 1
      %v763 = vsel %vm762, %v757, %v758
      %v764 = vsel %vm762, %v756, %v757
      %v765 = vsel %vm762, %v754, %v755
      %v766 = vsel %vm762, %v753, %v754
      %v767 = vsel %vm762, %v751, %v752
      %v768 = vsel %vm762, %v750, %v751
      %v769 = vsel %vm762, %v748, %v749
      %v770 = vsel %vm762, %v747, %v748
      %v771 = vsel %vm762, %v745, %v746
      %v772 = vsel %vm762, %v744, %v745
      %v773 = vsel %vm762, %v742, %v743
      %v774 = vsel %vm762, %v741, %v742
      %v775 = vsel %vm762, %v739, %v740
      %v776 = vsel %vm762, %v738, %v739
      %v777 = vsel %vm762, %v736, %v737
      %v778 = vsel %vm762, %v735, %v736
      %v779 = vsel %vm762, %v733, %v734
      %v780 = vsel %vm762, %v732, %v733
      %v781 = vsel %vm762, %v730, %v731
      %v782 = vsel %vm762, %v729, %v730
      %v783 = vsel %vm762, %v727, %v728
      %v784 = vsel %vm762, %v726, %v727
      %v785 = vsel %vm762, %v724, %v725
      %v786 = vsel %vm762, %v723, %v724
      %v787 = vsel %vm762, %v721, %v722
      %v788 = vsel %vm762, %v720, %v721
      %v789 = vsel %vm762, %v718, %v719
      %v790 = vsel %vm762, %v717, %v718
      %v791 = vsel %vm762, %v715, %v716
      %v792 = vsel %vm762, %v714, %v715
      %v793 = vsel %vm762, %v712, %v713
      %v794 = vsel %vm762, %v759, %v712
      %v795 = vadd.f32 %v794, 0.0
      %v796 = vadd.f32 %v793, 0.0
      %v797 = vadd.f32 %v792, 0.0
      %v798 = vadd.f32 %v791, 0.0
      %v799 = vadd.f32 %v790, 0.0
      %v800 = vadd.f32 %v789, 0.0
      %v801 = vadd.f32 %v788, 0.0
      %v802 = vadd.f32 %v787, 0.0
      %v803 = vadd.f32 %v786, 0.0
      %v804 = vadd.f32 %v785, 0.0
      %v805 = vadd.f32 %v784, 0.0
      %v806 = vadd.f32 %v783, 0.0
      %v807 = vadd.f32 %v782, 0.0
      %v808 = vadd.f32 %v781, 0.0
      %v809 = vadd.f32 %v780, 0.0
      %v810 = vadd.f32 %v779, 0.0
      %v811 = vadd.f32 %v778, 0.0
      %v812 = vadd.f32 %v777, 0.0
      %v813 = vadd.f32 %v776, 0.0
      %v814 = vadd.f32 %v775, 0.0
      %v815 = vadd.f32 %v774, 0.0
      %v816 = vadd.f32 %v773, 0.0
      %v817 = vadd.f32 %v772, 0.0
      %v818 = vadd.f32 %v771, 0.0
      %v819 = vadd.f32 %v770, 0.0
      %v820 = vadd.f32 %v769, 0.0
      %v821 = vadd.f32 %v768, 0.0
      %v822 = vadd.f32 %v767, 0.0
      %v823 = vadd.f32 %v766, 0.0
      %v824 = vadd.f32 %v765, 0.0
      %v825 = vadd.f32 %v764, 0.0
      %v826 = vadd.f32 %v763, 0.0
      %s827 = scalar_lea.vmem %s1, 128
      %v828 = vld [vmem:[%s827] sm:$0xff]
      %v829 = vld [vmem:[%s827 + $0x8] sm:$0xff]
      %v830 = vld [vmem:[%s827 + $0x10] sm:$0xff]
      %v831 = vld [vmem:[%s827 + $0x18] sm:$0xff]
      %v832 = vld [vmem:[%s827 + $0x20] sm:$0xff]
      %v833 = vld [vmem:[%s827 + $0x28] sm:$0xff]
      %v834 = vld [vmem:[%s827 + $0x30] sm:$0xff]
      %v835 = vld [vmem:[%s827 + $0x38] sm:$0xff]
      %v836 = vld [vmem:[%s827 + $0x40] sm:$0xff]
      %v837 = vld [vmem:[%s827 + $0x48] sm:$0xff]
      %v838 = vld [vmem:[%s827 + $0x50] sm:$0xff]
      %v839 = vld [vmem:[%s827 + $0x58] sm:$0xff]
      %v840 = vld [vmem:[%s827 + $0x60] sm:$0xff]
      %v841 = vld [vmem:[%s827 + $0x68] sm:$0xff]
      %v842 = vld [vmem:[%s827 + $0x70] sm:$0xff]
      %v843 = vld [vmem:[%s827 + $0x78] sm:$0xff]
      %844 = vmatpush.msra.mxu0 %v843
      %845 = vmatpush.msra.mxu0 %v842
      %846 = vmatpush.msra.mxu0 %v841
      %847 = vmatpush.msra.mxu0 %v840
      %848 = vmatpush.msra.mxu0 %v839
      %849 = vmatpush.msra.mxu0 %v838
      %850 = vmatpush.msra.mxu0 %v837
      %851 = vmatpush.msra.mxu0 %v836
      %852 = vmatpush.msra.mxu0 %v835
      %853 = vmatpush.msra.mxu0 %v834
      %854 = vmatpush.msra.mxu0 %v833
      %855 = vmatpush.msra.mxu0 %v832
      %856 = vmatpush.msra.mxu0 %v831
      %857 = vmatpush.msra.mxu0 %v830
      %858 = vmatpush.msra.mxu0 %v829
      %859 = vmatpush.msra.mxu0 %v828
      %860 = vmatmul.f32.gmra.mxu0 %v487
      %v861 = vpop.f32.mrf.mxu0
      %v862 = vadd.f32 0.0, %v861
      %863 = vmatmul.f32.gmra.mxu0 %v488
      %v864 = vpop.f32.mrf.mxu0
      %v865 = vadd.f32 0.0, %v864
      %866 = vmatmul.f32.gmra.mxu0 %v489
      %v867 = vpop.f32.mrf.mxu0
      %868 = vmatmul.f32.gmra.mxu0 %v490
      %v869 = vpop.f32.mrf.mxu0
      %v870 = vadd.f32 0.0, %v869
      %871 = vmatmul.f32.gmra.mxu0 %v491
      %v872 = vpop.f32.mrf.mxu0
      %v873 = vadd.f32 0.0, %v872
      %874 = vmatmul.f32.gmra.mxu0 %v492
      %v875 = vpop.f32.mrf.mxu0
      %876 = vmatmul.f32.gmra.mxu0 %v493
      %v877 = vpop.f32.mrf.mxu0
      %v878 = vadd.f32 0.0, %v877
      %879 = vmatmul.f32.gmra.mxu0 %v494
      %v880 = vpop.f32.mrf.mxu0
      %v881 = vadd.f32 0.0, %v880
      %882 = vmatmul.f32.gmra.mxu0 %v495
      %v883 = vpop.f32.mrf.mxu0
      %884 = vmatmul.f32.gmra.mxu0 %v496
      %v885 = vpop.f32.mrf.mxu0
      %v886 = vadd.f32 0.0, %v885
      %887 = vmatmul.f32.gmra.mxu0 %v497
      %v888 = vpop.f32.mrf.mxu0
      %v889 = vadd.f32 0.0, %v888
      %890 = vmatmul.f32.gmra.mxu0 %v498
      %v891 = vpop.f32.mrf.mxu0
      %892 = vmatmul.f32.gmra.mxu0 %v499
      %v893 = vpop.f32.mrf.mxu0
      %v894 = vadd.f32 0.0, %v893
      %895 = vmatmul.f32.gmra.mxu0 %v500
      %v896 = vpop.f32.mrf.mxu0
      %v897 = vadd.f32 0.0, %v896
      %898 = vmatmul.f32.gmra.mxu0 %v501
      %v899 = vpop.f32.mrf.mxu0
      %900 = vmatmul.f32.gmra.mxu0 %v502
      %v901 = vpop.f32.mrf.mxu0
      %v902 = vadd.f32 0.0, %v901
      %903 = vmatmul.f32.gmra.mxu0 %v503
      %v904 = vpop.f32.mrf.mxu0
      %v905 = vadd.f32 0.0, %v904
      %906 = vmatmul.f32.gmra.mxu0 %v504
      %v907 = vpop.f32.mrf.mxu0
      %908 = vmatmul.f32.gmra.mxu0 %v505
      %v909 = vpop.f32.mrf.mxu0
      %v910 = vadd.f32 0.0, %v909
      %911 = vmatmul.f32.gmra.mxu0 %v506
      %v912 = vpop.f32.mrf.mxu0
      %v913 = vadd.f32 0.0, %v912
      %914 = vmatmul.f32.gmra.mxu0 %v507
      %v915 = vpop.f32.mrf.mxu0
      %916 = vmatmul.f32.gmra.mxu0 %v508
      %v917 = vpop.f32.mrf.mxu0
      %v918 = vadd.f32 0.0, %v917
      %919 = vmatmul.f32.gmra.mxu0 %v509
      %v920 = vpop.f32.mrf.mxu0
      %v921 = vadd.f32 0.0, %v920
      %922 = vmatmul.f32.gmra.mxu0 %v510
      %v923 = vpop.f32.mrf.mxu0
      %924 = vmatmul.f32.gmra.mxu0 %v511
      %v925 = vpop.f32.mrf.mxu0
      %v926 = vadd.f32 0.0, %v925
      %927 = vmatmul.f32.gmra.mxu0 %v512
      %v928 = vpop.f32.mrf.mxu0
      %v929 = vadd.f32 0.0, %v928
      %930 = vmatmul.f32.gmra.mxu0 %v513
      %v931 = vpop.f32.mrf.mxu0
      %932 = vmatmul.f32.gmra.mxu0 %v514
      %v933 = vpop.f32.mrf.mxu0
      %v934 = vadd.f32 0.0, %v933
      %935 = vmatmul.f32.gmra.mxu0 %v515
      %v936 = vpop.f32.mrf.mxu0
      %v937 = vadd.f32 0.0, %v936
      %938 = vmatmul.f32.gmra.mxu0 %v516
      %v939 = vpop.f32.mrf.mxu0
      %940 = vmatmul.f32.gmra.mxu0 %v517
      %v941 = vpop.f32.mrf.mxu0
      %v942 = vadd.f32 0.0, %v941
      %943 = vmatmul.f32.gmra.mxu0 %v518
      %v944 = vpop.f32.mrf.mxu0
      %v945 = vadd.f32 0.0, %v944
      %946 = vmatmul.f32.gmra.mxu0 %v519
      %v947 = vpop.f32.mrf.mxu0
      %948 = vmatmul.f32.gmra.mxu0 %v520
      %v949 = vpop.f32.mrf.mxu0
      %v950 = vadd.f32 0.0, %v949
      %951 = vmatmul.f32.gmra.mxu0 %v521
      %v952 = vpop.f32.mrf.mxu0
      %v953 = vadd.f32 0.0, %v952
      %954 = vmatmul.f32.gmra.mxu0 %v522
      %v955 = vpop.f32.mrf.mxu0
      %956 = vmatmul.f32.gmra.mxu0 %v523
      %v957 = vpop.f32.mrf.mxu0
      %v958 = vadd.f32 0.0, %v957
      %959 = vmatmul.f32.gmra.mxu0 %v524
      %v960 = vpop.f32.mrf.mxu0
      %v961 = vadd.f32 0.0, %v960
      %962 = vmatmul.f32.gmra.mxu0 %v525
      %v963 = vpop.f32.mrf.mxu0
      %964 = vmatmul.f32.gmra.mxu0 %v526
      %v965 = vpop.f32.mrf.mxu0
      %v966 = vadd.f32 0.0, %v965
      %967 = vmatmul.f32.gmra.mxu0 %v527
      %v968 = vpop.f32.mrf.mxu0
      %v969 = vadd.f32 0.0, %v968
      %970 = vmatmul.f32.gmra.mxu0 %v528
      %v971 = vpop.f32.mrf.mxu0
      %972 = vmatmul.f32.gmra.mxu0 %v529
      %v973 = vpop.f32.mrf.mxu0
      %v974 = vadd.f32 0.0, %v973
      %975 = vmatmul.f32.gmra.mxu0 %v530
      %v976 = vpop.f32.mrf.mxu0
      %v977 = vadd.f32 0.0, %v976
      %978 = vmatmul.f32.gmra.mxu0 %v531
      %v979 = vpop.f32.mrf.mxu0
      %980 = vmatmul.f32.gmra.mxu0 %v532
      %v981 = vpop.f32.mrf.mxu0
      %v982 = vadd.f32 0.0, %v981
      %983 = vmatmul.f32.gmra.mxu0 %v533
      %v984 = vpop.f32.mrf.mxu0
      %v985 = vadd.f32 0.0, %v984
      %986 = vmatmul.f32.gmra.mxu0 %v534
      %v987 = vpop.f32.mrf.mxu0
      %988 = vdwg.mxu0
      %v989 = vadd.f32 %v795, %v862
      %v990 = vadd.f32 %v796, %v865
      %v991 = vadd.f32 %v797, %v870
      %v992 = vadd.f32 %v798, %v873
      %v993 = vadd.f32 %v799, %v878
      %v994 = vadd.f32 %v800, %v881
      %v995 = vadd.f32 %v801, %v886
      %v996 = vadd.f32 %v802, %v889
      %v997 = vadd.f32 %v803, %v894
      %v998 = vadd.f32 %v804, %v897
      %v999 = vadd.f32 %v805, %v902
      %v1000 = vadd.f32 %v806, %v905
      %v1001 = vadd.f32 %v807, %v910
      %v1002 = vadd.f32 %v808, %v913
      %v1003 = vadd.f32 %v809, %v918
      %v1004 = vadd.f32 %v810, %v921
      %v1005 = vadd.f32 %v811, %v926
      %v1006 = vadd.f32 %v812, %v929
      %v1007 = vadd.f32 %v813, %v934
      %v1008 = vadd.f32 %v814, %v937
      %v1009 = vadd.f32 %v815, %v942
      %v1010 = vadd.f32 %v816, %v945
      %v1011 = vadd.f32 %v817, %v950
      %v1012 = vadd.f32 %v818, %v953
      %v1013 = vadd.f32 %v819, %v958
      %v1014 = vadd.f32 %v820, %v961
      %v1015 = vadd.f32 %v821, %v966
      %v1016 = vadd.f32 %v822, %v969
      %v1017 = vadd.f32 %v823, %v974
      %v1018 = vadd.f32 %v824, %v977
      %v1019 = vadd.f32 %v825, %v982
      %v1020 = vadd.f32 %v826, %v985
      %s1021 = scalar_lea.vmem %s1, 256
      %v1022 = vld [vmem:[%s1021] sm:$0xff]
      %v1023 = vld [vmem:[%s1021 + $0x8] sm:$0xff]
      %v1024 = vld [vmem:[%s1021 + $0x10] sm:$0xff]
      %v1025 = vld [vmem:[%s1021 + $0x18] sm:$0xff]
      %v1026 = vld [vmem:[%s1021 + $0x20] sm:$0xff]
      %v1027 = vld [vmem:[%s1021 + $0x28] sm:$0xff]
      %v1028 = vld [vmem:[%s1021 + $0x30] sm:$0xff]
      %v1029 = vld [vmem:[%s1021 + $0x38] sm:$0xff]
      %v1030 = vld [vmem:[%s1021 + $0x40] sm:$0xff]
      %v1031 = vld [vmem:[%s1021 + $0x48] sm:$0xff]
      %v1032 = vld [vmem:[%s1021 + $0x50] sm:$0xff]
      %v1033 = vld [vmem:[%s1021 + $0x58] sm:$0xff]
      %v1034 = vld [vmem:[%s1021 + $0x60] sm:$0xff]
      %v1035 = vld [vmem:[%s1021 + $0x68] sm:$0xff]
      %v1036 = vld [vmem:[%s1021 + $0x70] sm:$0xff]
      %v1037 = vld [vmem:[%s1021 + $0x78] sm:$0xff]
      %1038 = vmatpush.msra.mxu0 %v1037
      %1039 = vmatpush.msra.mxu0 %v1036
      %1040 = vmatpush.msra.mxu0 %v1035
      %1041 = vmatpush.msra.mxu0 %v1034
      %1042 = vmatpush.msra.mxu0 %v1033
      %1043 = vmatpush.msra.mxu0 %v1032
      %1044 = vmatpush.msra.mxu0 %v1031
      %1045 = vmatpush.msra.mxu0 %v1030
      %1046 = vmatpush.msra.mxu0 %v1029
      %1047 = vmatpush.msra.mxu0 %v1028
      %1048 = vmatpush.msra.mxu0 %v1027
      %1049 = vmatpush.msra.mxu0 %v1026
      %1050 = vmatpush.msra.mxu0 %v1025
      %1051 = vmatpush.msra.mxu0 %v1024
      %1052 = vmatpush.msra.mxu0 %v1023
      %1053 = vmatpush.msra.mxu0 %v1022
      %1054 = vmatmul.f32.gmra.mxu0 %v487
      %v1055 = vpop.f32.mrf.mxu0
      %v1056 = vadd.f32 0.0, %v1055
      %1057 = vmatmul.f32.gmra.mxu0 %v488
      %v1058 = vpop.f32.mrf.mxu0
      %v1059 = vadd.f32 0.0, %v1058
      %1060 = vmatmul.f32.gmra.mxu0 %v489
      %v1061 = vpop.f32.mrf.mxu0
      %v1062 = vadd.f32 0.0, %v1061
      %1063 = vmatmul.f32.gmra.mxu0 %v490
      %v1064 = vpop.f32.mrf.mxu0
      %v1065 = vadd.f32 0.0, %v1064
      %1066 = vmatmul.f32.gmra.mxu0 %v491
      %v1067 = vpop.f32.mrf.mxu0
      %v1068 = vadd.f32 0.0, %v1067
      %1069 = vmatmul.f32.gmra.mxu0 %v492
      %v1070 = vpop.f32.mrf.mxu0
      %v1071 = vadd.f32 0.0, %v1070
      %1072 = vmatmul.f32.gmra.mxu0 %v493
      %v1073 = vpop.f32.mrf.mxu0
      %v1074 = vadd.f32 0.0, %v1073
      %1075 = vmatmul.f32.gmra.mxu0 %v494
      %v1076 = vpop.f32.mrf.mxu0
      %v1077 = vadd.f32 0.0, %v1076
      %1078 = vmatmul.f32.gmra.mxu0 %v495
      %v1079 = vpop.f32.mrf.mxu0
      %v1080 = vadd.f32 0.0, %v1079
      %1081 = vmatmul.f32.gmra.mxu0 %v496
      %v1082 = vpop.f32.mrf.mxu0
      %v1083 = vadd.f32 0.0, %v1082
      %1084 = vmatmul.f32.gmra.mxu0 %v497
      %v1085 = vpop.f32.mrf.mxu0
      %v1086 = vadd.f32 0.0, %v1085
      %1087 = vmatmul.f32.gmra.mxu0 %v498
      %v1088 = vpop.f32.mrf.mxu0
      %v1089 = vadd.f32 0.0, %v1088
      %1090 = vmatmul.f32.gmra.mxu0 %v499
      %v1091 = vpop.f32.mrf.mxu0
      %v1092 = vadd.f32 0.0, %v1091
      %1093 = vmatmul.f32.gmra.mxu0 %v500
      %v1094 = vpop.f32.mrf.mxu0
      %v1095 = vadd.f32 0.0, %v1094
      %1096 = vmatmul.f32.gmra.mxu0 %v501
      %v1097 = vpop.f32.mrf.mxu0
      %v1098 = vadd.f32 0.0, %v1097
      %1099 = vmatmul.f32.gmra.mxu0 %v502
      %v1100 = vpop.f32.mrf.mxu0
      %v1101 = vadd.f32 0.0, %v1100
      %1102 = vmatmul.f32.gmra.mxu0 %v503
      %v1103 = vpop.f32.mrf.mxu0
      %v1104 = vadd.f32 0.0, %v1103
      %1105 = vmatmul.f32.gmra.mxu0 %v504
      %v1106 = vpop.f32.mrf.mxu0
      %v1107 = vadd.f32 0.0, %v1106
      %1108 = vmatmul.f32.gmra.mxu0 %v505
      %v1109 = vpop.f32.mrf.mxu0
      %v1110 = vadd.f32 0.0, %v1109
      %1111 = vmatmul.f32.gmra.mxu0 %v506
      %v1112 = vpop.f32.mrf.mxu0
      %v1113 = vadd.f32 0.0, %v1112
      %1114 = vmatmul.f32.gmra.mxu0 %v507
      %v1115 = vpop.f32.mrf.mxu0
      %v1116 = vadd.f32 0.0, %v1115
      %1117 = vmatmul.f32.gmra.mxu0 %v508
      %v1118 = vpop.f32.mrf.mxu0
      %v1119 = vadd.f32 0.0, %v1118
      %1120 = vmatmul.f32.gmra.mxu0 %v509
      %v1121 = vpop.f32.mrf.mxu0
      %v1122 = vadd.f32 0.0, %v1121
      %1123 = vmatmul.f32.gmra.mxu0 %v510
      %v1124 = vpop.f32.mrf.mxu0
      %v1125 = vadd.f32 0.0, %v1124
      %1126 = vmatmul.f32.gmra.mxu0 %v511
      %v1127 = vpop.f32.mrf.mxu0
      %v1128 = vadd.f32 0.0, %v1127
      %1129 = vmatmul.f32.gmra.mxu0 %v512
      %v1130 = vpop.f32.mrf.mxu0
      %v1131 = vadd.f32 0.0, %v1130
      %1132 = vmatmul.f32.gmra.mxu0 %v513
      %v1133 = vpop.f32.mrf.mxu0
      %v1134 = vadd.f32 0.0, %v1133
      %1135 = vmatmul.f32.gmra.mxu0 %v514
      %v1136 = vpop.f32.mrf.mxu0
      %v1137 = vadd.f32 0.0, %v1136
      %1138 = vmatmul.f32.gmra.mxu0 %v515
      %v1139 = vpop.f32.mrf.mxu0
      %v1140 = vadd.f32 0.0, %v1139
      %1141 = vmatmul.f32.gmra.mxu0 %v516
      %v1142 = vpop.f32.mrf.mxu0
      %v1143 = vadd.f32 0.0, %v1142
      %1144 = vmatmul.f32.gmra.mxu0 %v517
      %v1145 = vpop.f32.mrf.mxu0
      %v1146 = vadd.f32 0.0, %v1145
      %1147 = vmatmul.f32.gmra.mxu0 %v518
      %v1148 = vpop.f32.mrf.mxu0
      %v1149 = vadd.f32 0.0, %v1148
      %1150 = vmatmul.f32.gmra.mxu0 %v519
      %v1151 = vpop.f32.mrf.mxu0
      %v1152 = vadd.f32 0.0, %v1151
      %1153 = vmatmul.f32.gmra.mxu0 %v520
      %v1154 = vpop.f32.mrf.mxu0
      %v1155 = vadd.f32 0.0, %v1154
      %1156 = vmatmul.f32.gmra.mxu0 %v521
      %v1157 = vpop.f32.mrf.mxu0
      %v1158 = vadd.f32 0.0, %v1157
      %1159 = vmatmul.f32.gmra.mxu0 %v522
      %v1160 = vpop.f32.mrf.mxu0
      %v1161 = vadd.f32 0.0, %v1160
      %1162 = vmatmul.f32.gmra.mxu0 %v523
      %v1163 = vpop.f32.mrf.mxu0
      %v1164 = vadd.f32 0.0, %v1163
      %1165 = vmatmul.f32.gmra.mxu0 %v524
      %v1166 = vpop.f32.mrf.mxu0
      %v1167 = vadd.f32 0.0, %v1166
      %1168 = vmatmul.f32.gmra.mxu0 %v525
      %v1169 = vpop.f32.mrf.mxu0
      %v1170 = vadd.f32 0.0, %v1169
      %1171 = vmatmul.f32.gmra.mxu0 %v526
      %v1172 = vpop.f32.mrf.mxu0
      %v1173 = vadd.f32 0.0, %v1172
      %1174 = vmatmul.f32.gmra.mxu0 %v527
      %v1175 = vpop.f32.mrf.mxu0
      %v1176 = vadd.f32 0.0, %v1175
      %1177 = vmatmul.f32.gmra.mxu0 %v528
      %v1178 = vpop.f32.mrf.mxu0
      %v1179 = vadd.f32 0.0, %v1178
      %1180 = vmatmul.f32.gmra.mxu0 %v529
      %v1181 = vpop.f32.mrf.mxu0
      %v1182 = vadd.f32 0.0, %v1181
      %1183 = vmatmul.f32.gmra.mxu0 %v530
      %v1184 = vpop.f32.mrf.mxu0
      %v1185 = vadd.f32 0.0, %v1184
      %1186 = vmatmul.f32.gmra.mxu0 %v531
      %v1187 = vpop.f32.mrf.mxu0
      %v1188 = vadd.f32 0.0, %v1187
      %1189 = vmatmul.f32.gmra.mxu0 %v532
      %v1190 = vpop.f32.mrf.mxu0
      %v1191 = vadd.f32 0.0, %v1190
      %1192 = vmatmul.f32.gmra.mxu0 %v533
      %v1193 = vpop.f32.mrf.mxu0
      %v1194 = vadd.f32 0.0, %v1193
      %1195 = vmatmul.f32.gmra.mxu0 %v534
      %v1196 = vpop.f32.mrf.mxu0
      %v1197 = vadd.f32 0.0, %v1196
      %1198 = vdwg.mxu0
      %v1199 = vrot.slane %v1056, 1
      %v1200 = vrot.slane %v1059, 1
      %v1201 = vrot.slane %v1062, 1
      %v1202 = vrot.slane %v1065, 1
      %v1203 = vrot.slane %v1068, 1
      %v1204 = vrot.slane %v1071, 1
      %v1205 = vrot.slane %v1074, 1
      %v1206 = vrot.slane %v1077, 1
      %v1207 = vrot.slane %v1080, 1
      %v1208 = vrot.slane %v1083, 1
      %v1209 = vrot.slane %v1086, 1
      %v1210 = vrot.slane %v1089, 1
      %v1211 = vrot.slane %v1092, 1
      %v1212 = vrot.slane %v1095, 1
      %v1213 = vrot.slane %v1098, 1
      %v1214 = vrot.slane %v1101, 1
      %v1215 = vrot.slane %v1104, 1
      %v1216 = vrot.slane %v1107, 1
      %v1217 = vrot.slane %v1110, 1
      %v1218 = vrot.slane %v1113, 1
      %v1219 = vrot.slane %v1116, 1
      %v1220 = vrot.slane %v1119, 1
      %v1221 = vrot.slane %v1122, 1
      %v1222 = vrot.slane %v1125, 1
      %v1223 = vrot.slane %v1128, 1
      %v1224 = vrot.slane %v1131, 1
      %v1225 = vrot.slane %v1134, 1
      %v1226 = vrot.slane %v1137, 1
      %v1227 = vrot.slane %v1140, 1
      %v1228 = vrot.slane %v1143, 1
      %v1229 = vrot.slane %v1146, 1
      %v1230 = vrot.slane %v1149, 1
      %v1231 = vrot.slane %v1152, 1
      %v1232 = vrot.slane %v1155, 1
      %v1233 = vrot.slane %v1158, 1
      %v1234 = vrot.slane %v1161, 1
      %v1235 = vrot.slane %v1164, 1
      %v1236 = vrot.slane %v1167, 1
      %v1237 = vrot.slane %v1170, 1
      %v1238 = vrot.slane %v1173, 1
      %v1239 = vrot.slane %v1176, 1
      %v1240 = vrot.slane %v1179, 1
      %v1241 = vrot.slane %v1182, 1
      %v1242 = vrot.slane %v1185, 1
      %v1243 = vrot.slane %v1188, 1
      %v1244 = vrot.slane %v1191, 1
      %v1245 = vrot.slane %v1194, 1
      %v1246 = vrot.slane %v1197, 1
      %vm1247 = vcmp.lt.s32.totalorder %v761, 7
      %v1248 = vsel %vm1247, %v1245, %v1246
      %v1249 = vsel %vm1247, %v1244, %v1245
      %v1250 = vsel %vm1247, %v1242, %v1243
      %v1251 = vsel %vm1247, %v1241, %v1242
      %v1252 = vsel %vm1247, %v1239, %v1240
      %v1253 = vsel %vm1247, %v1238, %v1239
      %v1254 = vsel %vm1247, %v1236, %v1237
      %v1255 = vsel %vm1247, %v1235, %v1236
      %v1256 = vsel %vm1247, %v1233, %v1234
      %v1257 = vsel %vm1247, %v1232, %v1233
      %v1258 = vsel %vm1247, %v1230, %v1231
      %v1259 = vsel %vm1247, %v1229, %v1230
      %v1260 = vsel %vm1247, %v1227, %v1228
      %v1261 = vsel %vm1247, %v1226, %v1227
      %v1262 = vsel %vm1247, %v1224, %v1225
      %v1263 = vsel %vm1247, %v1223, %v1224
      %v1264 = vsel %vm1247, %v1221, %v1222
      %v1265 = vsel %vm1247, %v1220, %v1221
      %v1266 = vsel %vm1247, %v1218, %v1219
      %v1267 = vsel %vm1247, %v1217, %v1218
      %v1268 = vsel %vm1247, %v1215, %v1216
      %v1269 = vsel %vm1247, %v1214, %v1215
      %v1270 = vsel %vm1247, %v1212, %v1213
      %v1271 = vsel %vm1247, %v1211, %v1212
      %v1272 = vsel %vm1247, %v1209, %v1210
      %v1273 = vsel %vm1247, %v1208, %v1209
      %v1274 = vsel %vm1247, %v1206, %v1207
      %v1275 = vsel %vm1247, %v1205, %v1206
      %v1276 = vsel %vm1247, %v1203, %v1204
      %v1277 = vsel %vm1247, %v1202, %v1203
      %v1278 = vsel %vm1247, %v1200, %v1201
      %v1279 = vsel %vm1247, %v1199, %v1200
      %v1280 = vadd.f32 %v989, %v1279
      %v1281 = vadd.f32 %v990, %v1278
      %v1282 = vadd.f32 %v991, %v1277
      %v1283 = vadd.f32 %v992, %v1276
      %v1284 = vadd.f32 %v993, %v1275
      %v1285 = vadd.f32 %v994, %v1274
      %v1286 = vadd.f32 %v995, %v1273
      %v1287 = vadd.f32 %v996, %v1272
      %v1288 = vadd.f32 %v997, %v1271
      %v1289 = vadd.f32 %v998, %v1270
      %v1290 = vadd.f32 %v999, %v1269
      %v1291 = vadd.f32 %v1000, %v1268
      %v1292 = vadd.f32 %v1001, %v1267
      %v1293 = vadd.f32 %v1002, %v1266
      %v1294 = vadd.f32 %v1003, %v1265
      %v1295 = vadd.f32 %v1004, %v1264
      %v1296 = vadd.f32 %v1005, %v1263
      %v1297 = vadd.f32 %v1006, %v1262
      %v1298 = vadd.f32 %v1007, %v1261
      %v1299 = vadd.f32 %v1008, %v1260
      %v1300 = vadd.f32 %v1009, %v1259
      %v1301 = vadd.f32 %v1010, %v1258
      %v1302 = vadd.f32 %v1011, %v1257
      %v1303 = vadd.f32 %v1012, %v1256
      %v1304 = vadd.f32 %v1013, %v1255
      %v1305 = vadd.f32 %v1014, %v1254
      %v1306 = vadd.f32 %v1015, %v1253
      %v1307 = vadd.f32 %v1016, %v1252
      %v1308 = vadd.f32 %v1017, %v1251
      %v1309 = vadd.f32 %v1018, %v1250
      %v1310 = vadd.f32 %v1019, %v1249
      %v1311 = vadd.f32 %v1020, %v1248
      %s1312 = sadd.s32 %s484, 1
      %s1313 = smul.u32 %s1312, 24
      %s1314 = scalar_lea.vmem [#allocation2], %s1313
      %v1315 = vld [vmem:[%s1314] sm:$0xff]
      %v1316 = vld [vmem:[%s1314 + $0x8] sm:$0xff]
      %v1317 = vld [vmem:[%s1314 + $0x10] sm:$0xff]
      %v1318 = vld [vmem:[%s1314 + $0x18] sm:$0xff]
      %v1319 = vld [vmem:[%s1314 + $0x20] sm:$0xff]
      %v1320 = vld [vmem:[%s1314 + $0x28] sm:$0xff]
      %v1321 = vld [vmem:[%s1314 + $0x30] sm:$0xff]
      %v1322 = vld [vmem:[%s1314 + $0x38] sm:$0xff]
      %v1323 = vld [vmem:[%s1314 + $0x40] sm:$0xff]
      %v1324 = vld [vmem:[%s1314 + $0x48] sm:$0xff]
      %v1325 = vld [vmem:[%s1314 + $0x50] sm:$0xff]
      %v1326 = vld [vmem:[%s1314 + $0x58] sm:$0xff]
      %v1327 = vld [vmem:[%s1314 + $0x60] sm:$0xff]
      %v1328 = vld [vmem:[%s1314 + $0x68] sm:$0xff]
      %v1329 = vld [vmem:[%s1314 + $0x70] sm:$0xff]
      %v1330 = vld [vmem:[%s1314 + $0x78] sm:$0xff]
      %v1331 = vld [vmem:[%s1314 + $0x80] sm:$0xff]
      %v1332 = vld [vmem:[%s1314 + $0x88] sm:$0xff]
      %v1333 = vld [vmem:[%s1314 + $0x90] sm:$0xff]
      %v1334 = vld [vmem:[%s1314 + $0x98] sm:$0xff]
      %v1335 = vld [vmem:[%s1314 + $0xa0] sm:$0xff]
      %v1336 = vld [vmem:[%s1314 + $0xa8] sm:$0xff]
      %v1337 = vld [vmem:[%s1314 + $0xb0] sm:$0xff]
      %v1338 = vld [vmem:[%s1314 + $0xb8] sm:$0xff]
      %v1339 = vld [vmem:[%s1314 + $0xc0] sm:$0xff]
      %v1340 = vld [vmem:[%s1314 + $0xc8] sm:$0xff]
      %v1341 = vld [vmem:[%s1314 + $0xd0] sm:$0xff]
      %v1342 = vld [vmem:[%s1314 + $0xd8] sm:$0xff]
      %v1343 = vld [vmem:[%s1314 + $0xe0] sm:$0xff]
      %v1344 = vld [vmem:[%s1314 + $0xe8] sm:$0xff]
      %v1345 = vld [vmem:[%s1314 + $0xf0] sm:$0xff]
      %v1346 = vld [vmem:[%s1314 + $0xf8] sm:$0xff]
      %v1347 = vld [vmem:[%s1314 + $0x100] sm:$0xff]
      %v1348 = vld [vmem:[%s1314 + $0x108] sm:$0xff]
      %v1349 = vld [vmem:[%s1314 + $0x110] sm:$0xff]
      %v1350 = vld [vmem:[%s1314 + $0x118] sm:$0xff]
      %v1351 = vld [vmem:[%s1314 + $0x120] sm:$0xff]
      %v1352 = vld [vmem:[%s1314 + $0x128] sm:$0xff]
      %v1353 = vld [vmem:[%s1314 + $0x130] sm:$0xff]
      %v1354 = vld [vmem:[%s1314 + $0x138] sm:$0xff]
      %v1355 = vld [vmem:[%s1314 + $0x140] sm:$0xff]
      %v1356 = vld [vmem:[%s1314 + $0x148] sm:$0xff]
      %v1357 = vld [vmem:[%s1314 + $0x150] sm:$0xff]
      %v1358 = vld [vmem:[%s1314 + $0x158] sm:$0xff]
      %v1359 = vld [vmem:[%s1314 + $0x160] sm:$0xff]
      %v1360 = vld [vmem:[%s1314 + $0x168] sm:$0xff]
      %v1361 = vld [vmem:[%s1314 + $0x170] sm:$0xff]
      %v1362 = vld [vmem:[%s1314 + $0x178] sm:$0xff]
      %s1363 = scalar_lea.vmem %s1, 384
      %v1364 = vld [vmem:[%s1363] sm:$0xff]
      %v1365 = vld [vmem:[%s1363 + $0x8] sm:$0xff]
      %v1366 = vld [vmem:[%s1363 + $0x10] sm:$0xff]
      %v1367 = vld [vmem:[%s1363 + $0x18] sm:$0xff]
      %v1368 = vld [vmem:[%s1363 + $0x20] sm:$0xff]
      %v1369 = vld [vmem:[%s1363 + $0x28] sm:$0xff]
      %v1370 = vld [vmem:[%s1363 + $0x30] sm:$0xff]
      %v1371 = vld [vmem:[%s1363 + $0x38] sm:$0xff]
      %v1372 = vld [vmem:[%s1363 + $0x40] sm:$0xff]
      %v1373 = vld [vmem:[%s1363 + $0x48] sm:$0xff]
      %v1374 = vld [vmem:[%s1363 + $0x50] sm:$0xff]
      %v1375 = vld [vmem:[%s1363 + $0x58] sm:$0xff]
      %v1376 = vld [vmem:[%s1363 + $0x60] sm:$0xff]
      %v1377 = vld [vmem:[%s1363 + $0x68] sm:$0xff]
      %v1378 = vld [vmem:[%s1363 + $0x70] sm:$0xff]
      %v1379 = vld [vmem:[%s1363 + $0x78] sm:$0xff]
      %1380 = vmatpush.msra.mxu0 %v1379
      %1381 = vmatpush.msra.mxu0 %v1378
      %1382 = vmatpush.msra.mxu0 %v1377
      %1383 = vmatpush.msra.mxu0 %v1376
      %1384 = vmatpush.msra.mxu0 %v1375
      %1385 = vmatpush.msra.mxu0 %v1374
      %1386 = vmatpush.msra.mxu0 %v1373
      %1387 = vmatpush.msra.mxu0 %v1372
      %1388 = vmatpush.msra.mxu0 %v1371
      %1389 = vmatpush.msra.mxu0 %v1370
      %1390 = vmatpush.msra.mxu0 %v1369
      %1391 = vmatpush.msra.mxu0 %v1368
      %1392 = vmatpush.msra.mxu0 %v1367
      %1393 = vmatpush.msra.mxu0 %v1366
      %1394 = vmatpush.msra.mxu0 %v1365
      %1395 = vmatpush.msra.mxu0 %v1364
      %1396 = vmatmul.f32.gmra.mxu0 %v1315
      %v1397 = vpop.f32.mrf.mxu0
      %v1398 = vadd.f32 0.0, %v1397
      %1399 = vmatmul.f32.gmra.mxu0 %v1316
      %v1400 = vpop.f32.mrf.mxu0
      %v1401 = vadd.f32 0.0, %v1400
      %1402 = vmatmul.f32.gmra.mxu0 %v1317
      %v1403 = vpop.f32.mrf.mxu0
      %v1404 = vadd.f32 0.0, %v1403
      %1405 = vmatmul.f32.gmra.mxu0 %v1318
      %v1406 = vpop.f32.mrf.mxu0
      %v1407 = vadd.f32 0.0, %v1406
      %1408 = vmatmul.f32.gmra.mxu0 %v1319
      %v1409 = vpop.f32.mrf.mxu0
      %v1410 = vadd.f32 0.0, %v1409
      %1411 = vmatmul.f32.gmra.mxu0 %v1320
      %v1412 = vpop.f32.mrf.mxu0
      %v1413 = vadd.f32 0.0, %v1412
      %1414 = vmatmul.f32.gmra.mxu0 %v1321
      %v1415 = vpop.f32.mrf.mxu0
      %v1416 = vadd.f32 0.0, %v1415
      %1417 = vmatmul.f32.gmra.mxu0 %v1322
      %v1418 = vpop.f32.mrf.mxu0
      %v1419 = vadd.f32 0.0, %v1418
      %1420 = vmatmul.f32.gmra.mxu0 %v1323
      %v1421 = vpop.f32.mrf.mxu0
      %v1422 = vadd.f32 0.0, %v1421
      %1423 = vmatmul.f32.gmra.mxu0 %v1324
      %v1424 = vpop.f32.mrf.mxu0
      %v1425 = vadd.f32 0.0, %v1424
      %1426 = vmatmul.f32.gmra.mxu0 %v1325
      %v1427 = vpop.f32.mrf.mxu0
      %v1428 = vadd.f32 0.0, %v1427
      %1429 = vmatmul.f32.gmra.mxu0 %v1326
      %v1430 = vpop.f32.mrf.mxu0
      %v1431 = vadd.f32 0.0, %v1430
      %1432 = vmatmul.f32.gmra.mxu0 %v1327
      %v1433 = vpop.f32.mrf.mxu0
      %v1434 = vadd.f32 0.0, %v1433
      %1435 = vmatmul.f32.gmra.mxu0 %v1328
      %v1436 = vpop.f32.mrf.mxu0
      %v1437 = vadd.f32 0.0, %v1436
      %1438 = vmatmul.f32.gmra.mxu0 %v1329
      %v1439 = vpop.f32.mrf.mxu0
      %v1440 = vadd.f32 0.0, %v1439
      %1441 = vmatmul.f32.gmra.mxu0 %v1330
      %v1442 = vpop.f32.mrf.mxu0
      %v1443 = vadd.f32 0.0, %v1442
      %1444 = vmatmul.f32.gmra.mxu0 %v1331
      %v1445 = vpop.f32.mrf.mxu0
      %v1446 = vadd.f32 0.0, %v1445
      %1447 = vmatmul.f32.gmra.mxu0 %v1332
      %v1448 = vpop.f32.mrf.mxu0
      %v1449 = vadd.f32 0.0, %v1448
      %1450 = vmatmul.f32.gmra.mxu0 %v1333
      %v1451 = vpop.f32.mrf.mxu0
      %v1452 = vadd.f32 0.0, %v1451
      %1453 = vmatmul.f32.gmra.mxu0 %v1334
      %v1454 = vpop.f32.mrf.mxu0
      %v1455 = vadd.f32 0.0, %v1454
      %1456 = vmatmul.f32.gmra.mxu0 %v1335
      %v1457 = vpop.f32.mrf.mxu0
      %v1458 = vadd.f32 0.0, %v1457
      %1459 = vmatmul.f32.gmra.mxu0 %v1336
      %v1460 = vpop.f32.mrf.mxu0
      %v1461 = vadd.f32 0.0, %v1460
      %1462 = vmatmul.f32.gmra.mxu0 %v1337
      %v1463 = vpop.f32.mrf.mxu0
      %v1464 = vadd.f32 0.0, %v1463
      %1465 = vmatmul.f32.gmra.mxu0 %v1338
      %v1466 = vpop.f32.mrf.mxu0
      %v1467 = vadd.f32 0.0, %v1466
      %1468 = vmatmul.f32.gmra.mxu0 %v1339
      %v1469 = vpop.f32.mrf.mxu0
      %v1470 = vadd.f32 0.0, %v1469
      %1471 = vmatmul.f32.gmra.mxu0 %v1340
      %v1472 = vpop.f32.mrf.mxu0
      %v1473 = vadd.f32 0.0, %v1472
      %1474 = vmatmul.f32.gmra.mxu0 %v1341
      %v1475 = vpop.f32.mrf.mxu0
      %v1476 = vadd.f32 0.0, %v1475
      %1477 = vmatmul.f32.gmra.mxu0 %v1342
      %v1478 = vpop.f32.mrf.mxu0
      %v1479 = vadd.f32 0.0, %v1478
      %1480 = vmatmul.f32.gmra.mxu0 %v1343
      %v1481 = vpop.f32.mrf.mxu0
      %v1482 = vadd.f32 0.0, %v1481
      %1483 = vmatmul.f32.gmra.mxu0 %v1344
      %v1484 = vpop.f32.mrf.mxu0
      %v1485 = vadd.f32 0.0, %v1484
      %1486 = vmatmul.f32.gmra.mxu0 %v1345
      %v1487 = vpop.f32.mrf.mxu0
      %v1488 = vadd.f32 0.0, %v1487
      %1489 = vmatmul.f32.gmra.mxu0 %v1346
      %v1490 = vpop.f32.mrf.mxu0
      %v1491 = vadd.f32 0.0, %v1490
      %1492 = vmatmul.f32.gmra.mxu0 %v1347
      %v1493 = vpop.f32.mrf.mxu0
      %v1494 = vadd.f32 0.0, %v1493
      %1495 = vmatmul.f32.gmra.mxu0 %v1348
      %v1496 = vpop.f32.mrf.mxu0
      %v1497 = vadd.f32 0.0, %v1496
      %1498 = vmatmul.f32.gmra.mxu0 %v1349
      %v1499 = vpop.f32.mrf.mxu0
      %v1500 = vadd.f32 0.0, %v1499
      %1501 = vmatmul.f32.gmra.mxu0 %v1350
      %v1502 = vpop.f32.mrf.mxu0
      %v1503 = vadd.f32 0.0, %v1502
      %1504 = vmatmul.f32.gmra.mxu0 %v1351
      %v1505 = vpop.f32.mrf.mxu0
      %v1506 = vadd.f32 0.0, %v1505
      %1507 = vmatmul.f32.gmra.mxu0 %v1352
      %v1508 = vpop.f32.mrf.mxu0
      %v1509 = vadd.f32 0.0, %v1508
      %1510 = vmatmul.f32.gmra.mxu0 %v1353
      %v1511 = vpop.f32.mrf.mxu0
      %v1512 = vadd.f32 0.0, %v1511
      %1513 = vmatmul.f32.gmra.mxu0 %v1354
      %v1514 = vpop.f32.mrf.mxu0
      %v1515 = vadd.f32 0.0, %v1514
      %1516 = vmatmul.f32.gmra.mxu0 %v1355
      %v1517 = vpop.f32.mrf.mxu0
      %v1518 = vadd.f32 0.0, %v1517
      %1519 = vmatmul.f32.gmra.mxu0 %v1356
      %v1520 = vpop.f32.mrf.mxu0
      %v1521 = vadd.f32 0.0, %v1520
      %1522 = vmatmul.f32.gmra.mxu0 %v1357
      %v1523 = vpop.f32.mrf.mxu0
      %v1524 = vadd.f32 0.0, %v1523
      %1525 = vmatmul.f32.gmra.mxu0 %v1358
      %v1526 = vpop.f32.mrf.mxu0
      %v1527 = vadd.f32 0.0, %v1526
      %1528 = vmatmul.f32.gmra.mxu0 %v1359
      %v1529 = vpop.f32.mrf.mxu0
      %v1530 = vadd.f32 0.0, %v1529
      %1531 = vmatmul.f32.gmra.mxu0 %v1360
      %v1532 = vpop.f32.mrf.mxu0
      %v1533 = vadd.f32 0.0, %v1532
      %1534 = vmatmul.f32.gmra.mxu0 %v1361
      %v1535 = vpop.f32.mrf.mxu0
      %v1536 = vadd.f32 0.0, %v1535
      %1537 = vmatmul.f32.gmra.mxu0 %v1362
      %v1538 = vpop.f32.mrf.mxu0
      %v1539 = vadd.f32 0.0, %v1538
      %1540 = vdwg.mxu0
      %v1541 = vrot.slane %v1398, 7
      %v1542 = vrot.slane %v1401, 7
      %v1543 = vrot.slane %v1404, 7
      %v1544 = vrot.slane %v1407, 7
      %v1545 = vrot.slane %v1410, 7
      %v1546 = vrot.slane %v1413, 7
      %v1547 = vrot.slane %v1416, 7
      %v1548 = vrot.slane %v1419, 7
      %v1549 = vrot.slane %v1422, 7
      %v1550 = vrot.slane %v1425, 7
      %v1551 = vrot.slane %v1428, 7
      %v1552 = vrot.slane %v1431, 7
      %v1553 = vrot.slane %v1434, 7
      %v1554 = vrot.slane %v1437, 7
      %v1555 = vrot.slane %v1440, 7
      %v1556 = vrot.slane %v1443, 7
      %v1557 = vrot.slane %v1446, 7
      %v1558 = vrot.slane %v1449, 7
      %v1559 = vrot.slane %v1452, 7
      %v1560 = vrot.slane %v1455, 7
      %v1561 = vrot.slane %v1458, 7
      %v1562 = vrot.slane %v1461, 7
      %v1563 = vrot.slane %v1464, 7
      %v1564 = vrot.slane %v1467, 7
      %v1565 = vrot.slane %v1470, 7
      %v1566 = vrot.slane %v1473, 7
      %v1567 = vrot.slane %v1476, 7
      %v1568 = vrot.slane %v1479, 7
      %v1569 = vrot.slane %v1482, 7
      %v1570 = vrot.slane %v1485, 7
      %v1571 = vrot.slane %v1488, 7
      %v1572 = vrot.slane %v1491, 7
      %v1573 = vrot.slane %v1494, 7
      %v1574 = vrot.slane %v1497, 7
      %v1575 = vrot.slane %v1500, 7
      %v1576 = vrot.slane %v1503, 7
      %v1577 = vrot.slane %v1506, 7
      %v1578 = vrot.slane %v1509, 7
      %v1579 = vrot.slane %v1512, 7
      %v1580 = vrot.slane %v1515, 7
      %v1581 = vrot.slane %v1518, 7
      %v1582 = vrot.slane %v1521, 7
      %v1583 = vrot.slane %v1524, 7
      %v1584 = vrot.slane %v1527, 7
      %v1585 = vrot.slane %v1530, 7
      %v1586 = vrot.slane %v1533, 7
      %v1587 = vrot.slane %v1536, 7
      %v1588 = vrot.slane %v1539, 7
      %v1589 = vsel %vm762, %v1586, %v1587
      %v1590 = vsel %vm762, %v1585, %v1586
      %v1591 = vsel %vm762, %v1583, %v1584
      %v1592 = vsel %vm762, %v1582, %v1583
      %v1593 = vsel %vm762, %v1580, %v1581
      %v1594 = vsel %vm762, %v1579, %v1580
      %v1595 = vsel %vm762, %v1577, %v1578
      %v1596 = vsel %vm762, %v1576, %v1577
      %v1597 = vsel %vm762, %v1574, %v1575
      %v1598 = vsel %vm762, %v1573, %v1574
      %v1599 = vsel %vm762, %v1571, %v1572
      %v1600 = vsel %vm762, %v1570, %v1571
      %v1601 = vsel %vm762, %v1568, %v1569
      %v1602 = vsel %vm762, %v1567, %v1568
      %v1603 = vsel %vm762, %v1565, %v1566
      %v1604 = vsel %vm762, %v1564, %v1565
      %v1605 = vsel %vm762, %v1562, %v1563
      %v1606 = vsel %vm762, %v1561, %v1562
      %v1607 = vsel %vm762, %v1559, %v1560
      %v1608 = vsel %vm762, %v1558, %v1559
      %v1609 = vsel %vm762, %v1556, %v1557
      %v1610 = vsel %vm762, %v1555, %v1556
      %v1611 = vsel %vm762, %v1553, %v1554
      %v1612 = vsel %vm762, %v1552, %v1553
      %v1613 = vsel %vm762, %v1550, %v1551
      %v1614 = vsel %vm762, %v1549, %v1550
      %v1615 = vsel %vm762, %v1547, %v1548
      %v1616 = vsel %vm762, %v1546, %v1547
      %v1617 = vsel %vm762, %v1544, %v1545
      %v1618 = vsel %vm762, %v1543, %v1544
      %v1619 = vsel %vm762, %v1541, %v1542
      %v1620 = vsel %vm762, %v1588, %v1541
      %v1621 = vadd.f32 %v1280, %v1620
      %v1622 = vadd.f32 %v1281, %v1619
      %v1623 = vadd.f32 %v1282, %v1618
      %v1624 = vadd.f32 %v1283, %v1617
      %v1625 = vadd.f32 %v1284, %v1616
      %v1626 = vadd.f32 %v1285, %v1615
      %v1627 = vadd.f32 %v1286, %v1614
      %v1628 = vadd.f32 %v1287, %v1613
      %v1629 = vadd.f32 %v1288, %v1612
      %v1630 = vadd.f32 %v1289, %v1611
      %v1631 = vadd.f32 %v1290, %v1610
      %v1632 = vadd.f32 %v1291, %v1609
      %v1633 = vadd.f32 %v1292, %v1608
      %v1634 = vadd.f32 %v1293, %v1607
      %v1635 = vadd.f32 %v1294, %v1606
      %v1636 = vadd.f32 %v1295, %v1605
      %v1637 = vadd.f32 %v1296, %v1604
      %v1638 = vadd.f32 %v1297, %v1603
      %v1639 = vadd.f32 %v1298, %v1602
      %v1640 = vadd.f32 %v1299, %v1601
      %v1641 = vadd.f32 %v1300, %v1600
      %v1642 = vadd.f32 %v1301, %v1599
      %v1643 = vadd.f32 %v1302, %v1598
      %v1644 = vadd.f32 %v1303, %v1597
      %v1645 = vadd.f32 %v1304, %v1596
      %v1646 = vadd.f32 %v1305, %v1595
      %v1647 = vadd.f32 %v1306, %v1594
      %v1648 = vadd.f32 %v1307, %v1593
      %v1649 = vadd.f32 %v1308, %v1592
      %v1650 = vadd.f32 %v1309, %v1591
      %v1651 = vadd.f32 %v1310, %v1590
      %v1652 = vadd.f32 %v1311, %v1589
      %s1653 = scalar_lea.vmem %s1, 512
      %v1654 = vld [vmem:[%s1653] sm:$0xff]
      %v1655 = vld [vmem:[%s1653 + $0x8] sm:$0xff]
      %v1656 = vld [vmem:[%s1653 + $0x10] sm:$0xff]
      %v1657 = vld [vmem:[%s1653 + $0x18] sm:$0xff]
      %v1658 = vld [vmem:[%s1653 + $0x20] sm:$0xff]
      %v1659 = vld [vmem:[%s1653 + $0x28] sm:$0xff]
      %v1660 = vld [vmem:[%s1653 + $0x30] sm:$0xff]
      %v1661 = vld [vmem:[%s1653 + $0x38] sm:$0xff]
      %v1662 = vld [vmem:[%s1653 + $0x40] sm:$0xff]
      %v1663 = vld [vmem:[%s1653 + $0x48] sm:$0xff]
      %v1664 = vld [vmem:[%s1653 + $0x50] sm:$0xff]
      %v1665 = vld [vmem:[%s1653 + $0x58] sm:$0xff]
      %v1666 = vld [vmem:[%s1653 + $0x60] sm:$0xff]
      %v1667 = vld [vmem:[%s1653 + $0x68] sm:$0xff]
      %v1668 = vld [vmem:[%s1653 + $0x70] sm:$0xff]
      %v1669 = vld [vmem:[%s1653 + $0x78] sm:$0xff]
      %1670 = vmatpush.msra.mxu0 %v1669
      %1671 = vmatpush.msra.mxu0 %v1668
      %1672 = vmatpush.msra.mxu0 %v1667
      %1673 = vmatpush.msra.mxu0 %v1666
      %1674 = vmatpush.msra.mxu0 %v1665
      %1675 = vmatpush.msra.mxu0 %v1664
      %1676 = vmatpush.msra.mxu0 %v1663
      %1677 = vmatpush.msra.mxu0 %v1662
      %1678 = vmatpush.msra.mxu0 %v1661
      %1679 = vmatpush.msra.mxu0 %v1660
      %1680 = vmatpush.msra.mxu0 %v1659
      %1681 = vmatpush.msra.mxu0 %v1658
      %1682 = vmatpush.msra.mxu0 %v1657
      %1683 = vmatpush.msra.mxu0 %v1656
      %1684 = vmatpush.msra.mxu0 %v1655
      %1685 = vmatpush.msra.mxu0 %v1654
      %1686 = vmatmul.f32.gmra.mxu0 %v1315
      %v1687 = vpop.f32.mrf.mxu0
      %v1688 = vadd.f32 0.0, %v1687
      %1689 = vmatmul.f32.gmra.mxu0 %v1316
      %v1690 = vpop.f32.mrf.mxu0
      %v1691 = vadd.f32 0.0, %v1690
      %1692 = vmatmul.f32.gmra.mxu0 %v1317
      %v1693 = vpop.f32.mrf.mxu0
      %1694 = vmatmul.f32.gmra.mxu0 %v1318
      %v1695 = vpop.f32.mrf.mxu0
      %v1696 = vadd.f32 0.0, %v1695
      %1697 = vmatmul.f32.gmra.mxu0 %v1319
      %v1698 = vpop.f32.mrf.mxu0
      %v1699 = vadd.f32 0.0, %v1698
      %1700 = vmatmul.f32.gmra.mxu0 %v1320
      %v1701 = vpop.f32.mrf.mxu0
      %1702 = vmatmul.f32.gmra.mxu0 %v1321
      %v1703 = vpop.f32.mrf.mxu0
      %v1704 = vadd.f32 0.0, %v1703
      %1705 = vmatmul.f32.gmra.mxu0 %v1322
      %v1706 = vpop.f32.mrf.mxu0
      %v1707 = vadd.f32 0.0, %v1706
      %1708 = vmatmul.f32.gmra.mxu0 %v1323
      %v1709 = vpop.f32.mrf.mxu0
      %1710 = vmatmul.f32.gmra.mxu0 %v1324
      %v1711 = vpop.f32.mrf.mxu0
      %v1712 = vadd.f32 0.0, %v1711
      %1713 = vmatmul.f32.gmra.mxu0 %v1325
      %v1714 = vpop.f32.mrf.mxu0
      %v1715 = vadd.f32 0.0, %v1714
      %1716 = vmatmul.f32.gmra.mxu0 %v1326
      %v1717 = vpop.f32.mrf.mxu0
      %1718 = vmatmul.f32.gmra.mxu0 %v1327
      %v1719 = vpop.f32.mrf.mxu0
      %v1720 = vadd.f32 0.0, %v1719
      %1721 = vmatmul.f32.gmra.mxu0 %v1328
      %v1722 = vpop.f32.mrf.mxu0
      %v1723 = vadd.f32 0.0, %v1722
      %1724 = vmatmul.f32.gmra.mxu0 %v1329
      %v1725 = vpop.f32.mrf.mxu0
      %1726 = vmatmul.f32.gmra.mxu0 %v1330
      %v1727 = vpop.f32.mrf.mxu0
      %v1728 = vadd.f32 0.0, %v1727
      %1729 = vmatmul.f32.gmra.mxu0 %v1331
      %v1730 = vpop.f32.mrf.mxu0
      %v1731 = vadd.f32 0.0, %v1730
      %1732 = vmatmul.f32.gmra.mxu0 %v1332
      %v1733 = vpop.f32.mrf.mxu0
      %1734 = vmatmul.f32.gmra.mxu0 %v1333
      %v1735 = vpop.f32.mrf.mxu0
      %v1736 = vadd.f32 0.0, %v1735
      %1737 = vmatmul.f32.gmra.mxu0 %v1334
      %v1738 = vpop.f32.mrf.mxu0
      %v1739 = vadd.f32 0.0, %v1738
      %1740 = vmatmul.f32.gmra.mxu0 %v1335
      %v1741 = vpop.f32.mrf.mxu0
      %1742 = vmatmul.f32.gmra.mxu0 %v1336
      %v1743 = vpop.f32.mrf.mxu0
      %v1744 = vadd.f32 0.0, %v1743
      %1745 = vmatmul.f32.gmra.mxu0 %v1337
      %v1746 = vpop.f32.mrf.mxu0
      %v1747 = vadd.f32 0.0, %v1746
      %1748 = vmatmul.f32.gmra.mxu0 %v1338
      %v1749 = vpop.f32.mrf.mxu0
      %1750 = vmatmul.f32.gmra.mxu0 %v1339
      %v1751 = vpop.f32.mrf.mxu0
      %v1752 = vadd.f32 0.0, %v1751
      %1753 = vmatmul.f32.gmra.mxu0 %v1340
      %v1754 = vpop.f32.mrf.mxu0
      %v1755 = vadd.f32 0.0, %v1754
      %1756 = vmatmul.f32.gmra.mxu0 %v1341
      %v1757 = vpop.f32.mrf.mxu0
      %1758 = vmatmul.f32.gmra.mxu0 %v1342
      %v1759 = vpop.f32.mrf.mxu0
      %v1760 = vadd.f32 0.0, %v1759
      %1761 = vmatmul.f32.gmra.mxu0 %v1343
      %v1762 = vpop.f32.mrf.mxu0
      %v1763 = vadd.f32 0.0, %v1762
      %1764 = vmatmul.f32.gmra.mxu0 %v1344
      %v1765 = vpop.f32.mrf.mxu0
      %1766 = vmatmul.f32.gmra.mxu0 %v1345
      %v1767 = vpop.f32.mrf.mxu0
      %v1768 = vadd.f32 0.0, %v1767
      %1769 = vmatmul.f32.gmra.mxu0 %v1346
      %v1770 = vpop.f32.mrf.mxu0
      %v1771 = vadd.f32 0.0, %v1770
      %1772 = vmatmul.f32.gmra.mxu0 %v1347
      %v1773 = vpop.f32.mrf.mxu0
      %1774 = vmatmul.f32.gmra.mxu0 %v1348
      %v1775 = vpop.f32.mrf.mxu0
      %v1776 = vadd.f32 0.0, %v1775
      %1777 = vmatmul.f32.gmra.mxu0 %v1349
      %v1778 = vpop.f32.mrf.mxu0
      %v1779 = vadd.f32 0.0, %v1778
      %1780 = vmatmul.f32.gmra.mxu0 %v1350
      %v1781 = vpop.f32.mrf.mxu0
      %1782 = vmatmul.f32.gmra.mxu0 %v1351
      %v1783 = vpop.f32.mrf.mxu0
      %v1784 = vadd.f32 0.0, %v1783
      %1785 = vmatmul.f32.gmra.mxu0 %v1352
      %v1786 = vpop.f32.mrf.mxu0
      %v1787 = vadd.f32 0.0, %v1786
      %1788 = vmatmul.f32.gmra.mxu0 %v1353
      %v1789 = vpop.f32.mrf.mxu0
      %1790 = vmatmul.f32.gmra.mxu0 %v1354
      %v1791 = vpop.f32.mrf.mxu0
      %v1792 = vadd.f32 0.0, %v1791
      %1793 = vmatmul.f32.gmra.mxu0 %v1355
      %v1794 = vpop.f32.mrf.mxu0
      %v1795 = vadd.f32 0.0, %v1794
      %1796 = vmatmul.f32.gmra.mxu0 %v1356
      %v1797 = vpop.f32.mrf.mxu0
      %1798 = vmatmul.f32.gmra.mxu0 %v1357
      %v1799 = vpop.f32.mrf.mxu0
      %v1800 = vadd.f32 0.0, %v1799
      %1801 = vmatmul.f32.gmra.mxu0 %v1358
      %v1802 = vpop.f32.mrf.mxu0
      %v1803 = vadd.f32 0.0, %v1802
      %1804 = vmatmul.f32.gmra.mxu0 %v1359
      %v1805 = vpop.f32.mrf.mxu0
      %1806 = vmatmul.f32.gmra.mxu0 %v1360
      %v1807 = vpop.f32.mrf.mxu0
      %v1808 = vadd.f32 0.0, %v1807
      %1809 = vmatmul.f32.gmra.mxu0 %v1361
      %v1810 = vpop.f32.mrf.mxu0
      %v1811 = vadd.f32 0.0, %v1810
      %1812 = vmatmul.f32.gmra.mxu0 %v1362
      %v1813 = vpop.f32.mrf.mxu0
      %1814 = vdwg.mxu0
      %v1815 = vadd.f32 %v1621, %v1688
      %v1816 = vadd.f32 %v1622, %v1691
      %v1817 = vadd.f32 %v1623, %v1696
      %v1818 = vadd.f32 %v1624, %v1699
      %v1819 = vadd.f32 %v1625, %v1704
      %v1820 = vadd.f32 %v1626, %v1707
      %v1821 = vadd.f32 %v1627, %v1712
      %v1822 = vadd.f32 %v1628, %v1715
      %v1823 = vadd.f32 %v1629, %v1720
      %v1824 = vadd.f32 %v1630, %v1723
      %v1825 = vadd.f32 %v1631, %v1728
      %v1826 = vadd.f32 %v1632, %v1731
      %v1827 = vadd.f32 %v1633, %v1736
      %v1828 = vadd.f32 %v1634, %v1739
      %v1829 = vadd.f32 %v1635, %v1744
      %v1830 = vadd.f32 %v1636, %v1747
      %v1831 = vadd.f32 %v1637, %v1752
      %v1832 = vadd.f32 %v1638, %v1755
      %v1833 = vadd.f32 %v1639, %v1760
      %v1834 = vadd.f32 %v1640, %v1763
      %v1835 = vadd.f32 %v1641, %v1768
      %v1836 = vadd.f32 %v1642, %v1771
      %v1837 = vadd.f32 %v1643, %v1776
      %v1838 = vadd.f32 %v1644, %v1779
      %v1839 = vadd.f32 %v1645, %v1784
      %v1840 = vadd.f32 %v1646, %v1787
      %v1841 = vadd.f32 %v1647, %v1792
      %v1842 = vadd.f32 %v1648, %v1795
      %v1843 = vadd.f32 %v1649, %v1800
      %v1844 = vadd.f32 %v1650, %v1803
      %v1845 = vadd.f32 %v1651, %v1808
      %v1846 = vadd.f32 %v1652, %v1811
      %s1847 = scalar_lea.vmem %s1, 640
      %v1848 = vld [vmem:[%s1847] sm:$0xff]
      %v1849 = vld [vmem:[%s1847 + $0x8] sm:$0xff]
      %v1850 = vld [vmem:[%s1847 + $0x10] sm:$0xff]
      %v1851 = vld [vmem:[%s1847 + $0x18] sm:$0xff]
      %v1852 = vld [vmem:[%s1847 + $0x20] sm:$0xff]
      %v1853 = vld [vmem:[%s1847 + $0x28] sm:$0xff]
      %v1854 = vld [vmem:[%s1847 + $0x30] sm:$0xff]
      %v1855 = vld [vmem:[%s1847 + $0x38] sm:$0xff]
      %v1856 = vld [vmem:[%s1847 + $0x40] sm:$0xff]
      %v1857 = vld [vmem:[%s1847 + $0x48] sm:$0xff]
      %v1858 = vld [vmem:[%s1847 + $0x50] sm:$0xff]
      %v1859 = vld [vmem:[%s1847 + $0x58] sm:$0xff]
      %v1860 = vld [vmem:[%s1847 + $0x60] sm:$0xff]
      %v1861 = vld [vmem:[%s1847 + $0x68] sm:$0xff]
      %v1862 = vld [vmem:[%s1847 + $0x70] sm:$0xff]
      %v1863 = vld [vmem:[%s1847 + $0x78] sm:$0xff]
      %1864 = vmatpush.msra.mxu0 %v1863
      %1865 = vmatpush.msra.mxu0 %v1862
      %1866 = vmatpush.msra.mxu0 %v1861
      %1867 = vmatpush.msra.mxu0 %v1860
      %1868 = vmatpush.msra.mxu0 %v1859
      %1869 = vmatpush.msra.mxu0 %v1858
      %1870 = vmatpush.msra.mxu0 %v1857
      %1871 = vmatpush.msra.mxu0 %v1856
      %1872 = vmatpush.msra.mxu0 %v1855
      %1873 = vmatpush.msra.mxu0 %v1854
      %1874 = vmatpush.msra.mxu0 %v1853
      %1875 = vmatpush.msra.mxu0 %v1852
      %1876 = vmatpush.msra.mxu0 %v1851
      %1877 = vmatpush.msra.mxu0 %v1850
      %1878 = vmatpush.msra.mxu0 %v1849
      %1879 = vmatpush.msra.mxu0 %v1848
      %1880 = vmatmul.f32.gmra.mxu0 %v1315
      %v1881 = vpop.f32.mrf.mxu0
      %v1882 = vadd.f32 0.0, %v1881
      %1883 = vmatmul.f32.gmra.mxu0 %v1316
      %v1884 = vpop.f32.mrf.mxu0
      %v1885 = vadd.f32 0.0, %v1884
      %1886 = vmatmul.f32.gmra.mxu0 %v1317
      %v1887 = vpop.f32.mrf.mxu0
      %v1888 = vadd.f32 0.0, %v1887
      %1889 = vmatmul.f32.gmra.mxu0 %v1318
      %v1890 = vpop.f32.mrf.mxu0
      %v1891 = vadd.f32 0.0, %v1890
      %1892 = vmatmul.f32.gmra.mxu0 %v1319
      %v1893 = vpop.f32.mrf.mxu0
      %v1894 = vadd.f32 0.0, %v1893
      %1895 = vmatmul.f32.gmra.mxu0 %v1320
      %v1896 = vpop.f32.mrf.mxu0
      %v1897 = vadd.f32 0.0, %v1896
      %1898 = vmatmul.f32.gmra.mxu0 %v1321
      %v1899 = vpop.f32.mrf.mxu0
      %v1900 = vadd.f32 0.0, %v1899
      %1901 = vmatmul.f32.gmra.mxu0 %v1322
      %v1902 = vpop.f32.mrf.mxu0
      %v1903 = vadd.f32 0.0, %v1902
      %1904 = vmatmul.f32.gmra.mxu0 %v1323
      %v1905 = vpop.f32.mrf.mxu0
      %v1906 = vadd.f32 0.0, %v1905
      %1907 = vmatmul.f32.gmra.mxu0 %v1324
      %v1908 = vpop.f32.mrf.mxu0
      %v1909 = vadd.f32 0.0, %v1908
      %1910 = vmatmul.f32.gmra.mxu0 %v1325
      %v1911 = vpop.f32.mrf.mxu0
      %v1912 = vadd.f32 0.0, %v1911
      %1913 = vmatmul.f32.gmra.mxu0 %v1326
      %v1914 = vpop.f32.mrf.mxu0
      %v1915 = vadd.f32 0.0, %v1914
      %1916 = vmatmul.f32.gmra.mxu0 %v1327
      %v1917 = vpop.f32.mrf.mxu0
      %v1918 = vadd.f32 0.0, %v1917
      %1919 = vmatmul.f32.gmra.mxu0 %v1328
      %v1920 = vpop.f32.mrf.mxu0
      %v1921 = vadd.f32 0.0, %v1920
      %1922 = vmatmul.f32.gmra.mxu0 %v1329
      %v1923 = vpop.f32.mrf.mxu0
      %v1924 = vadd.f32 0.0, %v1923
      %1925 = vmatmul.f32.gmra.mxu0 %v1330
      %v1926 = vpop.f32.mrf.mxu0
      %v1927 = vadd.f32 0.0, %v1926
      %1928 = vmatmul.f32.gmra.mxu0 %v1331
      %v1929 = vpop.f32.mrf.mxu0
      %v1930 = vadd.f32 0.0, %v1929
      %1931 = vmatmul.f32.gmra.mxu0 %v1332
      %v1932 = vpop.f32.mrf.mxu0
      %v1933 = vadd.f32 0.0, %v1932
      %1934 = vmatmul.f32.gmra.mxu0 %v1333
      %v1935 = vpop.f32.mrf.mxu0
      %v1936 = vadd.f32 0.0, %v1935
      %1937 = vmatmul.f32.gmra.mxu0 %v1334
      %v1938 = vpop.f32.mrf.mxu0
      %v1939 = vadd.f32 0.0, %v1938
      %1940 = vmatmul.f32.gmra.mxu0 %v1335
      %v1941 = vpop.f32.mrf.mxu0
      %v1942 = vadd.f32 0.0, %v1941
      %1943 = vmatmul.f32.gmra.mxu0 %v1336
      %v1944 = vpop.f32.mrf.mxu0
      %v1945 = vadd.f32 0.0, %v1944
      %1946 = vmatmul.f32.gmra.mxu0 %v1337
      %v1947 = vpop.f32.mrf.mxu0
      %v1948 = vadd.f32 0.0, %v1947
      %1949 = vmatmul.f32.gmra.mxu0 %v1338
      %v1950 = vpop.f32.mrf.mxu0
      %v1951 = vadd.f32 0.0, %v1950
      %1952 = vmatmul.f32.gmra.mxu0 %v1339
      %v1953 = vpop.f32.mrf.mxu0
      %v1954 = vadd.f32 0.0, %v1953
      %1955 = vmatmul.f32.gmra.mxu0 %v1340
      %v1956 = vpop.f32.mrf.mxu0
      %v1957 = vadd.f32 0.0, %v1956
      %1958 = vmatmul.f32.gmra.mxu0 %v1341
      %v1959 = vpop.f32.mrf.mxu0
      %v1960 = vadd.f32 0.0, %v1959
      %1961 = vmatmul.f32.gmra.mxu0 %v1342
      %v1962 = vpop.f32.mrf.mxu0
      %v1963 = vadd.f32 0.0, %v1962
      %1964 = vmatmul.f32.gmra.mxu0 %v1343
      %v1965 = vpop.f32.mrf.mxu0
      %v1966 = vadd.f32 0.0, %v1965
      %1967 = vmatmul.f32.gmra.mxu0 %v1344
      %v1968 = vpop.f32.mrf.mxu0
      %v1969 = vadd.f32 0.0, %v1968
      %1970 = vmatmul.f32.gmra.mxu0 %v1345
      %v1971 = vpop.f32.mrf.mxu0
      %v1972 = vadd.f32 0.0, %v1971
      %1973 = vmatmul.f32.gmra.mxu0 %v1346
      %v1974 = vpop.f32.mrf.mxu0
      %v1975 = vadd.f32 0.0, %v1974
      %1976 = vmatmul.f32.gmra.mxu0 %v1347
      %v1977 = vpop.f32.mrf.mxu0
      %v1978 = vadd.f32 0.0, %v1977
      %1979 = vmatmul.f32.gmra.mxu0 %v1348
      %v1980 = vpop.f32.mrf.mxu0
      %v1981 = vadd.f32 0.0, %v1980
      %1982 = vmatmul.f32.gmra.mxu0 %v1349
      %v1983 = vpop.f32.mrf.mxu0
      %v1984 = vadd.f32 0.0, %v1983
      %1985 = vmatmul.f32.gmra.mxu0 %v1350
      %v1986 = vpop.f32.mrf.mxu0
      %v1987 = vadd.f32 0.0, %v1986
      %1988 = vmatmul.f32.gmra.mxu0 %v1351
      %v1989 = vpop.f32.mrf.mxu0
      %v1990 = vadd.f32 0.0, %v1989
      %1991 = vmatmul.f32.gmra.mxu0 %v1352
      %v1992 = vpop.f32.mrf.mxu0
      %v1993 = vadd.f32 0.0, %v1992
      %1994 = vmatmul.f32.gmra.mxu0 %v1353
      %v1995 = vpop.f32.mrf.mxu0
      %v1996 = vadd.f32 0.0, %v1995
      %1997 = vmatmul.f32.gmra.mxu0 %v1354
      %v1998 = vpop.f32.mrf.mxu0
      %v1999 = vadd.f32 0.0, %v1998
      %2000 = vmatmul.f32.gmra.mxu0 %v1355
      %v2001 = vpop.f32.mrf.mxu0
      %v2002 = vadd.f32 0.0, %v2001
      %2003 = vmatmul.f32.gmra.mxu0 %v1356
      %v2004 = vpop.f32.mrf.mxu0
      %v2005 = vadd.f32 0.0, %v2004
      %2006 = vmatmul.f32.gmra.mxu0 %v1357
      %v2007 = vpop.f32.mrf.mxu0
      %v2008 = vadd.f32 0.0, %v2007
      %2009 = vmatmul.f32.gmra.mxu0 %v1358
      %v2010 = vpop.f32.mrf.mxu0
      %v2011 = vadd.f32 0.0, %v2010
      %2012 = vmatmul.f32.gmra.mxu0 %v1359
      %v2013 = vpop.f32.mrf.mxu0
      %v2014 = vadd.f32 0.0, %v2013
      %2015 = vmatmul.f32.gmra.mxu0 %v1360
      %v2016 = vpop.f32.mrf.mxu0
      %v2017 = vadd.f32 0.0, %v2016
      %2018 = vmatmul.f32.gmra.mxu0 %v1361
      %v2019 = vpop.f32.mrf.mxu0
      %v2020 = vadd.f32 0.0, %v2019
      %2021 = vmatmul.f32.gmra.mxu0 %v1362
      %v2022 = vpop.f32.mrf.mxu0
      %v2023 = vadd.f32 0.0, %v2022
      %2024 = vdwg.mxu0
      %v2025 = vrot.slane %v1882, 1
      %v2026 = vrot.slane %v1885, 1
      %v2027 = vrot.slane %v1888, 1
      %v2028 = vrot.slane %v1891, 1
      %v2029 = vrot.slane %v1894, 1
      %v2030 = vrot.slane %v1897, 1
      %v2031 = vrot.slane %v1900, 1
      %v2032 = vrot.slane %v1903, 1
      %v2033 = vrot.slane %v1906, 1
      %v2034 = vrot.slane %v1909, 1
      %v2035 = vrot.slane %v1912, 1
      %v2036 = vrot.slane %v1915, 1
      %v2037 = vrot.slane %v1918, 1
      %v2038 = vrot.slane %v1921, 1
      %v2039 = vrot.slane %v1924, 1
      %v2040 = vrot.slane %v1927, 1
      %v2041 = vrot.slane %v1930, 1
      %v2042 = vrot.slane %v1933, 1
      %v2043 = vrot.slane %v1936, 1
      %v2044 = vrot.slane %v1939, 1
      %v2045 = vrot.slane %v1942, 1
      %v2046 = vrot.slane %v1945, 1
      %v2047 = vrot.slane %v1948, 1
      %v2048 = vrot.slane %v1951, 1
      %v2049 = vrot.slane %v1954, 1
      %v2050 = vrot.slane %v1957, 1
      %v2051 = vrot.slane %v1960, 1
      %v2052 = vrot.slane %v1963, 1
      %v2053 = vrot.slane %v1966, 1
      %v2054 = vrot.slane %v1969, 1
      %v2055 = vrot.slane %v1972, 1
      %v2056 = vrot.slane %v1975, 1
      %v2057 = vrot.slane %v1978, 1
      %v2058 = vrot.slane %v1981, 1
      %v2059 = vrot.slane %v1984, 1
      %v2060 = vrot.slane %v1987, 1
      %v2061 = vrot.slane %v1990, 1
      %v2062 = vrot.slane %v1993, 1
      %v2063 = vrot.slane %v1996, 1
      %v2064 = vrot.slane %v1999, 1
      %v2065 = vrot.slane %v2002, 1
      %v2066 = vrot.slane %v2005, 1
      %v2067 = vrot.slane %v2008, 1
      %v2068 = vrot.slane %v2011, 1
      %v2069 = vrot.slane %v2014, 1
      %v2070 = vrot.slane %v2017, 1
      %v2071 = vrot.slane %v2020, 1
      %v2072 = vrot.slane %v2023, 1
      %v2073 = vsel %vm1247, %v2071, %v2072
      %v2074 = vsel %vm1247, %v2070, %v2071
      %v2075 = vsel %vm1247, %v2068, %v2069
      %v2076 = vsel %vm1247, %v2067, %v2068
      %v2077 = vsel %vm1247, %v2065, %v2066
      %v2078 = vsel %vm1247, %v2064, %v2065
      %v2079 = vsel %vm1247, %v2062, %v2063
      %v2080 = vsel %vm1247, %v2061, %v2062
      %v2081 = vsel %vm1247, %v2059, %v2060
      %v2082 = vsel %vm1247, %v2058, %v2059
      %v2083 = vsel %vm1247, %v2056, %v2057
      %v2084 = vsel %vm1247, %v2055, %v2056
      %v2085 = vsel %vm1247, %v2053, %v2054
      %v2086 = vsel %vm1247, %v2052, %v2053
      %v2087 = vsel %vm1247, %v2050, %v2051
      %v2088 = vsel %vm1247, %v2049, %v2050
      %v2089 = vsel %vm1247, %v2047, %v2048
      %v2090 = vsel %vm1247, %v2046, %v2047
      %v2091 = vsel %vm1247, %v2044, %v2045
      %v2092 = vsel %vm1247, %v2043, %v2044
      %v2093 = vsel %vm1247, %v2041, %v2042
      %v2094 = vsel %vm1247, %v2040, %v2041
      %v2095 = vsel %vm1247, %v2038, %v2039
      %v2096 = vsel %vm1247, %v2037, %v2038
      %v2097 = vsel %vm1247, %v2035, %v2036
      %v2098 = vsel %vm1247, %v2034, %v2035
      %v2099 = vsel %vm1247, %v2032, %v2033
      %v2100 = vsel %vm1247, %v2031, %v2032
      %v2101 = vsel %vm1247, %v2029, %v2030
      %v2102 = vsel %vm1247, %v2028, %v2029
      %v2103 = vsel %vm1247, %v2026, %v2027
      %v2104 = vsel %vm1247, %v2025, %v2026
      %v2105 = vadd.f32 %v1815, %v2104
      %v2106 = vadd.f32 %v1816, %v2103
      %v2107 = vadd.f32 %v1817, %v2102
      %v2108 = vadd.f32 %v1818, %v2101
      %v2109 = vadd.f32 %v1819, %v2100
      %v2110 = vadd.f32 %v1820, %v2099
      %v2111 = vadd.f32 %v1821, %v2098
      %v2112 = vadd.f32 %v1822, %v2097
      %v2113 = vadd.f32 %v1823, %v2096
      %v2114 = vadd.f32 %v1824, %v2095
      %v2115 = vadd.f32 %v1825, %v2094
      %v2116 = vadd.f32 %v1826, %v2093
      %v2117 = vadd.f32 %v1827, %v2092
      %v2118 = vadd.f32 %v1828, %v2091
      %v2119 = vadd.f32 %v1829, %v2090
      %v2120 = vadd.f32 %v1830, %v2089
      %v2121 = vadd.f32 %v1831, %v2088
      %v2122 = vadd.f32 %v1832, %v2087
      %v2123 = vadd.f32 %v1833, %v2086
      %v2124 = vadd.f32 %v1834, %v2085
      %v2125 = vadd.f32 %v1835, %v2084
      %v2126 = vadd.f32 %v1836, %v2083
      %v2127 = vadd.f32 %v1837, %v2082
      %v2128 = vadd.f32 %v1838, %v2081
      %v2129 = vadd.f32 %v1839, %v2080
      %v2130 = vadd.f32 %v1840, %v2079
      %v2131 = vadd.f32 %v1841, %v2078
      %v2132 = vadd.f32 %v1842, %v2077
      %v2133 = vadd.f32 %v1843, %v2076
      %v2134 = vadd.f32 %v1844, %v2075
      %v2135 = vadd.f32 %v1845, %v2074
      %v2136 = vadd.f32 %v1846, %v2073
      %s2137 = sadd.s32 %s484, 2
      %s2138 = smul.u32 %s2137, 24
      %s2139 = scalar_lea.vmem [#allocation2], %s2138
      %v2140 = vld [vmem:[%s2139] sm:$0xff]
      %v2141 = vld [vmem:[%s2139 + $0x8] sm:$0xff]
      %v2142 = vld [vmem:[%s2139 + $0x10] sm:$0xff]
      %v2143 = vld [vmem:[%s2139 + $0x18] sm:$0xff]
      %v2144 = vld [vmem:[%s2139 + $0x20] sm:$0xff]
      %v2145 = vld [vmem:[%s2139 + $0x28] sm:$0xff]
      %v2146 = vld [vmem:[%s2139 + $0x30] sm:$0xff]
      %v2147 = vld [vmem:[%s2139 + $0x38] sm:$0xff]
      %v2148 = vld [vmem:[%s2139 + $0x40] sm:$0xff]
      %v2149 = vld [vmem:[%s2139 + $0x48] sm:$0xff]
      %v2150 = vld [vmem:[%s2139 + $0x50] sm:$0xff]
      %v2151 = vld [vmem:[%s2139 + $0x58] sm:$0xff]
      %v2152 = vld [vmem:[%s2139 + $0x60] sm:$0xff]
      %v2153 = vld [vmem:[%s2139 + $0x68] sm:$0xff]
      %v2154 = vld [vmem:[%s2139 + $0x70] sm:$0xff]
      %v2155 = vld [vmem:[%s2139 + $0x78] sm:$0xff]
      %v2156 = vld [vmem:[%s2139 + $0x80] sm:$0xff]
      %v2157 = vld [vmem:[%s2139 + $0x88] sm:$0xff]
      %v2158 = vld [vmem:[%s2139 + $0x90] sm:$0xff]
      %v2159 = vld [vmem:[%s2139 + $0x98] sm:$0xff]
      %v2160 = vld [vmem:[%s2139 + $0xa0] sm:$0xff]
      %v2161 = vld [vmem:[%s2139 + $0xa8] sm:$0xff]
      %v2162 = vld [vmem:[%s2139 + $0xb0] sm:$0xff]
      %v2163 = vld [vmem:[%s2139 + $0xb8] sm:$0xff]
      %v2164 = vld [vmem:[%s2139 + $0xc0] sm:$0xff]
      %v2165 = vld [vmem:[%s2139 + $0xc8] sm:$0xff]
      %v2166 = vld [vmem:[%s2139 + $0xd0] sm:$0xff]
      %v2167 = vld [vmem:[%s2139 + $0xd8] sm:$0xff]
      %v2168 = vld [vmem:[%s2139 + $0xe0] sm:$0xff]
      %v2169 = vld [vmem:[%s2139 + $0xe8] sm:$0xff]
      %v2170 = vld [vmem:[%s2139 + $0xf0] sm:$0xff]
      %v2171 = vld [vmem:[%s2139 + $0xf8] sm:$0xff]
      %v2172 = vld [vmem:[%s2139 + $0x100] sm:$0xff]
      %v2173 = vld [vmem:[%s2139 + $0x108] sm:$0xff]
      %v2174 = vld [vmem:[%s2139 + $0x110] sm:$0xff]
      %v2175 = vld [vmem:[%s2139 + $0x118] sm:$0xff]
      %v2176 = vld [vmem:[%s2139 + $0x120] sm:$0xff]
      %v2177 = vld [vmem:[%s2139 + $0x128] sm:$0xff]
      %v2178 = vld [vmem:[%s2139 + $0x130] sm:$0xff]
      %v2179 = vld [vmem:[%s2139 + $0x138] sm:$0xff]
      %v2180 = vld [vmem:[%s2139 + $0x140] sm:$0xff]
      %v2181 = vld [vmem:[%s2139 + $0x148] sm:$0xff]
      %v2182 = vld [vmem:[%s2139 + $0x150] sm:$0xff]
      %v2183 = vld [vmem:[%s2139 + $0x158] sm:$0xff]
      %v2184 = vld [vmem:[%s2139 + $0x160] sm:$0xff]
      %v2185 = vld [vmem:[%s2139 + $0x168] sm:$0xff]
      %v2186 = vld [vmem:[%s2139 + $0x170] sm:$0xff]
      %v2187 = vld [vmem:[%s2139 + $0x178] sm:$0xff]
      %s2188 = scalar_lea.vmem %s1, 768
      %v2189 = vld [vmem:[%s2188] sm:$0xff]
      %v2190 = vld [vmem:[%s2188 + $0x8] sm:$0xff]
      %v2191 = vld [vmem:[%s2188 + $0x10] sm:$0xff]
      %v2192 = vld [vmem:[%s2188 + $0x18] sm:$0xff]
      %v2193 = vld [vmem:[%s2188 + $0x20] sm:$0xff]
      %v2194 = vld [vmem:[%s2188 + $0x28] sm:$0xff]
      %v2195 = vld [vmem:[%s2188 + $0x30] sm:$0xff]
      %v2196 = vld [vmem:[%s2188 + $0x38] sm:$0xff]
      %v2197 = vld [vmem:[%s2188 + $0x40] sm:$0xff]
      %v2198 = vld [vmem:[%s2188 + $0x48] sm:$0xff]
      %v2199 = vld [vmem:[%s2188 + $0x50] sm:$0xff]
      %v2200 = vld [vmem:[%s2188 + $0x58] sm:$0xff]
      %v2201 = vld [vmem:[%s2188 + $0x60] sm:$0xff]
      %v2202 = vld [vmem:[%s2188 + $0x68] sm:$0xff]
      %v2203 = vld [vmem:[%s2188 + $0x70] sm:$0xff]
      %v2204 = vld [vmem:[%s2188 + $0x78] sm:$0xff]
      %2205 = vmatpush.msra.mxu0 %v2204
      %2206 = vmatpush.msra.mxu0 %v2203
      %2207 = vmatpush.msra.mxu0 %v2202
      %2208 = vmatpush.msra.mxu0 %v2201
      %2209 = vmatpush.msra.mxu0 %v2200
      %2210 = vmatpush.msra.mxu0 %v2199
      %2211 = vmatpush.msra.mxu0 %v2198
      %2212 = vmatpush.msra.mxu0 %v2197
      %2213 = vmatpush.msra.mxu0 %v2196
      %2214 = vmatpush.msra.mxu0 %v2195
      %2215 = vmatpush.msra.mxu0 %v2194
      %2216 = vmatpush.msra.mxu0 %v2193
      %2217 = vmatpush.msra.mxu0 %v2192
      %2218 = vmatpush.msra.mxu0 %v2191
      %2219 = vmatpush.msra.mxu0 %v2190
      %2220 = vmatpush.msra.mxu0 %v2189
      %2221 = vmatmul.f32.gmra.mxu0 %v2140
      %v2222 = vpop.f32.mrf.mxu0
      %v2223 = vadd.f32 0.0, %v2222
      %2224 = vmatmul.f32.gmra.mxu0 %v2141
      %v2225 = vpop.f32.mrf.mxu0
      %v2226 = vadd.f32 0.0, %v2225
      %2227 = vmatmul.f32.gmra.mxu0 %v2142
      %v2228 = vpop.f32.mrf.mxu0
      %v2229 = vadd.f32 0.0, %v2228
      %2230 = vmatmul.f32.gmra.mxu0 %v2143
      %v2231 = vpop.f32.mrf.mxu0
      %v2232 = vadd.f32 0.0, %v2231
      %2233 = vmatmul.f32.gmra.mxu0 %v2144
      %v2234 = vpop.f32.mrf.mxu0
      %v2235 = vadd.f32 0.0, %v2234
      %2236 = vmatmul.f32.gmra.mxu0 %v2145
      %v2237 = vpop.f32.mrf.mxu0
      %v2238 = vadd.f32 0.0, %v2237
      %2239 = vmatmul.f32.gmra.mxu0 %v2146
      %v2240 = vpop.f32.mrf.mxu0
      %v2241 = vadd.f32 0.0, %v2240
      %2242 = vmatmul.f32.gmra.mxu0 %v2147
      %v2243 = vpop.f32.mrf.mxu0
      %v2244 = vadd.f32 0.0, %v2243
      %2245 = vmatmul.f32.gmra.mxu0 %v2148
      %v2246 = vpop.f32.mrf.mxu0
      %v2247 = vadd.f32 0.0, %v2246
      %2248 = vmatmul.f32.gmra.mxu0 %v2149
      %v2249 = vpop.f32.mrf.mxu0
      %v2250 = vadd.f32 0.0, %v2249
      %2251 = vmatmul.f32.gmra.mxu0 %v2150
      %v2252 = vpop.f32.mrf.mxu0
      %v2253 = vadd.f32 0.0, %v2252
      %2254 = vmatmul.f32.gmra.mxu0 %v2151
      %v2255 = vpop.f32.mrf.mxu0
      %v2256 = vadd.f32 0.0, %v2255
      %2257 = vmatmul.f32.gmra.mxu0 %v2152
      %v2258 = vpop.f32.mrf.mxu0
      %v2259 = vadd.f32 0.0, %v2258
      %2260 = vmatmul.f32.gmra.mxu0 %v2153
      %v2261 = vpop.f32.mrf.mxu0
      %v2262 = vadd.f32 0.0, %v2261
      %2263 = vmatmul.f32.gmra.mxu0 %v2154
      %v2264 = vpop.f32.mrf.mxu0
      %v2265 = vadd.f32 0.0, %v2264
      %2266 = vmatmul.f32.gmra.mxu0 %v2155
      %v2267 = vpop.f32.mrf.mxu0
      %v2268 = vadd.f32 0.0, %v2267
      %2269 = vmatmul.f32.gmra.mxu0 %v2156
      %v2270 = vpop.f32.mrf.mxu0
      %v2271 = vadd.f32 0.0, %v2270
      %2272 = vmatmul.f32.gmra.mxu0 %v2157
      %v2273 = vpop.f32.mrf.mxu0
      %v2274 = vadd.f32 0.0, %v2273
      %2275 = vmatmul.f32.gmra.mxu0 %v2158
      %v2276 = vpop.f32.mrf.mxu0
      %v2277 = vadd.f32 0.0, %v2276
      %2278 = vmatmul.f32.gmra.mxu0 %v2159
      %v2279 = vpop.f32.mrf.mxu0
      %v2280 = vadd.f32 0.0, %v2279
      %2281 = vmatmul.f32.gmra.mxu0 %v2160
      %v2282 = vpop.f32.mrf.mxu0
      %v2283 = vadd.f32 0.0, %v2282
      %2284 = vmatmul.f32.gmra.mxu0 %v2161
      %v2285 = vpop.f32.mrf.mxu0
      %v2286 = vadd.f32 0.0, %v2285
      %2287 = vmatmul.f32.gmra.mxu0 %v2162
      %v2288 = vpop.f32.mrf.mxu0
      %v2289 = vadd.f32 0.0, %v2288
      %2290 = vmatmul.f32.gmra.mxu0 %v2163
      %v2291 = vpop.f32.mrf.mxu0
      %v2292 = vadd.f32 0.0, %v2291
      %2293 = vmatmul.f32.gmra.mxu0 %v2164
      %v2294 = vpop.f32.mrf.mxu0
      %v2295 = vadd.f32 0.0, %v2294
      %2296 = vmatmul.f32.gmra.mxu0 %v2165
      %v2297 = vpop.f32.mrf.mxu0
      %v2298 = vadd.f32 0.0, %v2297
      %2299 = vmatmul.f32.gmra.mxu0 %v2166
      %v2300 = vpop.f32.mrf.mxu0
      %v2301 = vadd.f32 0.0, %v2300
      %2302 = vmatmul.f32.gmra.mxu0 %v2167
      %v2303 = vpop.f32.mrf.mxu0
      %v2304 = vadd.f32 0.0, %v2303
      %2305 = vmatmul.f32.gmra.mxu0 %v2168
      %v2306 = vpop.f32.mrf.mxu0
      %v2307 = vadd.f32 0.0, %v2306
      %2308 = vmatmul.f32.gmra.mxu0 %v2169
      %v2309 = vpop.f32.mrf.mxu0
      %v2310 = vadd.f32 0.0, %v2309
      %2311 = vmatmul.f32.gmra.mxu0 %v2170
      %v2312 = vpop.f32.mrf.mxu0
      %v2313 = vadd.f32 0.0, %v2312
      %2314 = vmatmul.f32.gmra.mxu0 %v2171
      %v2315 = vpop.f32.mrf.mxu0
      %v2316 = vadd.f32 0.0, %v2315
      %2317 = vmatmul.f32.gmra.mxu0 %v2172
      %v2318 = vpop.f32.mrf.mxu0
      %v2319 = vadd.f32 0.0, %v2318
      %2320 = vmatmul.f32.gmra.mxu0 %v2173
      %v2321 = vpop.f32.mrf.mxu0
      %v2322 = vadd.f32 0.0, %v2321
      %2323 = vmatmul.f32.gmra.mxu0 %v2174
      %v2324 = vpop.f32.mrf.mxu0
      %v2325 = vadd.f32 0.0, %v2324
      %2326 = vmatmul.f32.gmra.mxu0 %v2175
      %v2327 = vpop.f32.mrf.mxu0
      %v2328 = vadd.f32 0.0, %v2327
      %2329 = vmatmul.f32.gmra.mxu0 %v2176
      %v2330 = vpop.f32.mrf.mxu0
      %v2331 = vadd.f32 0.0, %v2330
      %2332 = vmatmul.f32.gmra.mxu0 %v2177
      %v2333 = vpop.f32.mrf.mxu0
      %v2334 = vadd.f32 0.0, %v2333
      %2335 = vmatmul.f32.gmra.mxu0 %v2178
      %v2336 = vpop.f32.mrf.mxu0
      %v2337 = vadd.f32 0.0, %v2336
      %2338 = vmatmul.f32.gmra.mxu0 %v2179
      %v2339 = vpop.f32.mrf.mxu0
      %v2340 = vadd.f32 0.0, %v2339
      %2341 = vmatmul.f32.gmra.mxu0 %v2180
      %v2342 = vpop.f32.mrf.mxu0
      %v2343 = vadd.f32 0.0, %v2342
      %2344 = vmatmul.f32.gmra.mxu0 %v2181
      %v2345 = vpop.f32.mrf.mxu0
      %v2346 = vadd.f32 0.0, %v2345
      %2347 = vmatmul.f32.gmra.mxu0 %v2182
      %v2348 = vpop.f32.mrf.mxu0
      %v2349 = vadd.f32 0.0, %v2348
      %2350 = vmatmul.f32.gmra.mxu0 %v2183
      %v2351 = vpop.f32.mrf.mxu0
      %v2352 = vadd.f32 0.0, %v2351
      %2353 = vmatmul.f32.gmra.mxu0 %v2184
      %v2354 = vpop.f32.mrf.mxu0
      %v2355 = vadd.f32 0.0, %v2354
      %2356 = vmatmul.f32.gmra.mxu0 %v2185
      %v2357 = vpop.f32.mrf.mxu0
      %v2358 = vadd.f32 0.0, %v2357
      %2359 = vmatmul.f32.gmra.mxu0 %v2186
      %v2360 = vpop.f32.mrf.mxu0
      %v2361 = vadd.f32 0.0, %v2360
      %2362 = vmatmul.f32.gmra.mxu0 %v2187
      %v2363 = vpop.f32.mrf.mxu0
      %v2364 = vadd.f32 0.0, %v2363
      %2365 = vdwg.mxu0
      %v2366 = vrot.slane %v2223, 7
      %v2367 = vrot.slane %v2226, 7
      %v2368 = vrot.slane %v2229, 7
      %v2369 = vrot.slane %v2232, 7
      %v2370 = vrot.slane %v2235, 7
      %v2371 = vrot.slane %v2238, 7
      %v2372 = vrot.slane %v2241, 7
      %v2373 = vrot.slane %v2244, 7
      %v2374 = vrot.slane %v2247, 7
      %v2375 = vrot.slane %v2250, 7
      %v2376 = vrot.slane %v2253, 7
      %v2377 = vrot.slane %v2256, 7
      %v2378 = vrot.slane %v2259, 7
      %v2379 = vrot.slane %v2262, 7
      %v2380 = vrot.slane %v2265, 7
      %v2381 = vrot.slane %v2268, 7
      %v2382 = vrot.slane %v2271, 7
      %v2383 = vrot.slane %v2274, 7
      %v2384 = vrot.slane %v2277, 7
      %v2385 = vrot.slane %v2280, 7
      %v2386 = vrot.slane %v2283, 7
      %v2387 = vrot.slane %v2286, 7
      %v2388 = vrot.slane %v2289, 7
      %v2389 = vrot.slane %v2292, 7
      %v2390 = vrot.slane %v2295, 7
      %v2391 = vrot.slane %v2298, 7
      %v2392 = vrot.slane %v2301, 7
      %v2393 = vrot.slane %v2304, 7
      %v2394 = vrot.slane %v2307, 7
      %v2395 = vrot.slane %v2310, 7
      %v2396 = vrot.slane %v2313, 7
      %v2397 = vrot.slane %v2316, 7
      %v2398 = vrot.slane %v2319, 7
      %v2399 = vrot.slane %v2322, 7
      %v2400 = vrot.slane %v2325, 7
      %v2401 = vrot.slane %v2328, 7
      %v2402 = vrot.slane %v2331, 7
      %v2403 = vrot.slane %v2334, 7
      %v2404 = vrot.slane %v2337, 7
      %v2405 = vrot.slane %v2340, 7
      %v2406 = vrot.slane %v2343, 7
      %v2407 = vrot.slane %v2346, 7
      %v2408 = vrot.slane %v2349, 7
      %v2409 = vrot.slane %v2352, 7
      %v2410 = vrot.slane %v2355, 7
      %v2411 = vrot.slane %v2358, 7
      %v2412 = vrot.slane %v2361, 7
      %v2413 = vrot.slane %v2364, 7
      %v2414 = vsel %vm762, %v2411, %v2412
      %v2415 = vsel %vm762, %v2410, %v2411
      %v2416 = vsel %vm762, %v2408, %v2409
      %v2417 = vsel %vm762, %v2407, %v2408
      %v2418 = vsel %vm762, %v2405, %v2406
      %v2419 = vsel %vm762, %v2404, %v2405
      %v2420 = vsel %vm762, %v2402, %v2403
      %v2421 = vsel %vm762, %v2401, %v2402
      %v2422 = vsel %vm762, %v2399, %v2400
      %v2423 = vsel %vm762, %v2398, %v2399
      %v2424 = vsel %vm762, %v2396, %v2397
      %v2425 = vsel %vm762, %v2395, %v2396
      %v2426 = vsel %vm762, %v2393, %v2394
      %v2427 = vsel %vm762, %v2392, %v2393
      %v2428 = vsel %vm762, %v2390, %v2391
      %v2429 = vsel %vm762, %v2389, %v2390
      %v2430 = vsel %vm762, %v2387, %v2388
      %v2431 = vsel %vm762, %v2386, %v2387
      %v2432 = vsel %vm762, %v2384, %v2385
      %v2433 = vsel %vm762, %v2383, %v2384
      %v2434 = vsel %vm762, %v2381, %v2382
      %v2435 = vsel %vm762, %v2380, %v2381
      %v2436 = vsel %vm762, %v2378, %v2379
      %v2437 = vsel %vm762, %v2377, %v2378
      %v2438 = vsel %vm762, %v2375, %v2376
      %v2439 = vsel %vm762, %v2374, %v2375
      %v2440 = vsel %vm762, %v2372, %v2373
      %v2441 = vsel %vm762, %v2371, %v2372
      %v2442 = vsel %vm762, %v2369, %v2370
      %v2443 = vsel %vm762, %v2368, %v2369
      %v2444 = vsel %vm762, %v2366, %v2367
      %v2445 = vsel %vm762, %v2413, %v2366
      %v2446 = vadd.f32 %v2105, %v2445
      %v2447 = vadd.f32 %v2106, %v2444
      %v2448 = vadd.f32 %v2107, %v2443
      %v2449 = vadd.f32 %v2108, %v2442
      %v2450 = vadd.f32 %v2109, %v2441
      %v2451 = vadd.f32 %v2110, %v2440
      %v2452 = vadd.f32 %v2111, %v2439
      %v2453 = vadd.f32 %v2112, %v2438
      %v2454 = vadd.f32 %v2113, %v2437
      %v2455 = vadd.f32 %v2114, %v2436
      %v2456 = vadd.f32 %v2115, %v2435
      %v2457 = vadd.f32 %v2116, %v2434
      %v2458 = vadd.f32 %v2117, %v2433
      %v2459 = vadd.f32 %v2118, %v2432
      %v2460 = vadd.f32 %v2119, %v2431
      %v2461 = vadd.f32 %v2120, %v2430
      %v2462 = vadd.f32 %v2121, %v2429
      %v2463 = vadd.f32 %v2122, %v2428
      %v2464 = vadd.f32 %v2123, %v2427
      %v2465 = vadd.f32 %v2124, %v2426
      %v2466 = vadd.f32 %v2125, %v2425
      %v2467 = vadd.f32 %v2126, %v2424
      %v2468 = vadd.f32 %v2127, %v2423
      %v2469 = vadd.f32 %v2128, %v2422
      %v2470 = vadd.f32 %v2129, %v2421
      %v2471 = vadd.f32 %v2130, %v2420
      %v2472 = vadd.f32 %v2131, %v2419
      %v2473 = vadd.f32 %v2132, %v2418
      %v2474 = vadd.f32 %v2133, %v2417
      %v2475 = vadd.f32 %v2134, %v2416
      %v2476 = vadd.f32 %v2135, %v2415
      %v2477 = vadd.f32 %v2136, %v2414
      %s2478 = scalar_lea.vmem %s1, 896
      %v2479 = vld [vmem:[%s2478] sm:$0xff]
      %v2480 = vld [vmem:[%s2478 + $0x8] sm:$0xff]
      %v2481 = vld [vmem:[%s2478 + $0x10] sm:$0xff]
      %v2482 = vld [vmem:[%s2478 + $0x18] sm:$0xff]
      %v2483 = vld [vmem:[%s2478 + $0x20] sm:$0xff]
      %v2484 = vld [vmem:[%s2478 + $0x28] sm:$0xff]
      %v2485 = vld [vmem:[%s2478 + $0x30] sm:$0xff]
      %v2486 = vld [vmem:[%s2478 + $0x38] sm:$0xff]
      %v2487 = vld [vmem:[%s2478 + $0x40] sm:$0xff]
      %v2488 = vld [vmem:[%s2478 + $0x48] sm:$0xff]
      %v2489 = vld [vmem:[%s2478 + $0x50] sm:$0xff]
      %v2490 = vld [vmem:[%s2478 + $0x58] sm:$0xff]
      %v2491 = vld [vmem:[%s2478 + $0x60] sm:$0xff]
      %v2492 = vld [vmem:[%s2478 + $0x68] sm:$0xff]
      %v2493 = vld [vmem:[%s2478 + $0x70] sm:$0xff]
      %v2494 = vld [vmem:[%s2478 + $0x78] sm:$0xff]
      %2495 = vmatpush.msra.mxu0 %v2494
      %2496 = vmatpush.msra.mxu0 %v2493
      %2497 = vmatpush.msra.mxu0 %v2492
      %2498 = vmatpush.msra.mxu0 %v2491
      %2499 = vmatpush.msra.mxu0 %v2490
      %2500 = vmatpush.msra.mxu0 %v2489
      %2501 = vmatpush.msra.mxu0 %v2488
      %2502 = vmatpush.msra.mxu0 %v2487
      %2503 = vmatpush.msra.mxu0 %v2486
      %2504 = vmatpush.msra.mxu0 %v2485
      %2505 = vmatpush.msra.mxu0 %v2484
      %2506 = vmatpush.msra.mxu0 %v2483
      %2507 = vmatpush.msra.mxu0 %v2482
      %2508 = vmatpush.msra.mxu0 %v2481
      %2509 = vmatpush.msra.mxu0 %v2480
      %2510 = vmatpush.msra.mxu0 %v2479
      %2511 = vmatmul.f32.gmra.mxu0 %v2140
      %v2512 = vpop.f32.mrf.mxu0
      %v2513 = vadd.f32 0.0, %v2512
      %2514 = vmatmul.f32.gmra.mxu0 %v2141
      %v2515 = vpop.f32.mrf.mxu0
      %v2516 = vadd.f32 0.0, %v2515
      %2517 = vmatmul.f32.gmra.mxu0 %v2142
      %v2518 = vpop.f32.mrf.mxu0
      %2519 = vmatmul.f32.gmra.mxu0 %v2143
      %v2520 = vpop.f32.mrf.mxu0
      %v2521 = vadd.f32 0.0, %v2520
      %2522 = vmatmul.f32.gmra.mxu0 %v2144
      %v2523 = vpop.f32.mrf.mxu0
      %v2524 = vadd.f32 0.0, %v2523
      %2525 = vmatmul.f32.gmra.mxu0 %v2145
      %v2526 = vpop.f32.mrf.mxu0
      %2527 = vmatmul.f32.gmra.mxu0 %v2146
      %v2528 = vpop.f32.mrf.mxu0
      %v2529 = vadd.f32 0.0, %v2528
      %2530 = vmatmul.f32.gmra.mxu0 %v2147
      %v2531 = vpop.f32.mrf.mxu0
      %v2532 = vadd.f32 0.0, %v2531
      %2533 = vmatmul.f32.gmra.mxu0 %v2148
      %v2534 = vpop.f32.mrf.mxu0
      %2535 = vmatmul.f32.gmra.mxu0 %v2149
      %v2536 = vpop.f32.mrf.mxu0
      %v2537 = vadd.f32 0.0, %v2536
      %2538 = vmatmul.f32.gmra.mxu0 %v2150
      %v2539 = vpop.f32.mrf.mxu0
      %v2540 = vadd.f32 0.0, %v2539
      %2541 = vmatmul.f32.gmra.mxu0 %v2151
      %v2542 = vpop.f32.mrf.mxu0
      %2543 = vmatmul.f32.gmra.mxu0 %v2152
      %v2544 = vpop.f32.mrf.mxu0
      %v2545 = vadd.f32 0.0, %v2544
      %2546 = vmatmul.f32.gmra.mxu0 %v2153
      %v2547 = vpop.f32.mrf.mxu0
      %v2548 = vadd.f32 0.0, %v2547
      %2549 = vmatmul.f32.gmra.mxu0 %v2154
      %v2550 = vpop.f32.mrf.mxu0
      %2551 = vmatmul.f32.gmra.mxu0 %v2155
      %v2552 = vpop.f32.mrf.mxu0
      %v2553 = vadd.f32 0.0, %v2552
      %2554 = vmatmul.f32.gmra.mxu0 %v2156
      %v2555 = vpop.f32.mrf.mxu0
      %v2556 = vadd.f32 0.0, %v2555
      %2557 = vmatmul.f32.gmra.mxu0 %v2157
      %v2558 = vpop.f32.mrf.mxu0
      %2559 = vmatmul.f32.gmra.mxu0 %v2158
      %v2560 = vpop.f32.mrf.mxu0
      %v2561 = vadd.f32 0.0, %v2560
      %2562 = vmatmul.f32.gmra.mxu0 %v2159
      %v2563 = vpop.f32.mrf.mxu0
      %v2564 = vadd.f32 0.0, %v2563
      %2565 = vmatmul.f32.gmra.mxu0 %v2160
      %v2566 = vpop.f32.mrf.mxu0
      %2567 = vmatmul.f32.gmra.mxu0 %v2161
      %v2568 = vpop.f32.mrf.mxu0
      %v2569 = vadd.f32 0.0, %v2568
      %2570 = vmatmul.f32.gmra.mxu0 %v2162
      %v2571 = vpop.f32.mrf.mxu0
      %v2572 = vadd.f32 0.0, %v2571
      %2573 = vmatmul.f32.gmra.mxu0 %v2163
      %v2574 = vpop.f32.mrf.mxu0
      %2575 = vmatmul.f32.gmra.mxu0 %v2164
      %v2576 = vpop.f32.mrf.mxu0
      %v2577 = vadd.f32 0.0, %v2576
      %2578 = vmatmul.f32.gmra.mxu0 %v2165
      %v2579 = vpop.f32.mrf.mxu0
      %v2580 = vadd.f32 0.0, %v2579
      %2581 = vmatmul.f32.gmra.mxu0 %v2166
      %v2582 = vpop.f32.mrf.mxu0
      %2583 = vmatmul.f32.gmra.mxu0 %v2167
      %v2584 = vpop.f32.mrf.mxu0
      %v2585 = vadd.f32 0.0, %v2584
      %2586 = vmatmul.f32.gmra.mxu0 %v2168
      %v2587 = vpop.f32.mrf.mxu0
      %v2588 = vadd.f32 0.0, %v2587
      %2589 = vmatmul.f32.gmra.mxu0 %v2169
      %v2590 = vpop.f32.mrf.mxu0
      %2591 = vmatmul.f32.gmra.mxu0 %v2170
      %v2592 = vpop.f32.mrf.mxu0
      %v2593 = vadd.f32 0.0, %v2592
      %2594 = vmatmul.f32.gmra.mxu0 %v2171
      %v2595 = vpop.f32.mrf.mxu0
      %v2596 = vadd.f32 0.0, %v2595
      %2597 = vmatmul.f32.gmra.mxu0 %v2172
      %v2598 = vpop.f32.mrf.mxu0
      %2599 = vmatmul.f32.gmra.mxu0 %v2173
      %v2600 = vpop.f32.mrf.mxu0
      %v2601 = vadd.f32 0.0, %v2600
      %2602 = vmatmul.f32.gmra.mxu0 %v2174
      %v2603 = vpop.f32.mrf.mxu0
      %v2604 = vadd.f32 0.0, %v2603
      %2605 = vmatmul.f32.gmra.mxu0 %v2175
      %v2606 = vpop.f32.mrf.mxu0
      %2607 = vmatmul.f32.gmra.mxu0 %v2176
      %v2608 = vpop.f32.mrf.mxu0
      %v2609 = vadd.f32 0.0, %v2608
      %2610 = vmatmul.f32.gmra.mxu0 %v2177
      %v2611 = vpop.f32.mrf.mxu0
      %v2612 = vadd.f32 0.0, %v2611
      %2613 = vmatmul.f32.gmra.mxu0 %v2178
      %v2614 = vpop.f32.mrf.mxu0
      %2615 = vmatmul.f32.gmra.mxu0 %v2179
      %v2616 = vpop.f32.mrf.mxu0
      %v2617 = vadd.f32 0.0, %v2616
      %2618 = vmatmul.f32.gmra.mxu0 %v2180
      %v2619 = vpop.f32.mrf.mxu0
      %v2620 = vadd.f32 0.0, %v2619
      %2621 = vmatmul.f32.gmra.mxu0 %v2181
      %v2622 = vpop.f32.mrf.mxu0
      %2623 = vmatmul.f32.gmra.mxu0 %v2182
      %v2624 = vpop.f32.mrf.mxu0
      %v2625 = vadd.f32 0.0, %v2624
      %2626 = vmatmul.f32.gmra.mxu0 %v2183
      %v2627 = vpop.f32.mrf.mxu0
      %v2628 = vadd.f32 0.0, %v2627
      %2629 = vmatmul.f32.gmra.mxu0 %v2184
      %v2630 = vpop.f32.mrf.mxu0
      %2631 = vmatmul.f32.gmra.mxu0 %v2185
      %v2632 = vpop.f32.mrf.mxu0
      %v2633 = vadd.f32 0.0, %v2632
      %2634 = vmatmul.f32.gmra.mxu0 %v2186
      %v2635 = vpop.f32.mrf.mxu0
      %v2636 = vadd.f32 0.0, %v2635
      %2637 = vmatmul.f32.gmra.mxu0 %v2187
      %v2638 = vpop.f32.mrf.mxu0
      %2639 = vdwg.mxu0
      %v2640 = vadd.f32 %v2446, %v2513
      %v2641 = vadd.f32 %v2447, %v2516
      %v2642 = vadd.f32 %v2448, %v2521
      %v2643 = vadd.f32 %v2449, %v2524
      %v2644 = vadd.f32 %v2450, %v2529
      %v2645 = vadd.f32 %v2451, %v2532
      %v2646 = vadd.f32 %v2452, %v2537
      %v2647 = vadd.f32 %v2453, %v2540
      %v2648 = vadd.f32 %v2454, %v2545
      %v2649 = vadd.f32 %v2455, %v2548
      %v2650 = vadd.f32 %v2456, %v2553
      %v2651 = vadd.f32 %v2457, %v2556
      %v2652 = vadd.f32 %v2458, %v2561
      %v2653 = vadd.f32 %v2459, %v2564
      %v2654 = vadd.f32 %v2460, %v2569
      %v2655 = vadd.f32 %v2461, %v2572
      %v2656 = vadd.f32 %v2462, %v2577
      %v2657 = vadd.f32 %v2463, %v2580
      %v2658 = vadd.f32 %v2464, %v2585
      %v2659 = vadd.f32 %v2465, %v2588
      %v2660 = vadd.f32 %v2466, %v2593
      %v2661 = vadd.f32 %v2467, %v2596
      %v2662 = vadd.f32 %v2468, %v2601
      %v2663 = vadd.f32 %v2469, %v2604
      %v2664 = vadd.f32 %v2470, %v2609
      %v2665 = vadd.f32 %v2471, %v2612
      %v2666 = vadd.f32 %v2472, %v2617
      %v2667 = vadd.f32 %v2473, %v2620
      %v2668 = vadd.f32 %v2474, %v2625
      %v2669 = vadd.f32 %v2475, %v2628
      %v2670 = vadd.f32 %v2476, %v2633
      %v2671 = vadd.f32 %v2477, %v2636
      %s2672 = scalar_lea.vmem %s1, 1024
      %v2673 = vld [vmem:[%s2672] sm:$0xff]
      %v2674 = vld [vmem:[%s2672 + $0x8] sm:$0xff]
      %v2675 = vld [vmem:[%s2672 + $0x10] sm:$0xff]
      %v2676 = vld [vmem:[%s2672 + $0x18] sm:$0xff]
      %v2677 = vld [vmem:[%s2672 + $0x20] sm:$0xff]
      %v2678 = vld [vmem:[%s2672 + $0x28] sm:$0xff]
      %v2679 = vld [vmem:[%s2672 + $0x30] sm:$0xff]
      %v2680 = vld [vmem:[%s2672 + $0x38] sm:$0xff]
      %v2681 = vld [vmem:[%s2672 + $0x40] sm:$0xff]
      %v2682 = vld [vmem:[%s2672 + $0x48] sm:$0xff]
      %v2683 = vld [vmem:[%s2672 + $0x50] sm:$0xff]
      %v2684 = vld [vmem:[%s2672 + $0x58] sm:$0xff]
      %v2685 = vld [vmem:[%s2672 + $0x60] sm:$0xff]
      %v2686 = vld [vmem:[%s2672 + $0x68] sm:$0xff]
      %v2687 = vld [vmem:[%s2672 + $0x70] sm:$0xff]
      %v2688 = vld [vmem:[%s2672 + $0x78] sm:$0xff]
      %2689 = vmatpush.msra.mxu0 %v2688
      %2690 = vmatpush.msra.mxu0 %v2687
      %2691 = vmatpush.msra.mxu0 %v2686
      %2692 = vmatpush.msra.mxu0 %v2685
      %2693 = vmatpush.msra.mxu0 %v2684
      %2694 = vmatpush.msra.mxu0 %v2683
      %2695 = vmatpush.msra.mxu0 %v2682
      %2696 = vmatpush.msra.mxu0 %v2681
      %2697 = vmatpush.msra.mxu0 %v2680
      %2698 = vmatpush.msra.mxu0 %v2679
      %2699 = vmatpush.msra.mxu0 %v2678
      %2700 = vmatpush.msra.mxu0 %v2677
      %2701 = vmatpush.msra.mxu0 %v2676
      %2702 = vmatpush.msra.mxu0 %v2675
      %2703 = vmatpush.msra.mxu0 %v2674
      %2704 = vmatpush.msra.mxu0 %v2673
      %2705 = vmatmul.f32.gmra.mxu0 %v2140
      %v2706 = vpop.f32.mrf.mxu0
      %v2707 = vadd.f32 0.0, %v2706
      %2708 = vmatmul.f32.gmra.mxu0 %v2141
      %v2709 = vpop.f32.mrf.mxu0
      %v2710 = vadd.f32 0.0, %v2709
      %2711 = vmatmul.f32.gmra.mxu0 %v2142
      %v2712 = vpop.f32.mrf.mxu0
      %v2713 = vadd.f32 0.0, %v2712
      %2714 = vmatmul.f32.gmra.mxu0 %v2143
      %v2715 = vpop.f32.mrf.mxu0
      %v2716 = vadd.f32 0.0, %v2715
      %2717 = vmatmul.f32.gmra.mxu0 %v2144
      %v2718 = vpop.f32.mrf.mxu0
      %v2719 = vadd.f32 0.0, %v2718
      %2720 = vmatmul.f32.gmra.mxu0 %v2145
      %v2721 = vpop.f32.mrf.mxu0
      %v2722 = vadd.f32 0.0, %v2721
      %2723 = vmatmul.f32.gmra.mxu0 %v2146
      %v2724 = vpop.f32.mrf.mxu0
      %v2725 = vadd.f32 0.0, %v2724
      %2726 = vmatmul.f32.gmra.mxu0 %v2147
      %v2727 = vpop.f32.mrf.mxu0
      %v2728 = vadd.f32 0.0, %v2727
      %2729 = vmatmul.f32.gmra.mxu0 %v2148
      %v2730 = vpop.f32.mrf.mxu0
      %v2731 = vadd.f32 0.0, %v2730
      %2732 = vmatmul.f32.gmra.mxu0 %v2149
      %v2733 = vpop.f32.mrf.mxu0
      %v2734 = vadd.f32 0.0, %v2733
      %2735 = vmatmul.f32.gmra.mxu0 %v2150
      %v2736 = vpop.f32.mrf.mxu0
      %v2737 = vadd.f32 0.0, %v2736
      %2738 = vmatmul.f32.gmra.mxu0 %v2151
      %v2739 = vpop.f32.mrf.mxu0
      %v2740 = vadd.f32 0.0, %v2739
      %2741 = vmatmul.f32.gmra.mxu0 %v2152
      %v2742 = vpop.f32.mrf.mxu0
      %v2743 = vadd.f32 0.0, %v2742
      %2744 = vmatmul.f32.gmra.mxu0 %v2153
      %v2745 = vpop.f32.mrf.mxu0
      %v2746 = vadd.f32 0.0, %v2745
      %2747 = vmatmul.f32.gmra.mxu0 %v2154
      %v2748 = vpop.f32.mrf.mxu0
      %v2749 = vadd.f32 0.0, %v2748
      %2750 = vmatmul.f32.gmra.mxu0 %v2155
      %v2751 = vpop.f32.mrf.mxu0
      %v2752 = vadd.f32 0.0, %v2751
      %2753 = vmatmul.f32.gmra.mxu0 %v2156
      %v2754 = vpop.f32.mrf.mxu0
      %v2755 = vadd.f32 0.0, %v2754
      %2756 = vmatmul.f32.gmra.mxu0 %v2157
      %v2757 = vpop.f32.mrf.mxu0
      %v2758 = vadd.f32 0.0, %v2757
      %2759 = vmatmul.f32.gmra.mxu0 %v2158
      %v2760 = vpop.f32.mrf.mxu0
      %v2761 = vadd.f32 0.0, %v2760
      %2762 = vmatmul.f32.gmra.mxu0 %v2159
      %v2763 = vpop.f32.mrf.mxu0
      %v2764 = vadd.f32 0.0, %v2763
      %2765 = vmatmul.f32.gmra.mxu0 %v2160
      %v2766 = vpop.f32.mrf.mxu0
      %v2767 = vadd.f32 0.0, %v2766
      %2768 = vmatmul.f32.gmra.mxu0 %v2161
      %v2769 = vpop.f32.mrf.mxu0
      %v2770 = vadd.f32 0.0, %v2769
      %2771 = vmatmul.f32.gmra.mxu0 %v2162
      %v2772 = vpop.f32.mrf.mxu0
      %v2773 = vadd.f32 0.0, %v2772
      %2774 = vmatmul.f32.gmra.mxu0 %v2163
      %v2775 = vpop.f32.mrf.mxu0
      %v2776 = vadd.f32 0.0, %v2775
      %2777 = vmatmul.f32.gmra.mxu0 %v2164
      %v2778 = vpop.f32.mrf.mxu0
      %v2779 = vadd.f32 0.0, %v2778
      %2780 = vmatmul.f32.gmra.mxu0 %v2165
      %v2781 = vpop.f32.mrf.mxu0
      %v2782 = vadd.f32 0.0, %v2781
      %2783 = vmatmul.f32.gmra.mxu0 %v2166
      %v2784 = vpop.f32.mrf.mxu0
      %v2785 = vadd.f32 0.0, %v2784
      %2786 = vmatmul.f32.gmra.mxu0 %v2167
      %v2787 = vpop.f32.mrf.mxu0
      %v2788 = vadd.f32 0.0, %v2787
      %2789 = vmatmul.f32.gmra.mxu0 %v2168
      %v2790 = vpop.f32.mrf.mxu0
      %v2791 = vadd.f32 0.0, %v2790
      %2792 = vmatmul.f32.gmra.mxu0 %v2169
      %v2793 = vpop.f32.mrf.mxu0
      %v2794 = vadd.f32 0.0, %v2793
      %2795 = vmatmul.f32.gmra.mxu0 %v2170
      %v2796 = vpop.f32.mrf.mxu0
      %v2797 = vadd.f32 0.0, %v2796
      %2798 = vmatmul.f32.gmra.mxu0 %v2171
      %v2799 = vpop.f32.mrf.mxu0
      %v2800 = vadd.f32 0.0, %v2799
      %2801 = vmatmul.f32.gmra.mxu0 %v2172
      %v2802 = vpop.f32.mrf.mxu0
      %v2803 = vadd.f32 0.0, %v2802
      %2804 = vmatmul.f32.gmra.mxu0 %v2173
      %v2805 = vpop.f32.mrf.mxu0
      %v2806 = vadd.f32 0.0, %v2805
      %2807 = vmatmul.f32.gmra.mxu0 %v2174
      %v2808 = vpop.f32.mrf.mxu0
      %v2809 = vadd.f32 0.0, %v2808
      %2810 = vmatmul.f32.gmra.mxu0 %v2175
      %v2811 = vpop.f32.mrf.mxu0
      %v2812 = vadd.f32 0.0, %v2811
      %2813 = vmatmul.f32.gmra.mxu0 %v2176
      %v2814 = vpop.f32.mrf.mxu0
      %v2815 = vadd.f32 0.0, %v2814
      %2816 = vmatmul.f32.gmra.mxu0 %v2177
      %v2817 = vpop.f32.mrf.mxu0
      %v2818 = vadd.f32 0.0, %v2817
      %2819 = vmatmul.f32.gmra.mxu0 %v2178
      %v2820 = vpop.f32.mrf.mxu0
      %v2821 = vadd.f32 0.0, %v2820
      %2822 = vmatmul.f32.gmra.mxu0 %v2179
      %v2823 = vpop.f32.mrf.mxu0
      %v2824 = vadd.f32 0.0, %v2823
      %2825 = vmatmul.f32.gmra.mxu0 %v2180
      %v2826 = vpop.f32.mrf.mxu0
      %v2827 = vadd.f32 0.0, %v2826
      %2828 = vmatmul.f32.gmra.mxu0 %v2181
      %v2829 = vpop.f32.mrf.mxu0
      %v2830 = vadd.f32 0.0, %v2829
      %2831 = vmatmul.f32.gmra.mxu0 %v2182
      %v2832 = vpop.f32.mrf.mxu0
      %v2833 = vadd.f32 0.0, %v2832
      %2834 = vmatmul.f32.gmra.mxu0 %v2183
      %v2835 = vpop.f32.mrf.mxu0
      %v2836 = vadd.f32 0.0, %v2835
      %2837 = vmatmul.f32.gmra.mxu0 %v2184
      %v2838 = vpop.f32.mrf.mxu0
      %v2839 = vadd.f32 0.0, %v2838
      %2840 = vmatmul.f32.gmra.mxu0 %v2185
      %v2841 = vpop.f32.mrf.mxu0
      %v2842 = vadd.f32 0.0, %v2841
      %2843 = vmatmul.f32.gmra.mxu0 %v2186
      %v2844 = vpop.f32.mrf.mxu0
      %v2845 = vadd.f32 0.0, %v2844
      %2846 = vmatmul.f32.gmra.mxu0 %v2187
      %v2847 = vpop.f32.mrf.mxu0
      %v2848 = vadd.f32 0.0, %v2847
      %2849 = vdwg.mxu0
      %v2850 = vrot.slane %v2707, 1
      %v2851 = vrot.slane %v2710, 1
      %v2852 = vrot.slane %v2713, 1
      %v2853 = vrot.slane %v2716, 1
      %v2854 = vrot.slane %v2719, 1
      %v2855 = vrot.slane %v2722, 1
      %v2856 = vrot.slane %v2725, 1
      %v2857 = vrot.slane %v2728, 1
      %v2858 = vrot.slane %v2731, 1
      %v2859 = vrot.slane %v2734, 1
      %v2860 = vrot.slane %v2737, 1
      %v2861 = vrot.slane %v2740, 1
      %v2862 = vrot.slane %v2743, 1
      %v2863 = vrot.slane %v2746, 1
      %v2864 = vrot.slane %v2749, 1
      %v2865 = vrot.slane %v2752, 1
      %v2866 = vrot.slane %v2755, 1
      %v2867 = vrot.slane %v2758, 1
      %v2868 = vrot.slane %v2761, 1
      %v2869 = vrot.slane %v2764, 1
      %v2870 = vrot.slane %v2767, 1
      %v2871 = vrot.slane %v2770, 1
      %v2872 = vrot.slane %v2773, 1
      %v2873 = vrot.slane %v2776, 1
      %v2874 = vrot.slane %v2779, 1
      %v2875 = vrot.slane %v2782, 1
      %v2876 = vrot.slane %v2785, 1
      %v2877 = vrot.slane %v2788, 1
      %v2878 = vrot.slane %v2791, 1
      %v2879 = vrot.slane %v2794, 1
      %v2880 = vrot.slane %v2797, 1
      %v2881 = vrot.slane %v2800, 1
      %v2882 = vrot.slane %v2803, 1
      %v2883 = vrot.slane %v2806, 1
      %v2884 = vrot.slane %v2809, 1
      %v2885 = vrot.slane %v2812, 1
      %v2886 = vrot.slane %v2815, 1
      %v2887 = vrot.slane %v2818, 1
      %v2888 = vrot.slane %v2821, 1
      %v2889 = vrot.slane %v2824, 1
      %v2890 = vrot.slane %v2827, 1
      %v2891 = vrot.slane %v2830, 1
      %v2892 = vrot.slane %v2833, 1
      %v2893 = vrot.slane %v2836, 1
      %v2894 = vrot.slane %v2839, 1
      %v2895 = vrot.slane %v2842, 1
      %v2896 = vrot.slane %v2845, 1
      %v2897 = vrot.slane %v2848, 1
      %v2898 = vsel %vm1247, %v2896, %v2897
      %v2899 = vsel %vm1247, %v2895, %v2896
      %v2900 = vsel %vm1247, %v2893, %v2894
      %v2901 = vsel %vm1247, %v2892, %v2893
      %v2902 = vsel %vm1247, %v2890, %v2891
      %v2903 = vsel %vm1247, %v2889, %v2890
      %v2904 = vsel %vm1247, %v2887, %v2888
      %v2905 = vsel %vm1247, %v2886, %v2887
      %v2906 = vsel %vm1247, %v2884, %v2885
      %v2907 = vsel %vm1247, %v2883, %v2884
      %v2908 = vsel %vm1247, %v2881, %v2882
      %v2909 = vsel %vm1247, %v2880, %v2881
      %v2910 = vsel %vm1247, %v2878, %v2879
      %v2911 = vsel %vm1247, %v2877, %v2878
      %v2912 = vsel %vm1247, %v2875, %v2876
      %v2913 = vsel %vm1247, %v2874, %v2875
      %v2914 = vsel %vm1247, %v2872, %v2873
      %v2915 = vsel %vm1247, %v2871, %v2872
      %v2916 = vsel %vm1247, %v2869, %v2870
      %v2917 = vsel %vm1247, %v2868, %v2869
      %v2918 = vsel %vm1247, %v2866, %v2867
      %v2919 = vsel %vm1247, %v2865, %v2866
      %v2920 = vsel %vm1247, %v2863, %v2864
      %v2921 = vsel %vm1247, %v2862, %v2863
      %v2922 = vsel %vm1247, %v2860, %v2861
      %v2923 = vsel %vm1247, %v2859, %v2860
      %v2924 = vsel %vm1247, %v2857, %v2858
      %v2925 = vsel %vm1247, %v2856, %v2857
      %v2926 = vsel %vm1247, %v2854, %v2855
      %v2927 = vsel %vm1247, %v2853, %v2854
      %v2928 = vsel %vm1247, %v2851, %v2852
      %v2929 = vsel %vm1247, %v2850, %v2851
      %v2930 = vadd.f32 %v2640, %v2929
      %v2931 = vadd.f32 %v2641, %v2928
      %v2932 = vadd.f32 %v2642, %v2927
      %v2933 = vadd.f32 %v2643, %v2926
      %v2934 = vadd.f32 %v2644, %v2925
      %v2935 = vadd.f32 %v2645, %v2924
      %v2936 = vadd.f32 %v2646, %v2923
      %v2937 = vadd.f32 %v2647, %v2922
      %v2938 = vadd.f32 %v2648, %v2921
      %v2939 = vadd.f32 %v2649, %v2920
      %v2940 = vadd.f32 %v2650, %v2919
      %v2941 = vadd.f32 %v2651, %v2918
      %v2942 = vadd.f32 %v2652, %v2917
      %v2943 = vadd.f32 %v2653, %v2916
      %v2944 = vadd.f32 %v2654, %v2915
      %v2945 = vadd.f32 %v2655, %v2914
      %v2946 = vadd.f32 %v2656, %v2913
      %v2947 = vadd.f32 %v2657, %v2912
      %v2948 = vadd.f32 %v2658, %v2911
      %v2949 = vadd.f32 %v2659, %v2910
      %v2950 = vadd.f32 %v2660, %v2909
      %v2951 = vadd.f32 %v2661, %v2908
      %v2952 = vadd.f32 %v2662, %v2907
      %v2953 = vadd.f32 %v2663, %v2906
      %v2954 = vadd.f32 %v2664, %v2905
      %v2955 = vadd.f32 %v2665, %v2904
      %v2956 = vadd.f32 %v2666, %v2903
      %v2957 = vadd.f32 %v2667, %v2902
      %v2958 = vadd.f32 %v2668, %v2901
      %v2959 = vadd.f32 %v2669, %v2900
      %v2960 = vadd.f32 %v2670, %v2899
      %v2961 = vadd.f32 %v2671, %v2898
      %v2962 = vld [vmem:[%s2] sm:$0x1]
      %v2964 = vperm.slane %v2962, 0
      %v2966 = vadd.f32 %v2930, %v2964
      %v2967 = vadd.f32 %v2931, %v2964
      %v2968 = vadd.f32 %v2932, %v2964
      %v2969 = vadd.f32 %v2933, %v2964
      %v2970 = vadd.f32 %v2934, %v2964
      %v2971 = vadd.f32 %v2935, %v2964
      %v2972 = vadd.f32 %v2936, %v2964
      %v2973 = vadd.f32 %v2937, %v2964
      %v2974 = vadd.f32 %v2938, %v2964
      %v2975 = vadd.f32 %v2939, %v2964
      %v2976 = vadd.f32 %v2940, %v2964
      %v2977 = vadd.f32 %v2941, %v2964
      %v2978 = vadd.f32 %v2942, %v2964
      %v2979 = vadd.f32 %v2943, %v2964
      %v2980 = vadd.f32 %v2944, %v2964
      %v2981 = vadd.f32 %v2945, %v2964
      %v2982 = vadd.f32 %v2946, %v2964
      %v2983 = vadd.f32 %v2947, %v2964
      %v2984 = vadd.f32 %v2948, %v2964
      %v2985 = vadd.f32 %v2949, %v2964
      %v2986 = vadd.f32 %v2950, %v2964
      %v2987 = vadd.f32 %v2951, %v2964
      %v2988 = vadd.f32 %v2952, %v2964
      %v2989 = vadd.f32 %v2953, %v2964
      %v2990 = vadd.f32 %v2954, %v2964
      %v2991 = vadd.f32 %v2955, %v2964
      %v2992 = vadd.f32 %v2956, %v2964
      %v2993 = vadd.f32 %v2957, %v2964
      %v2994 = vadd.f32 %v2958, %v2964
      %v2995 = vadd.f32 %v2959, %v2964
      %v2996 = vadd.f32 %v2960, %v2964
      %v2997 = vadd.f32 %v2961, %v2964
      %v2998 = vmax.f32 %v2966, 0.0
      %v2999 = vmax.f32 %v2967, 0.0
      %v3000 = vmax.f32 %v2968, 0.0
      %v3001 = vmax.f32 %v2969, 0.0
      %v3002 = vmax.f32 %v2970, 0.0
      %v3003 = vmax.f32 %v2971, 0.0
      %v3004 = vmax.f32 %v2972, 0.0
      %v3005 = vmax.f32 %v2973, 0.0
      %v3006 = vmax.f32 %v2974, 0.0
      %v3007 = vmax.f32 %v2975, 0.0
      %v3008 = vmax.f32 %v2976, 0.0
      %v3009 = vmax.f32 %v2977, 0.0
      %v3010 = vmax.f32 %v2978, 0.0
      %v3011 = vmax.f32 %v2979, 0.0
      %v3012 = vmax.f32 %v2980, 0.0
      %v3013 = vmax.f32 %v2981, 0.0
      %v3014 = vmax.f32 %v2982, 0.0
      %v3015 = vmax.f32 %v2983, 0.0
      %v3016 = vmax.f32 %v2984, 0.0
      %v3017 = vmax.f32 %v2985, 0.0
      %v3018 = vmax.f32 %v2986, 0.0
      %v3019 = vmax.f32 %v2987, 0.0
      %v3020 = vmax.f32 %v2988, 0.0
      %v3021 = vmax.f32 %v2989, 0.0
      %v3022 = vmax.f32 %v2990, 0.0
      %v3023 = vmax.f32 %v2991, 0.0
      %v3024 = vmax.f32 %v2992, 0.0
      %v3025 = vmax.f32 %v2993, 0.0
      %v3026 = vmax.f32 %v2994, 0.0
      %v3027 = vmax.f32 %v2995, 0.0
      %v3028 = vmax.f32 %v2996, 0.0
      %v3029 = vmax.f32 %v2997, 0.0
      %3030 = vst [vmem:[%s282] sm:$0xff] %v2998
      %3031 = vst [vmem:[%s282 + $0x8] sm:$0xff] %v2999
      %3032 = vst [vmem:[%s282 + $0x10] sm:$0xff] %v3000
      %3033 = vst [vmem:[%s282 + $0x18] sm:$0xff] %v3001
      %3034 = vst [vmem:[%s282 + $0x20] sm:$0xff] %v3002
      %3035 = vst [vmem:[%s282 + $0x28] sm:$0xff] %v3003
      %3036 = vst [vmem:[%s282 + $0x30] sm:$0xff] %v3004
      %3037 = vst [vmem:[%s282 + $0x38] sm:$0xff] %v3005
      %3038 = vst [vmem:[%s282 + $0x40] sm:$0xff] %v3006
      %3039 = vst [vmem:[%s282 + $0x48] sm:$0xff] %v3007
      %3040 = vst [vmem:[%s282 + $0x50] sm:$0xff] %v3008
      %3041 = vst [vmem:[%s282 + $0x58] sm:$0xff] %v3009
      %3042 = vst [vmem:[%s282 + $0x60] sm:$0xff] %v3010
      %3043 = vst [vmem:[%s282 + $0x68] sm:$0xff] %v3011
      %3044 = vst [vmem:[%s282 + $0x70] sm:$0xff] %v3012
      %3045 = vst [vmem:[%s282 + $0x78] sm:$0xff] %v3013
      %3046 = vst [vmem:[%s282 + $0x80] sm:$0xff] %v3014
      %3047 = vst [vmem:[%s282 + $0x88] sm:$0xff] %v3015
      %3048 = vst [vmem:[%s282 + $0x90] sm:$0xff] %v3016
      %3049 = vst [vmem:[%s282 + $0x98] sm:$0xff] %v3017
      %3050 = vst [vmem:[%s282 + $0xa0] sm:$0xff] %v3018
      %3051 = vst [vmem:[%s282 + $0xa8] sm:$0xff] %v3019
      %3052 = vst [vmem:[%s282 + $0xb0] sm:$0xff] %v3020
      %3053 = vst [vmem:[%s282 + $0xb8] sm:$0xff] %v3021
      %3054 = vst [vmem:[%s282 + $0xc0] sm:$0xff] %v3022
      %3055 = vst [vmem:[%s282 + $0xc8] sm:$0xff] %v3023
      %3056 = vst [vmem:[%s282 + $0xd0] sm:$0xff] %v3024
      %3057 = vst [vmem:[%s282 + $0xd8] sm:$0xff] %v3025
      %3058 = vst [vmem:[%s282 + $0xe0] sm:$0xff] %v3026
      %3059 = vst [vmem:[%s282 + $0xe8] sm:$0xff] %v3027
      %3060 = vst [vmem:[%s282 + $0xf0] sm:$0xff] %v3028
      %3061 = vst [vmem:[%s282 + $0xf8] sm:$0xff] %v3029
      %v3062 = vld [vmem:[%s287] sm:$0x1]
      %v3063 = vadd.f32 %v2998, %v2999
      %v3064 = vadd.f32 %v3063, %v3000
      %v3065 = vadd.f32 %v3064, %v3001
      %v3066 = vadd.f32 %v3065, %v3002
      %v3067 = vadd.f32 %v3066, %v3003
      %v3068 = vadd.f32 %v3067, %v3004
      %v3069 = vadd.f32 %v3068, %v3005
      %v3070 = vadd.f32 %v3069, %v3006
      %v3071 = vadd.f32 %v3070, %v3007
      %v3072 = vadd.f32 %v3071, %v3008
      %v3073 = vadd.f32 %v3072, %v3009
      %v3074 = vadd.f32 %v3073, %v3010
      %v3075 = vadd.f32 %v3074, %v3011
      %v3076 = vadd.f32 %v3075, %v3012
      %v3077 = vadd.f32 %v3076, %v3013
      %v3078 = vadd.f32 %v3077, %v3014
      %v3079 = vadd.f32 %v3078, %v3015
      %v3080 = vadd.f32 %v3079, %v3016
      %v3081 = vadd.f32 %v3080, %v3017
      %v3082 = vadd.f32 %v3081, %v3018
      %v3083 = vadd.f32 %v3082, %v3019
      %v3084 = vadd.f32 %v3083, %v3020
      %v3085 = vadd.f32 %v3084, %v3021
      %v3086 = vadd.f32 %v3085, %v3022
      %v3087 = vadd.f32 %v3086, %v3023
      %v3088 = vadd.f32 %v3087, %v3024
      %v3089 = vadd.f32 %v3088, %v3025
      %v3090 = vadd.f32 %v3089, %v3026
      %v3091 = vadd.f32 %v3090, %v3027
      %v3092 = vadd.f32 %v3091, %v3028
      %v3093 = vadd.f32 %v3092, %v3029
      %v3094 = vrot.slane %v3093, 4
      %v3095 = vadd.f32 %v3093, %v3094
      %v3096 = vrot.slane %v3095, 2
      %v3097 = vadd.f32 %v3095, %v3096
      %v3098 = vrot.slane %v3097, 1
      %v3099 = vadd.f32 %v3097, %v3098
      %v3100 = vadd.f32 %v3062, %v3099
      %3101 = vst [vmem:[%s287] sm:$0x1] %v3100
      %v3102 = vld [vmem:[%s287 + $0x1] sm:$0x1]
      %v3103 = vmul.f32 %v2998, %v2998
      %v3104 = vmul.f32 %v2999, %v2999
      %v3105 = vmul.f32 %v3000, %v3000
      %v3106 = vmul.f32 %v3001, %v3001
      %v3107 = vmul.f32 %v3002, %v3002
      %v3108 = vmul.f32 %v3003, %v3003
      %v3109 = vmul.f32 %v3004, %v3004
      %v3110 = vmul.f32 %v3005, %v3005
      %v3111 = vmul.f32 %v3006, %v3006
      %v3112 = vmul.f32 %v3007, %v3007
      %v3113 = vmul.f32 %v3008, %v3008
      %v3114 = vmul.f32 %v3009, %v3009
      %v3115 = vmul.f32 %v3010, %v3010
      %v3116 = vmul.f32 %v3011, %v3011
      %v3117 = vmul.f32 %v3012, %v3012
      %v3118 = vmul.f32 %v3013, %v3013
      %v3119 = vmul.f32 %v3014, %v3014
      %v3120 = vmul.f32 %v3015, %v3015
      %v3121 = vmul.f32 %v3016, %v3016
      %v3122 = vmul.f32 %v3017, %v3017
      %v3123 = vmul.f32 %v3018, %v3018
      %v3124 = vmul.f32 %v3019, %v3019
      %v3125 = vmul.f32 %v3020, %v3020
      %v3126 = vmul.f32 %v3021, %v3021
      %v3127 = vmul.f32 %v3022, %v3022
      %v3128 = vmul.f32 %v3023, %v3023
      %v3129 = vmul.f32 %v3024, %v3024
      %v3130 = vmul.f32 %v3025, %v3025
      %v3131 = vmul.f32 %v3026, %v3026
      %v3132 = vmul.f32 %v3027, %v3027
      %v3133 = vmul.f32 %v3028, %v3028
      %v3134 = vmul.f32 %v3029, %v3029
      %v3135 = vadd.f32 %v3103, %v3104
      %v3136 = vadd.f32 %v3135, %v3105
      %v3137 = vadd.f32 %v3136, %v3106
      %v3138 = vadd.f32 %v3137, %v3107
      %v3139 = vadd.f32 %v3138, %v3108
      %v3140 = vadd.f32 %v3139, %v3109
      %v3141 = vadd.f32 %v3140, %v3110
      %v3142 = vadd.f32 %v3141, %v3111
      %v3143 = vadd.f32 %v3142, %v3112
      %v3144 = vadd.f32 %v3143, %v3113
      %v3145 = vadd.f32 %v3144, %v3114
      %v3146 = vadd.f32 %v3145, %v3115
      %v3147 = vadd.f32 %v3146, %v3116
      %v3148 = vadd.f32 %v3147, %v3117
      %v3149 = vadd.f32 %v3148, %v3118
      %v3150 = vadd.f32 %v3149, %v3119
      %v3151 = vadd.f32 %v3150, %v3120
      %v3152 = vadd.f32 %v3151, %v3121
      %v3153 = vadd.f32 %v3152, %v3122
      %v3154 = vadd.f32 %v3153, %v3123
      %v3155 = vadd.f32 %v3154, %v3124
      %v3156 = vadd.f32 %v3155, %v3125
      %v3157 = vadd.f32 %v3156, %v3126
      %v3158 = vadd.f32 %v3157, %v3127
      %v3159 = vadd.f32 %v3158, %v3128
      %v3160 = vadd.f32 %v3159, %v3129
      %v3161 = vadd.f32 %v3160, %v3130
      %v3162 = vadd.f32 %v3161, %v3131
      %v3163 = vadd.f32 %v3162, %v3132
      %v3164 = vadd.f32 %v3163, %v3133
      %v3165 = vadd.f32 %v3164, %v3134
      %v3166 = vrot.slane %v3165, 4
      %v3167 = vadd.f32 %v3165, %v3166
      %v3168 = vrot.slane %v3167, 2
      %v3169 = vadd.f32 %v3167, %v3168
      %v3170 = vrot.slane %v3169, 1
      %v3171 = vadd.f32 %v3169, %v3170
      %v3172 = vadd.f32 %v3102, %v3171
      %3173 = vst [vmem:[%s287 + $0x1] sm:$0x1] %v3172
      %s3174 = smul.u32 16, %s23
      %p3175 = scmp.lt.s32.totalorder %s22, 1
      %s3176 = scalar_select %p3175, %s22, 1
      %p3177 = scmp.lt.s32.totalorder %s3174, 15
      %s3178 = scalar_select %p3177, %s3174, 15
      %s3179 = smul.addr %s3178, 2
      %s3180 = smul.addr %s3176, 32
      %s3181 = sadd.s32 %s3179, %s3180
      %s3182 = smul.addr %s3181, 8
      %s3183 = scalar_lea.vmem %s5, %s3182
      %p3184 = scmp.lt.s32.totalorder %s22, 1
      %s3185 = scalar_select %p3184, %s22, 1
      %s3186 = smul.addr %s3185, 2
      %s3187 = scalar_lea.vmem %s6, %s3186
      // Predicated region
      $region45: #{double_conv_layer.3} parent=39 // pred_check
        %p3188 = pneg %p160
      $region46: #{double_conv_layer.3} parent=39 // pred_check_branch
        %3190 = sbr.rel (%p3188) target = $region48
      $region47: #{double_conv_layer.3} parent=39 // pred_region
        %s3191 = smul.u32 16, %s23
      $region48: #{double_conv_layer.3} parent=39 // pred_fallthru
        _
      // Predicated region
      $region49: #{double_conv_layer.3} parent=39 // pred_check
        %p3192 = pneg %p186
      $region50: #{double_conv_layer.3} parent=39 // pred_check_branch
        %3194 = sbr.rel (%p3192) target = $region52
      $region51: #{double_conv_layer.3} parent=39 // pred_region
        _
      $region52: #{double_conv_layer.3} parent=39 // pred_fallthru
        _
    $region40: #{double_conv_layer.3} parent=5 // pred_fallthru
      _
    %p3195 = scmp.le.s32.totalorder 2, %s13
    // Predicated region
    $region53: #{double_conv_layer.3} parent=5 // pred_check
      %p3196 = pneg %p3195
    $region54: #{double_conv_layer.3} parent=5 // pred_check_branch
      %3198 = sbr.rel (%p3196) target = $region56
    $region55: #{double_conv_layer.3} parent=5 // pred_region
      %s3199 = ssub.s32 %s13, 2
      // Predicated region
      $region57: #{double_conv_layer.3} parent=55 // pred_check
        %p3200 = pneg %p166
      $region58: #{double_conv_layer.3} parent=55 // pred_check_branch
        %3202 = sbr.rel (%p3200) target = $region60
      $region59: #{double_conv_layer.3} parent=55 // pred_region
        %s3203 = smul.u32 16, %s25
        %p3204 = scmp.lt.s32.totalorder %s24, 1
        %s3205 = scalar_select %p3204, %s24, 1
        %p3206 = scmp.lt.s32.totalorder %s3203, 15
        %s3207 = scalar_select %p3206, %s3203, 15
        %s3208 = smul.addr %s3207, 2
        %s3209 = smul.addr %s3205, 32
        %s3210 = sadd.s32 %s3208, %s3209
        %s3211 = smul.addr %s3210, 8
        %s3212 = scalar_lea.vmem %s5, %s3211
      $region60: #{double_conv_layer.3} parent=55 // pred_fallthru
        _
      // Predicated region
      $region61: #{double_conv_layer.3} parent=55 // pred_check
        %p3213 = pneg %p192
      $region62: #{double_conv_layer.3} parent=55 // pred_check_branch
        %3215 = sbr.rel (%p3213) target = $region64
      $region63: #{double_conv_layer.3} parent=55 // pred_region
        %p3216 = scmp.lt.s32.totalorder %s24, 1
        %s3217 = scalar_select %p3216, %s24, 1
        %s3218 = smul.addr %s3217, 2
        %s3219 = scalar_lea.vmem %s6, %s3218
      $region64: #{double_conv_layer.3} parent=55 // pred_fallthru
        _
    $region56: #{double_conv_layer.3} parent=5 // pred_fallthru
      _
  $region6: #{double_conv_layer.3} parent=0 // loop_footer
    %s17 = sadd.s32 1, %s13
  $region7: #{double_conv_layer.3} parent=0 // loop_footer_branch
    %12 = sbr.rel target = $region3
  $region8: #{double_conv_layer.3} parent=0 // loop_exit
    _

</llo_original>
